<compile_context>
chip_gen: v5e
topology: v5e:2x2
jax: 0.10.0
libtpu: 0.0.40
codegen_flags: <defaults>
</compile_context>

<pallas_src>
import functools
import math

import jax
import jax.numpy as jnp
from jax.experimental import pallas as pl
from jax.experimental.pallas import tpu as pltpu


# --------------------------------------------------------------------------
# Buffered(1) support probe + grid-invariant BlockSpec helper.
# --------------------------------------------------------------------------
@functools.lru_cache(maxsize=None)
def _buffered_one_supported():
    """True iff BlockSpec(pipeline_mode=pl.Buffered(1)) compiles on this setup.

    Buffered(1) disables double-buffering for grid-invariant operands (the
    fused head weight is tens of MB at production widths; a second buffer for
    it is pure VMEM waste on v7x's 64 MiB)."""
    try:
        def _probe(x_ref, o_ref):
            o_ref[...] = x_ref[...]

        fn = pl.pallas_call(
            _probe,
            out_shape=jax.ShapeDtypeStruct((8, 128), jnp.float32),
            grid=(1,),
            in_specs=[pl.BlockSpec((8, 128), lambda i: (0, 0),
                                   pipeline_mode=pl.Buffered(1))],
            out_specs=pl.BlockSpec((8, 128), lambda i: (0, 0)),
        )
        jax.jit(fn).lower(jax.ShapeDtypeStruct((8, 128), jnp.float32)).compile()
        return True
    except Exception:
        return False


def _invariant_spec(shape):
    """BlockSpec for a grid-invariant input (constant index_map), single
    buffered when pipeline_mode=Buffered(1) is available."""
    index_map = lambda i: (0,) * len(shape)
    if _buffered_one_supported():
        return pl.BlockSpec(shape, index_map, pipeline_mode=pl.Buffered(1))
    return pl.BlockSpec(shape, index_map)


# --------------------------------------------------------------------------
# BLSTM (ChimeraBase): one Pallas kernel per layer with BOTH directions fused
# in a single body.  Grid = (num_time_chunks,) ("arbitrary"); h/c carried in
# VMEM scratch across chunks; the time loop inside each chunk is a fori_loop.
# --------------------------------------------------------------------------
def _bilstm_kernel(gxf_ref, gxb_ref, wblk_ref,
                   outf_ref, outb_ref, hN_ref, cN_ref,
                   h_scr, c_scr, *, unroll):
    # gxf_ref : (Tc, B, 4N) fwd gate pre-activations (x @ W_ih_f + b_f), chunk i.
    # gxb_ref : (Tc, B, 4N) bwd gate pre-activations, chunk (K-1-i), natural
    #           time order; read reversed in the loop (no HBM reversal copy).
    # wblk_ref: (2N, 8N) block-diagonal [[Whh_f^T, 0], [0, Whh_b^T]] so one
    #           MXU matmul per step drives BOTH directions (8N-wide output).
    # outf/outb: per-time hidden states for each direction.
    # hN/cN   : final states, written exactly once on the last chunk.
    # h/c_scr : (B, 2N) cross-chunk carries, columns [fwd | bwd].
    Tc, B, G4 = gxf_ref.shape
    N = G4 // 4

    @pl.when(pl.program_id(0) == 0)
    def _():
        h_scr[...] = jnp.zeros_like(h_scr)
        c_scr[...] = jnp.zeros_like(c_scr)

    wblk = wblk_ref[...]                                   # hoisted load

    def step(s, carry):
        h2, c2 = carry                                     # (B, 2N)
        rev = Tc - 1 - s
        ga = gxf_ref[s]                                    # fwd consumes time s
        gb = gxb_ref[rev]                                  # bwd consumes time Tc-1-s
        gm = jnp.dot(h2, wblk, preferred_element_type=jnp.float32)   # (B, 8N)
        gf = ga + gm[:, :G4]
        gr = gb + gm[:, G4:]
        # Gate nonlinearities fused across the two directions: wider vregs and
        # half the EUP pushes of the per-direction form.
        i2 = jax.nn.sigmoid(jnp.concatenate([gf[:, 0 * N:1 * N], gr[:, 0 * N:1 * N]], -1))
        f2 = jax.nn.sigmoid(jnp.concatenate([gf[:, 1 * N:2 * N], gr[:, 1 * N:2 * N]], -1))
        g2 = jnp.tanh(jnp.concatenate([gf[:, 2 * N:3 * N], gr[:, 2 * N:3 * N]], -1))
        o2 = jax.nn.sigmoid(jnp.concatenate([gf[:, 3 * N:4 * N], gr[:, 3 * N:4 * N]], -1))
        c2n = f2 * c2 + i2 * g2
        h2n = o2 * jnp.tanh(c2n)
        outf_ref[s] = h2n[:, :N]
        outb_ref[rev] = h2n[:, N:]
        return h2n, c2n

    hT, cT = jax.lax.fori_loop(0, Tc, step, (h_scr[...], c_scr[...]),
                               unroll=unroll)
    h_scr[...] = hT
    c_scr[...] = cT

    @pl.when(pl.program_id(0) == pl.num_programs(0) - 1)
    def _():
        hN_ref[0] = hT[:, :N]
        hN_ref[1] = hT[:, N:]
        cN_ref[0] = cT[:, :N]
        cN_ref[1] = cT[:, N:]


def _pick_time_chunk(T, cap=64):
    """Largest divisor of T that is <= cap: keeps the pipelined gx chunks inside
    v7x's 64 MiB VMEM at production sizes (demo sizes give a single chunk)."""
    if T <= cap:
        return T
    for tc in range(cap, 0, -1):
        if T % tc == 0:
            return tc
    return T


def bilstm_layer(gx_f, gx_b, w_blk):
    """gx_f/gx_b: (T, B, 4N) per-direction gate pre-activations (natural time
    order for both); w_blk: (2N, 8N) block-diag recurrent weight.
    Returns out_f (T,B,N), out_b (T,B,N), hN (2,B,N), cN (2,B,N)."""
    T, B, G4 = gx_f.shape
    N = G4 // 4
    Tc = _pick_time_chunk(T)
    K = T // Tc
    unroll = Tc if Tc <= 16 else 4       # modest unroll for long time loops
    kernel = functools.partial(_bilstm_kernel, unroll=unroll)
    return pl.pallas_call(
        kernel,
        out_shape=(jax.ShapeDtypeStruct((T, B, N), jnp.float32),
                   jax.ShapeDtypeStruct((T, B, N), jnp.float32),
                   jax.ShapeDtypeStruct((2, B, N), jnp.float32),
                   jax.ShapeDtypeStruct((2, B, N), jnp.float32)),
        grid_spec=pltpu.PrefetchScalarGridSpec(
            num_scalar_prefetch=0,
            grid=(K,),
            in_specs=[
                pl.BlockSpec((Tc, B, G4), lambda i: (i, 0, 0)),
                pl.BlockSpec((Tc, B, G4), lambda i: (K - 1 - i, 0, 0)),
                _invariant_spec((2 * N, 8 * N)),
            ],
            out_specs=[
                pl.BlockSpec((Tc, B, N), lambda i: (i, 0, 0)),
                pl.BlockSpec((Tc, B, N), lambda i: (K - 1 - i, 0, 0)),
                pl.BlockSpec((2, B, N), lambda i: (0, 0, 0)),
                pl.BlockSpec((2, B, N), lambda i: (0, 0, 0)),
            ],
            scratch_shapes=[pltpu.VMEM((B, 2 * N), jnp.float32),
                            pltpu.VMEM((B, 2 * N), jnp.float32)]),
        compiler_params=pltpu.CompilerParams(
            dimension_semantics=("arbitrary",)),
    )(gx_f, gx_b, w_blk)


def _project(pieces, wih_t, b):
    """Hoisted input projection x @ W_ih^T + b with the input supplied as a
    list of column pieces (avoids concatenating the previous layer's fwd/bwd
    halves in HBM).  wih_t: (In, 4N); b: (1, 4N)."""
    acc = b
    off = 0
    for p in pieces:
        w = wih_t[off:off + p.shape[1]]
        acc = acc + jnp.dot(p, w)
        off += p.shape[1]
    return acc


def bilstm_forward(x_tbi, lstm_params):
    """Stacked bidirectional LSTM (eval mode). x_tbi: (T, B, F).
    Returns hf_flat (T*B, N), hb_flat (T*B, N) of the last layer (t-major rows),
    h_n (2L, B, N), c_n (2L, B, N)."""
    T, B, F_in = x_tbi.shape
    pieces = [x_tbi.reshape(T * B, F_in)]
    h_list, c_list = [], []
    for lp in lstm_params:
        w_blk = lp['w_blk']
        N = w_blk.shape[0] // 2
        # One big XLA matmul per direction (hoisted out of the recurrence).
        # TODO(synk): on v5e, emitting gx in bf16 (or allow_input_fusion) would
        # halve/remove this HBM round trip; kept f32 for numerical parity.
        gx_f = _project(pieces, lp['fwd']['wih_t'], lp['fwd']['b']).reshape(T, B, 4 * N)
        gx_b = _project(pieces, lp['bwd']['wih_t'], lp['bwd']['b']).reshape(T, B, 4 * N)
        out_f, out_b, hN, cN = bilstm_layer(gx_f, gx_b, w_blk)
        pieces = [out_f.reshape(T * B, N), out_b.reshape(T * B, N)]
        h_list.extend([hN[0], hN[1]])
        c_list.extend([cN[0], cN[1]])
        # TODO(synk): training-mode inter-layer dropout (p=0.3) is identity (eval).
    return pieces[0], pieces[1], jnp.stack(h_list), jnp.stack(c_list)


# --------------------------------------------------------------------------
# Heads: EmbeddingHead + mag BaseMaskHead(+codebook) + phase BaseMaskHead
# (+codebook), fused into ONE matmul per row tile, ONE lane-dense output slab.
# Fused weight columns: [embed (F*D) | phase k-major (8*F*C) | mag k-major (3*F*C)]
# Output slab columns:  [embed (F*D) | mag (F*C) | phasep (8*F*C) | com (2*F*C)]
# --------------------------------------------------------------------------
def _heads_kernel(hf_ref, hb_ref, wt_ref, wb_ref, b_ref, g_ref, gt_ref, cs_ref,
                  out_ref, *, F, C, D):
    FD = F * D
    FC = F * C
    PW = 8 * FC

    # Single fused matmul for all 12 heads, fed by the two direction halves
    # (split weight -> no input concat), plus a single bias add.
    y = (jnp.dot(hf_ref[...], wt_ref[...], preferred_element_type=jnp.float32)
         + jnp.dot(hb_ref[...], wb_ref[...], preferred_element_type=jnp.float32)
         + b_ref[...])

    # ---- embedding head: sigmoid(Linear), then per-(t, f) L2 norm over D.
    e = jax.nn.sigmoid(y[:, :FD])
    ssq_f = jnp.dot(e * e, g_ref[...], preferred_element_type=jnp.float32)   # (R, F)
    ssq = jnp.dot(ssq_f, gt_ref[...], preferred_element_type=jnp.float32)    # (R, F*D)
    # PyTorch: e / norm.clamp(min=1e-12)  ==  e * rsqrt(max(ssq, 1e-24))
    embed = e * jax.lax.rsqrt(jnp.maximum(ssq, 1e-24))

    # ---- phasebook head: softmax over 8 codebook slots (k-major lanes).
    # Reductions over k use cyclic lane-roll trees (XLU) -> no per-slot slices.
    # TODO(synk): when F*C is not a multiple of 128, these section slices cost
    # lane-shift relayouts; column padding would remove them.
    yp = y[:, FD:FD + PW]
    m = yp
    for s in (4 * FC, 2 * FC, FC):
        m = jnp.maximum(m, pltpu.roll(m, shift=s, axis=1))
    ep = jnp.exp(yp - m)
    den = ep
    for s in (4 * FC, 2 * FC, FC):
        den = den + pltpu.roll(den, shift=s, axis=1)
    pp = ep / den                       # exact divide for parity with PyTorch softmax

    # phase codebook interpolation: sum_k pp_k * (cos th_k, sin th_k)
    wc = pp * cs_ref[0:1, :]
    ws = pp * cs_ref[1:2, :]
    for s in (4 * FC, 2 * FC, FC):
        wc = wc + pltpu.roll(wc, shift=s, axis=1)
        ws = ws + pltpu.roll(ws, shift=s, axis=1)
    cos_c = wc[:, :FC]
    sin_c = ws[:, :FC]

    # ---- magnitude head: softmax over 3 slots, codebook = [0, 1, 2].
    off = FD + PW
    y0 = y[:, off:off + FC]
    y1 = y[:, off + FC:off + 2 * FC]
    y2 = y[:, off + 2 * FC:off + 3 * FC]
    mm = jnp.maximum(jnp.maximum(y0, y1), y2)
    e0 = jnp.exp(y0 - mm)
    e1 = jnp.exp(y1 - mm)
    e2 = jnp.exp(y2 - mm)
    mag = (e1 + 2.0 * e2) / (e0 + e1 + e2)

    # ---- complex output: mag * (cos(atan2(sin_c, cos_c)), sin(atan2(...)))
    # via normalisation (identical to the atan2+cos/sin path).
    # TODO(synk): differs from PyTorch only at the degenerate point
    # cos_c == sin_c == 0, where atan2(0,0)=0 would give (mag, 0).
    scale = mag * jax.lax.rsqrt(jnp.maximum(cos_c * cos_c + sin_c * sin_c, 1e-30))

    # Single dense store of the whole lane-dense row slab.
    out_ref[...] = jnp.concatenate(
        [embed, mag, pp, scale * cos_c, scale * sin_c], axis=1)


def _pick_row_tile(R, cap=1024):
    # Largest multiple of 8 (<= cap) dividing R.  Bigger tiles amortise the
    # ~0.35us per-grid-step overhead; VMEM per tile stays far below the scoped
    # limit at these feature widths on v5e/v6e/v7x.
    if R % 8 != 0:
        return R              # single full-extent block (full-dim exemption)
    t = min(R, cap)
    t -= t % 8
    while R % t != 0:
        t -= 8
    return max(t, 8)


def run_heads(hf, hb, hp, F, C, D, row_tile):
    R, N = hf.shape
    FD, FC = F * D, F * C
    W_IN = FD + 11 * FC                 # embed + 8*phase + 3*mag columns
    OUT_W = FD + 11 * FC                # embed + mag + phasep + com columns
    kernel = functools.partial(_heads_kernel, F=F, C=C, D=D)
    return pl.pallas_call(
        kernel,
        out_shape=jax.ShapeDtypeStruct((R, OUT_W), jnp.float32),
        grid_spec=pltpu.PrefetchScalarGridSpec(
            num_scalar_prefetch=0,
            grid=(pl.cdiv(R, row_tile),),
            in_specs=[
                pl.BlockSpec((row_tile, N), lambda i: (i, 0)),
                pl.BlockSpec((row_tile, N), lambda i: (i, 0)),
                _invariant_spec((N, W_IN)),
                _invariant_spec((N, W_IN)),
                _invariant_spec((1, W_IN)),
                _invariant_spec((FD, F)),
                _invariant_spec((F, FD)),
                _invariant_spec((2, 8 * FC)),
            ],
            out_specs=pl.BlockSpec((row_tile, OUT_W), lambda i: (i, 0))),
        compiler_params=pltpu.CompilerParams(
            dimension_semantics=("parallel",)),
    )(hf, hb, hp['w_top'], hp['w_bot'], hp['b_all'], hp['g'], hp['gt'], hp['cs'])


# --------------------------------------------------------------------------
# Parameter setup (deterministic, synthetic) and full forward.
# --------------------------------------------------------------------------
def init_params(key, F, N, num_layers, C, D):
    params = {}
    lstm = []
    for l in range(num_layers):
        in_dim = F if l == 0 else 2 * N
        dirs = []
        for _d in range(2):
            key, k1, k2 = jax.random.split(key, 3)
            wih = jax.random.normal(k1, (4 * N, in_dim), jnp.float32) / math.sqrt(in_dim)
            whh = jax.random.normal(k2, (4 * N, N), jnp.float32) / math.sqrt(N)
            # PyTorch init (harness-only): both biases zero-filled, forget slice = 1
            # -> combined (b_ih + b_hh) forget-gate bias of 2.
            b = jnp.zeros((4 * N,), jnp.float32).at[N:2 * N].set(2.0)
            dirs.append({'wih_t': wih.T, 'whh_t': whh.T, 'b': b[None, :]})
        # Block-diagonal recurrent weight driving both directions in one matmul.
        w_blk = jnp.zeros((2 * N, 8 * N), jnp.float32)
        w_blk = w_blk.at[:N, :4 * N].set(dirs[0]['whh_t'])
        w_blk = w_blk.at[N:, 4 * N:].set(dirs[1]['whh_t'])
        lstm.append({'fwd': {'wih_t': dirs[0]['wih_t'], 'b': dirs[0]['b']},
                     'bwd': {'wih_t': dirs[1]['wih_t'], 'b': dirs[1]['b']},
                     'w_blk': w_blk})
    params['lstm'] = lstm

    H2 = 2 * N
    FD, FC = F * D, F * C
    key, ke, km, kp, kbe, kbm, kbp = jax.random.split(key, 7)
    embed_w = jax.random.normal(ke, (FD, H2), jnp.float32) * 0.1        # PyTorch (out, in)
    embed_b = jax.random.normal(kbe, (FD,), jnp.float32) * 0.1
    mag_w = jax.random.normal(km, (FC * 3, H2), jnp.float32) * 0.1      # out idx = fc*3 + k
    mag_b = jax.random.normal(kbm, (FC * 3,), jnp.float32) * 0.1
    phase_w = jax.random.normal(kp, (FC * 8, H2), jnp.float32) * 0.1    # out idx = fc*8 + k
    phase_b = jax.random.normal(kbp, (FC * 8,), jnp.float32) * 0.1

    # Fused head weight: columns = [embed (FD) | phase k-major (8*FC) | mag k-major (3*FC)]
    w_embed = embed_w.T                                                             # (H2, FD)
    w_phase = jnp.transpose(phase_w.reshape(FC, 8, H2), (2, 1, 0)).reshape(H2, 8 * FC)
    w_mag = jnp.transpose(mag_w.reshape(FC, 3, H2), (2, 1, 0)).reshape(H2, 3 * FC)
    b_phase = phase_b.reshape(FC, 8).T.reshape(8 * FC)
    b_mag = mag_b.reshape(FC, 3).T.reshape(3 * FC)
    w_all = jnp.concatenate([w_embed, w_phase, w_mag], axis=1)          # (H2, FD + 11*FC)
    b_all = jnp.concatenate([embed_b, b_phase, b_mag])[None, :]         # (1,  FD + 11*FC)

    # Per-frequency-bin reduction for the embedding L2 norm: (FD, F) ones matrix
    # + its transpose for the broadcast-back.
    fidx = jnp.arange(FD) // D
    g = (fidx[:, None] == jnp.arange(F)[None, :]).astype(jnp.float32)   # (FD, F)
    gt = g.T                                                            # (F, FD)

    # Phase codebook angles theta_k = 2*pi*k/8, k = -3..4 (PyTorch row order),
    # each replicated across its F*C lane group (k-major layout).
    cos_tab = jnp.array([math.cos(2 * math.pi * k / 8) for k in range(-3, 5)], jnp.float32)
    sin_tab = jnp.array([math.sin(2 * math.pi * k / 8) for k in range(-3, 5)], jnp.float32)
    cs = jnp.stack([jnp.repeat(cos_tab, FC), jnp.repeat(sin_tab, FC)], axis=0)  # (2, 8*FC)

    params['heads'] = {'w_top': w_all[:N], 'w_bot': w_all[N:],          # split by direction half
                       'b_all': b_all, 'g': g, 'gt': gt, 'cs': cs}
    return params


def chimera_magphasebook_forward(x, params, F, N, num_layers, C, D):
    B, _F, T = x.shape
    # ---- base (ChimeraBase): stacked bidirectional LSTM, eval mode.
    x_tbi = jnp.transpose(x, (2, 0, 1))                                 # (T, B, F)
    hf_flat, hb_flat, h_n, c_n = bilstm_forward(x_tbi, params['lstm'])  # (T*B, N) each, t-major rows

    # ---- heads (single fused Pallas kernel over T*B rows, one output slab).
    R = T * B
    row_tile = _pick_row_tile(R)
    slab = run_heads(hf_flat, hb_flat, params['heads'], F, C, D, row_tile)

    FD, FC = F * D, F * C
    embed_k = slab[:, :FD]
    mag_k = slab[:, FD:FD + FC]
    pp_k = slab[:, FD + FC:FD + 9 * FC]
    com_k = slab[:, FD + 9 * FC:FD + 11 * FC]

    # lane-dense kernel outputs -> PyTorch layouts (wrapper-side plumbing).
    out_embed = embed_k.reshape(T, B, F, D).transpose(1, 0, 2, 3).reshape(B, T * F, D)
    out_mag = mag_k.reshape(T, B, F, C).transpose(1, 3, 2, 0)                 # (B,C,F,T)
    out_phasep = pp_k.reshape(T, B, 8, F, C).transpose(1, 4, 3, 0, 2)         # (B,C,F,T,8)
    out_com = com_k.reshape(T, B, 2, F, C).transpose(1, 4, 3, 0, 2)           # (B,C,F,T,2)
    return out_embed, (out_mag, out_phasep, out_com), (h_n, c_n)


if __name__ == "__main__":
    B, F, T = 2, 16, 8          # batch, freq_bins, time frames
    N, num_layers = 32, 2       # LSTM hidden size, layers
    C, D = 2, 8                 # mask channels, embedding dim

    key = jax.random.PRNGKey(0)
    kx, kp = jax.random.split(key)
    x = jax.random.normal(kx, (B, F, T), jnp.float32)
    params = init_params(kp, F, N, num_layers, C, D)

    fwd = jax.jit(functools.partial(
        chimera_magphasebook_forward, F=F, N=N, num_layers=num_layers, C=C, D=D))
    out_embed, (out_mag, out_phasep, out_com), (h_n, c_n) = fwd(x, params)
    jax.block_until_ready((out_embed, out_mag, out_phasep, out_com, h_n, c_n))

    assert out_embed.shape == (B, T * F, D)
    assert out_mag.shape == (B, C, F, T)
    assert out_phasep.shape == (B, C, F, T, 8)
    assert out_com.shape == (B, C, F, T, 2)
    assert h_n.shape == (2 * num_layers, B, N)
    assert c_n.shape == (2 * num_layers, B, N)
    # light numerical sanity checks
    assert bool(jnp.isfinite(out_embed).all()) and bool(jnp.isfinite(out_com).all())
    assert bool(jnp.allclose(out_phasep.sum(-1), 1.0, atol=1e-3))
    assert bool(jnp.allclose(jnp.linalg.norm(out_embed, axis=-1), 1.0, atol=1e-3))
    print("KERNEL_OK")
</pallas_src>

<mosaic_0001>
module attributes {stable_mosaic.version = 11 : i64} {
  func.func @_bilstm_kernel(%arg0: i32, %arg1: memref<8x2x128xf32, #tpu.memory_space<vmem>>, %arg2: memref<8x2x128xf32, #tpu.memory_space<vmem>>, %arg3: memref<64x256xf32, #tpu.memory_space<vmem>>, %arg4: memref<8x2x32xf32, #tpu.memory_space<vmem>>, %arg5: memref<8x2x32xf32, #tpu.memory_space<vmem>>, %arg6: memref<2x2x32xf32, #tpu.memory_space<vmem>>, %arg7: memref<2x2x32xf32, #tpu.memory_space<vmem>>, %arg8: memref<2x64xf32, #tpu.memory_space<vmem>>, %arg9: memref<2x64xf32, #tpu.memory_space<vmem>>) attributes {dimension_semantics = [#tpu.dimension_semantics<arbitrary>], iteration_bounds = array<i64: 1>, scalar_prefetch = 0 : i64, scratch_operands = 2 : i64, tpu.core_type = #tpu.core_type<tc>, window_params = [{transform_indices = @transform_0, window_bounds = array<i64: 8, 2, 128>}, {transform_indices = @transform_1, window_bounds = array<i64: 8, 2, 128>}, {pipeline_mode = #tpu.pipeline_mode<synchronous>, transform_indices = @transform_2, window_bounds = array<i64: 64, 256>}, {transform_indices = @transform_3, window_bounds = array<i64: 8, 2, 32>}, {transform_indices = @transform_4, window_bounds = array<i64: 8, 2, 32>}, {pipeline_mode = #tpu.pipeline_mode<synchronous>, transform_indices = @transform_5, window_bounds = array<i64: 2, 2, 32>}, {pipeline_mode = #tpu.pipeline_mode<synchronous>, transform_indices = @transform_6, window_bounds = array<i64: 2, 2, 32>}]} {
    %c0_i32 = arith.constant 0 : i32
    %0 = arith.cmpi eq, %arg0, %c0_i32 : i32
    %1 = arith.extui %0 : i1 to i32
    %c0_i32_0 = arith.constant 0 : i32
    %2 = arith.cmpi ne, %1, %c0_i32_0 : i32
    scf.if %2 {
      %cst_116 = arith.constant 0.000000e+00 : f32
      %451 = vector.broadcast %cst_116 : f32 to vector<2x64xf32>
      %c0_117 = arith.constant 0 : index
      %c0_118 = arith.constant 0 : index
      %452 = vector.load %arg8[%c0_117, %c0_118] : memref<2x64xf32, #tpu.memory_space<vmem>>, vector<2x64xf32>
      tpu.vector_store %arg8[%c0_117, %c0_118], %451 {strides = array<i32>} : memref<2x64xf32, #tpu.memory_space<vmem>>, vector<2x64xf32>,
      %cst_119 = arith.constant 0.000000e+00 : f32
      %453 = vector.broadcast %cst_119 : f32 to vector<2x64xf32>
      %c0_120 = arith.constant 0 : index
      %c0_121 = arith.constant 0 : index
      %454 = vector.load %arg9[%c0_120, %c0_121] : memref<2x64xf32, #tpu.memory_space<vmem>>, vector<2x64xf32>
      tpu.vector_store %arg9[%c0_120, %c0_121], %453 {strides = array<i32>} : memref<2x64xf32, #tpu.memory_space<vmem>>, vector<2x64xf32>,
    } else {
    }
    %c0 = arith.constant 0 : index
    %c0_1 = arith.constant 0 : index
    %3 = vector.load %arg3[%c0, %c0_1] : memref<64x256xf32, #tpu.memory_space<vmem>>, vector<64x256xf32>
    %c0_2 = arith.constant 0 : index
    %c0_3 = arith.constant 0 : index
    %4 = vector.load %arg8[%c0_2, %c0_3] : memref<2x64xf32, #tpu.memory_space<vmem>>, vector<2x64xf32>
    %c0_4 = arith.constant 0 : index
    %c0_5 = arith.constant 0 : index
    %5 = vector.load %arg9[%c0_4, %c0_5] : memref<2x64xf32, #tpu.memory_space<vmem>>, vector<2x64xf32>
    %c0_i32_6 = arith.constant 0 : i32
    %c7_i32 = arith.constant 7 : i32
    %6 = arith.subi %c7_i32, %c0_i32_6 : i32
    %7 = arith.index_cast %c0_i32_6 : i32 to index
    %c0_7 = arith.constant 0 : index
    %c0_8 = arith.constant 0 : index
    %8 = vector.load %arg1[%7, %c0_7, %c0_8] : memref<8x2x128xf32, #tpu.memory_space<vmem>>, vector<1x2x128xf32>
    %9 = vector.shape_cast %8 : vector<1x2x128xf32> to vector<2x128xf32>
    %10 = arith.index_cast %6 : i32 to index
    %c0_9 = arith.constant 0 : index
    %c0_10 = arith.constant 0 : index
    %11 = vector.load %arg2[%10, %c0_9, %c0_10] : memref<8x2x128xf32, #tpu.memory_space<vmem>>, vector<1x2x128xf32>
    %12 = vector.shape_cast %11 : vector<1x2x128xf32> to vector<2x128xf32>
    %cst = arith.constant dense<0.000000e+00> : vector<2x256xf32>
    %13 = tpu.matmul %4, %3, %cst {dimension_numbers = #tpu.dot_dimension_numbers<[1], [0], [0], [1], [0, 0, 1, 1], [], []>} : vector<2x64xf32>, vector<64x256xf32>, vector<2x256xf32> -> vector<2x256xf32>
    %14 = vector.extract_strided_slice %13 {offsets = [0, 0], sizes = [2, 128], strides = [1, 1]} : vector<2x256xf32> to vector<2x128xf32>
    %15 = arith.addf %9, %14 : vector<2x128xf32>
    %16 = vector.extract_strided_slice %13 {offsets = [0, 128], sizes = [2, 128], strides = [1, 1]} : vector<2x256xf32> to vector<2x128xf32>
    %17 = arith.addf %12, %16 : vector<2x128xf32>
    %18 = vector.extract_strided_slice %15 {offsets = [0, 0], sizes = [2, 32], strides = [1, 1]} : vector<2x128xf32> to vector<2x32xf32>
    %19 = vector.extract_strided_slice %17 {offsets = [0, 0], sizes = [2, 32], strides = [1, 1]} : vector<2x128xf32> to vector<2x32xf32>
    %20 = tpu.concatenate %18, %19 in 1 : vector<2x32xf32>, vector<2x32xf32> -> vector<2x64xf32>
    %21 = arith.negf %20 : vector<2x64xf32>
    %22 = math.exp %21 : vector<2x64xf32>
    %cst_11 = arith.constant 1.000000e+00 : f32
    %23 = vector.broadcast %cst_11 : f32 to vector<2x64xf32>
    %24 = arith.addf %23, %22 : vector<2x64xf32>
    %25 = arith.divf %23, %24 : vector<2x64xf32>
    %26 = vector.extract_strided_slice %15 {offsets = [0, 32], sizes = [2, 32], strides = [1, 1]} : vector<2x128xf32> to vector<2x32xf32>
    %27 = vector.extract_strided_slice %17 {offsets = [0, 32], sizes = [2, 32], strides = [1, 1]} : vector<2x128xf32> to vector<2x32xf32>
    %28 = tpu.concatenate %26, %27 in 1 : vector<2x32xf32>, vector<2x32xf32> -> vector<2x64xf32>
    %29 = arith.negf %28 : vector<2x64xf32>
    %30 = math.exp %29 : vector<2x64xf32>
    %cst_12 = arith.constant 1.000000e+00 : f32
    %31 = vector.broadcast %cst_12 : f32 to vector<2x64xf32>
    %32 = arith.addf %31, %30 : vector<2x64xf32>
    %33 = arith.divf %31, %32 : vector<2x64xf32>
    %34 = vector.extract_strided_slice %15 {offsets = [0, 64], sizes = [2, 32], strides = [1, 1]} : vector<2x128xf32> to vector<2x32xf32>
    %35 = vector.extract_strided_slice %17 {offsets = [0, 64], sizes = [2, 32], strides = [1, 1]} : vector<2x128xf32> to vector<2x32xf32>
    %36 = tpu.concatenate %34, %35 in 1 : vector<2x32xf32>, vector<2x32xf32> -> vector<2x64xf32>
    %37 = math.tanh %36 : vector<2x64xf32>
    %38 = vector.extract_strided_slice %15 {offsets = [0, 96], sizes = [2, 32], strides = [1, 1]} : vector<2x128xf32> to vector<2x32xf32>
    %39 = vector.extract_strided_slice %17 {offsets = [0, 96], sizes = [2, 32], strides = [1, 1]} : vector<2x128xf32> to vector<2x32xf32>
    %40 = tpu.concatenate %38, %39 in 1 : vector<2x32xf32>, vector<2x32xf32> -> vector<2x64xf32>
    %41 = arith.negf %40 : vector<2x64xf32>
    %42 = math.exp %41 : vector<2x64xf32>
    %cst_13 = arith.constant 1.000000e+00 : f32
    %43 = vector.broadcast %cst_13 : f32 to vector<2x64xf32>
    %44 = arith.addf %43, %42 : vector<2x64xf32>
    %45 = arith.divf %43, %44 : vector<2x64xf32>
    %46 = arith.mulf %33, %5 : vector<2x64xf32>
    %47 = arith.mulf %25, %37 : vector<2x64xf32>
    %48 = arith.addf %46, %47 : vector<2x64xf32>
    %49 = math.tanh %48 : vector<2x64xf32>
    %50 = arith.mulf %45, %49 : vector<2x64xf32>
    %51 = vector.extract_strided_slice %50 {offsets = [0, 0], sizes = [2, 32], strides = [1, 1]} : vector<2x64xf32> to vector<2x32xf32>
    %52 = arith.index_cast %c0_i32_6 : i32 to index
    %c0_14 = arith.constant 0 : index
    %c0_15 = arith.constant 0 : index
    %53 = vector.load %arg4[%52, %c0_14, %c0_15] : memref<8x2x32xf32, #tpu.memory_space<vmem>>, vector<1x2x32xf32>
    %54 = vector.shape_cast %53 : vector<1x2x32xf32> to vector<2x32xf32>
    %55 = vector.shape_cast %51 : vector<2x32xf32> to vector<1x2x32xf32>
    tpu.vector_store %arg4[%52, %c0_14, %c0_15], %55 {strides = array<i32>} : memref<8x2x32xf32, #tpu.memory_space<vmem>>, vector<1x2x32xf32>,
    %56 = vector.extract_strided_slice %50 {offsets = [0, 32], sizes = [2, 32], strides = [1, 1]} : vector<2x64xf32> to vector<2x32xf32>
    %57 = arith.index_cast %6 : i32 to index
    %c0_16 = arith.constant 0 : index
    %c0_17 = arith.constant 0 : index
    %58 = vector.load %arg5[%57, %c0_16, %c0_17] : memref<8x2x32xf32, #tpu.memory_space<vmem>>, vector<1x2x32xf32>
    %59 = vector.shape_cast %58 : vector<1x2x32xf32> to vector<2x32xf32>
    %60 = vector.shape_cast %56 : vector<2x32xf32> to vector<1x2x32xf32>
    tpu.vector_store %arg5[%57, %c0_16, %c0_17], %60 {strides = array<i32>} : memref<8x2x32xf32, #tpu.memory_space<vmem>>, vector<1x2x32xf32>,
    %c1_i32 = arith.constant 1 : i32
    %c7_i32_18 = arith.constant 7 : i32
    %61 = arith.subi %c7_i32_18, %c1_i32 : i32
    %62 = arith.index_cast %c1_i32 : i32 to index
    %c0_19 = arith.constant 0 : index
    %c0_20 = arith.constant 0 : index
    %63 = vector.load %arg1[%62, %c0_19, %c0_20] : memref<8x2x128xf32, #tpu.memory_space<vmem>>, vector<1x2x128xf32>
    %64 = vector.shape_cast %63 : vector<1x2x128xf32> to vector<2x128xf32>
    %65 = arith.index_cast %61 : i32 to index
    %c0_21 = arith.constant 0 : index
    %c0_22 = arith.constant 0 : index
    %66 = vector.load %arg2[%65, %c0_21, %c0_22] : memref<8x2x128xf32, #tpu.memory_space<vmem>>, vector<1x2x128xf32>
    %67 = vector.shape_cast %66 : vector<1x2x128xf32> to vector<2x128xf32>
    %cst_23 = arith.constant dense<0.000000e+00> : vector<2x256xf32>
    %68 = tpu.matmul %50, %3, %cst_23 {dimension_numbers = #tpu.dot_dimension_numbers<[1], [0], [0], [1], [0, 0, 1, 1], [], []>} : vector<2x64xf32>, vector<64x256xf32>, vector<2x256xf32> -> vector<2x256xf32>
    %69 = vector.extract_strided_slice %68 {offsets = [0, 0], sizes = [2, 128], strides = [1, 1]} : vector<2x256xf32> to vector<2x128xf32>
    %70 = arith.addf %64, %69 : vector<2x128xf32>
    %71 = vector.extract_strided_slice %68 {offsets = [0, 128], sizes = [2, 128], strides = [1, 1]} : vector<2x256xf32> to vector<2x128xf32>
    %72 = arith.addf %67, %71 : vector<2x128xf32>
    %73 = vector.extract_strided_slice %70 {offsets = [0, 0], sizes = [2, 32], strides = [1, 1]} : vector<2x128xf32> to vector<2x32xf32>
    %74 = vector.extract_strided_slice %72 {offsets = [0, 0], sizes = [2, 32], strides = [1, 1]} : vector<2x128xf32> to vector<2x32xf32>
    %75 = tpu.concatenate %73, %74 in 1 : vector<2x32xf32>, vector<2x32xf32> -> vector<2x64xf32>
    %76 = arith.negf %75 : vector<2x64xf32>
    %77 = math.exp %76 : vector<2x64xf32>
    %cst_24 = arith.constant 1.000000e+00 : f32
    %78 = vector.broadcast %cst_24 : f32 to vector<2x64xf32>
    %79 = arith.addf %78, %77 : vector<2x64xf32>
    %80 = arith.divf %78, %79 : vector<2x64xf32>
    %81 = vector.extract_strided_slice %70 {offsets = [0, 32], sizes = [2, 32], strides = [1, 1]} : vector<2x128xf32> to vector<2x32xf32>
    %82 = vector.extract_strided_slice %72 {offsets = [0, 32], sizes = [2, 32], strides = [1, 1]} : vector<2x128xf32> to vector<2x32xf32>
    %83 = tpu.concatenate %81, %82 in 1 : vector<2x32xf32>, vector<2x32xf32> -> vector<2x64xf32>
    %84 = arith.negf %83 : vector<2x64xf32>
    %85 = math.exp %84 : vector<2x64xf32>
    %cst_25 = arith.constant 1.000000e+00 : f32
    %86 = vector.broadcast %cst_25 : f32 to vector<2x64xf32>
    %87 = arith.addf %86, %85 : vector<2x64xf32>
    %88 = arith.divf %86, %87 : vector<2x64xf32>
    %89 = vector.extract_strided_slice %70 {offsets = [0, 64], sizes = [2, 32], strides = [1, 1]} : vector<2x128xf32> to vector<2x32xf32>
    %90 = vector.extract_strided_slice %72 {offsets = [0, 64], sizes = [2, 32], strides = [1, 1]} : vector<2x128xf32> to vector<2x32xf32>
    %91 = tpu.concatenate %89, %90 in 1 : vector<2x32xf32>, vector<2x32xf32> -> vector<2x64xf32>
    %92 = math.tanh %91 : vector<2x64xf32>
    %93 = vector.extract_strided_slice %70 {offsets = [0, 96], sizes = [2, 32], strides = [1, 1]} : vector<2x128xf32> to vector<2x32xf32>
    %94 = vector.extract_strided_slice %72 {offsets = [0, 96], sizes = [2, 32], strides = [1, 1]} : vector<2x128xf32> to vector<2x32xf32>
    %95 = tpu.concatenate %93, %94 in 1 : vector<2x32xf32>, vector<2x32xf32> -> vector<2x64xf32>
    %96 = arith.negf %95 : vector<2x64xf32>
    %97 = math.exp %96 : vector<2x64xf32>
    %cst_26 = arith.constant 1.000000e+00 : f32
    %98 = vector.broadcast %cst_26 : f32 to vector<2x64xf32>
    %99 = arith.addf %98, %97 : vector<2x64xf32>
    %100 = arith.divf %98, %99 : vector<2x64xf32>
    %101 = arith.mulf %88, %48 : vector<2x64xf32>
    %102 = arith.mulf %80, %92 : vector<2x64xf32>
    %103 = arith.addf %101, %102 : vector<2x64xf32>
    %104 = math.tanh %103 : vector<2x64xf32>
    %105 = arith.mulf %100, %104 : vector<2x64xf32>
    %106 = vector.extract_strided_slice %105 {offsets = [0, 0], sizes = [2, 32], strides = [1, 1]} : vector<2x64xf32> to vector<2x32xf32>
    %107 = arith.index_cast %c1_i32 : i32 to index
    %c0_27 = arith.constant 0 : index
    %c0_28 = arith.constant 0 : index
    %108 = vector.load %arg4[%107, %c0_27, %c0_28] : memref<8x2x32xf32, #tpu.memory_space<vmem>>, vector<1x2x32xf32>
    %109 = vector.shape_cast %108 : vector<1x2x32xf32> to vector<2x32xf32>
    %110 = vector.shape_cast %106 : vector<2x32xf32> to vector<1x2x32xf32>
    tpu.vector_store %arg4[%107, %c0_27, %c0_28], %110 {strides = array<i32>} : memref<8x2x32xf32, #tpu.memory_space<vmem>>, vector<1x2x32xf32>,
    %111 = vector.extract_strided_slice %105 {offsets = [0, 32], sizes = [2, 32], strides = [1, 1]} : vector<2x64xf32> to vector<2x32xf32>
    %112 = arith.index_cast %61 : i32 to index
    %c0_29 = arith.constant 0 : index
    %c0_30 = arith.constant 0 : index
    %113 = vector.load %arg5[%112, %c0_29, %c0_30] : memref<8x2x32xf32, #tpu.memory_space<vmem>>, vector<1x2x32xf32>
    %114 = vector.shape_cast %113 : vector<1x2x32xf32> to vector<2x32xf32>
    %115 = vector.shape_cast %111 : vector<2x32xf32> to vector<1x2x32xf32>
    tpu.vector_store %arg5[%112, %c0_29, %c0_30], %115 {strides = array<i32>} : memref<8x2x32xf32, #tpu.memory_space<vmem>>, vector<1x2x32xf32>,
    %c2_i32 = arith.constant 2 : i32
    %c7_i32_31 = arith.constant 7 : i32
    %116 = arith.subi %c7_i32_31, %c2_i32 : i32
    %117 = arith.index_cast %c2_i32 : i32 to index
    %c0_32 = arith.constant 0 : index
    %c0_33 = arith.constant 0 : index
    %118 = vector.load %arg1[%117, %c0_32, %c0_33] : memref<8x2x128xf32, #tpu.memory_space<vmem>>, vector<1x2x128xf32>
    %119 = vector.shape_cast %118 : vector<1x2x128xf32> to vector<2x128xf32>
    %120 = arith.index_cast %116 : i32 to index
    %c0_34 = arith.constant 0 : index
    %c0_35 = arith.constant 0 : index
    %121 = vector.load %arg2[%120, %c0_34, %c0_35] : memref<8x2x128xf32, #tpu.memory_space<vmem>>, vector<1x2x128xf32>
    %122 = vector.shape_cast %121 : vector<1x2x128xf32> to vector<2x128xf32>
    %cst_36 = arith.constant dense<0.000000e+00> : vector<2x256xf32>
    %123 = tpu.matmul %105, %3, %cst_36 {dimension_numbers = #tpu.dot_dimension_numbers<[1], [0], [0], [1], [0, 0, 1, 1], [], []>} : vector<2x64xf32>, vector<64x256xf32>, vector<2x256xf32> -> vector<2x256xf32>
    %124 = vector.extract_strided_slice %123 {offsets = [0, 0], sizes = [2, 128], strides = [1, 1]} : vector<2x256xf32> to vector<2x128xf32>
    %125 = arith.addf %119, %124 : vector<2x128xf32>
    %126 = vector.extract_strided_slice %123 {offsets = [0, 128], sizes = [2, 128], strides = [1, 1]} : vector<2x256xf32> to vector<2x128xf32>
    %127 = arith.addf %122, %126 : vector<2x128xf32>
    %128 = vector.extract_strided_slice %125 {offsets = [0, 0], sizes = [2, 32], strides = [1, 1]} : vector<2x128xf32> to vector<2x32xf32>
    %129 = vector.extract_strided_slice %127 {offsets = [0, 0], sizes = [2, 32], strides = [1, 1]} : vector<2x128xf32> to vector<2x32xf32>
    %130 = tpu.concatenate %128, %129 in 1 : vector<2x32xf32>, vector<2x32xf32> -> vector<2x64xf32>
    %131 = arith.negf %130 : vector<2x64xf32>
    %132 = math.exp %131 : vector<2x64xf32>
    %cst_37 = arith.constant 1.000000e+00 : f32
    %133 = vector.broadcast %cst_37 : f32 to vector<2x64xf32>
    %134 = arith.addf %133, %132 : vector<2x64xf32>
    %135 = arith.divf %133, %134 : vector<2x64xf32>
    %136 = vector.extract_strided_slice %125 {offsets = [0, 32], sizes = [2, 32], strides = [1, 1]} : vector<2x128xf32> to vector<2x32xf32>
    %137 = vector.extract_strided_slice %127 {offsets = [0, 32], sizes = [2, 32], strides = [1, 1]} : vector<2x128xf32> to vector<2x32xf32>
    %138 = tpu.concatenate %136, %137 in 1 : vector<2x32xf32>, vector<2x32xf32> -> vector<2x64xf32>
    %139 = arith.negf %138 : vector<2x64xf32>
    %140 = math.exp %139 : vector<2x64xf32>
    %cst_38 = arith.constant 1.000000e+00 : f32
    %141 = vector.broadcast %cst_38 : f32 to vector<2x64xf32>
    %142 = arith.addf %141, %140 : vector<2x64xf32>
    %143 = arith.divf %141, %142 : vector<2x64xf32>
    %144 = vector.extract_strided_slice %125 {offsets = [0, 64], sizes = [2, 32], strides = [1, 1]} : vector<2x128xf32> to vector<2x32xf32>
    %145 = vector.extract_strided_slice %127 {offsets = [0, 64], sizes = [2, 32], strides = [1, 1]} : vector<2x128xf32> to vector<2x32xf32>
    %146 = tpu.concatenate %144, %145 in 1 : vector<2x32xf32>, vector<2x32xf32> -> vector<2x64xf32>
    %147 = math.tanh %146 : vector<2x64xf32>
    %148 = vector.extract_strided_slice %125 {offsets = [0, 96], sizes = [2, 32], strides = [1, 1]} : vector<2x128xf32> to vector<2x32xf32>
    %149 = vector.extract_strided_slice %127 {offsets = [0, 96], sizes = [2, 32], strides = [1, 1]} : vector<2x128xf32> to vector<2x32xf32>
    %150 = tpu.concatenate %148, %149 in 1 : vector<2x32xf32>, vector<2x32xf32> -> vector<2x64xf32>
    %151 = arith.negf %150 : vector<2x64xf32>
    %152 = math.exp %151 : vector<2x64xf32>
    %cst_39 = arith.constant 1.000000e+00 : f32
    %153 = vector.broadcast %cst_39 : f32 to vector<2x64xf32>
    %154 = arith.addf %153, %152 : vector<2x64xf32>
    %155 = arith.divf %153, %154 : vector<2x64xf32>
    %156 = arith.mulf %143, %103 : vector<2x64xf32>
    %157 = arith.mulf %135, %147 : vector<2x64xf32>
    %158 = arith.addf %156, %157 : vector<2x64xf32>
    %159 = math.tanh %158 : vector<2x64xf32>
    %160 = arith.mulf %155, %159 : vector<2x64xf32>
    %161 = vector.extract_strided_slice %160 {offsets = [0, 0], sizes = [2, 32], strides = [1, 1]} : vector<2x64xf32> to vector<2x32xf32>
    %162 = arith.index_cast %c2_i32 : i32 to index
    %c0_40 = arith.constant 0 : index
    %c0_41 = arith.constant 0 : index
    %163 = vector.load %arg4[%162, %c0_40, %c0_41] : memref<8x2x32xf32, #tpu.memory_space<vmem>>, vector<1x2x32xf32>
    %164 = vector.shape_cast %163 : vector<1x2x32xf32> to vector<2x32xf32>
    %165 = vector.shape_cast %161 : vector<2x32xf32> to vector<1x2x32xf32>
    tpu.vector_store %arg4[%162, %c0_40, %c0_41], %165 {strides = array<i32>} : memref<8x2x32xf32, #tpu.memory_space<vmem>>, vector<1x2x32xf32>,
    %166 = vector.extract_strided_slice %160 {offsets = [0, 32], sizes = [2, 32], strides = [1, 1]} : vector<2x64xf32> to vector<2x32xf32>
    %167 = arith.index_cast %116 : i32 to index
    %c0_42 = arith.constant 0 : index
    %c0_43 = arith.constant 0 : index
    %168 = vector.load %arg5[%167, %c0_42, %c0_43] : memref<8x2x32xf32, #tpu.memory_space<vmem>>, vector<1x2x32xf32>
    %169 = vector.shape_cast %168 : vector<1x2x32xf32> to vector<2x32xf32>
    %170 = vector.shape_cast %166 : vector<2x32xf32> to vector<1x2x32xf32>
    tpu.vector_store %arg5[%167, %c0_42, %c0_43], %170 {strides = array<i32>} : memref<8x2x32xf32, #tpu.memory_space<vmem>>, vector<1x2x32xf32>,
    %c3_i32 = arith.constant 3 : i32
    %c7_i32_44 = arith.constant 7 : i32
    %171 = arith.subi %c7_i32_44, %c3_i32 : i32
    %172 = arith.index_cast %c3_i32 : i32 to index
    %c0_45 = arith.constant 0 : index
    %c0_46 = arith.constant 0 : index
    %173 = vector.load %arg1[%172, %c0_45, %c0_46] : memref<8x2x128xf32, #tpu.memory_space<vmem>>, vector<1x2x128xf32>
    %174 = vector.shape_cast %173 : vector<1x2x128xf32> to vector<2x128xf32>
    %175 = arith.index_cast %171 : i32 to index
    %c0_47 = arith.constant 0 : index
    %c0_48 = arith.constant 0 : index
    %176 = vector.load %arg2[%175, %c0_47, %c0_48] : memref<8x2x128xf32, #tpu.memory_space<vmem>>, vector<1x2x128xf32>
    %177 = vector.shape_cast %176 : vector<1x2x128xf32> to vector<2x128xf32>
    %cst_49 = arith.constant dense<0.000000e+00> : vector<2x256xf32>
    %178 = tpu.matmul %160, %3, %cst_49 {dimension_numbers = #tpu.dot_dimension_numbers<[1], [0], [0], [1], [0, 0, 1, 1], [], []>} : vector<2x64xf32>, vector<64x256xf32>, vector<2x256xf32> -> vector<2x256xf32>
    %179 = vector.extract_strided_slice %178 {offsets = [0, 0], sizes = [2, 128], strides = [1, 1]} : vector<2x256xf32> to vector<2x128xf32>
    %180 = arith.addf %174, %179 : vector<2x128xf32>
    %181 = vector.extract_strided_slice %178 {offsets = [0, 128], sizes = [2, 128], strides = [1, 1]} : vector<2x256xf32> to vector<2x128xf32>
    %182 = arith.addf %177, %181 : vector<2x128xf32>
    %183 = vector.extract_strided_slice %180 {offsets = [0, 0], sizes = [2, 32], strides = [1, 1]} : vector<2x128xf32> to vector<2x32xf32>
    %184 = vector.extract_strided_slice %182 {offsets = [0, 0], sizes = [2, 32], strides = [1, 1]} : vector<2x128xf32> to vector<2x32xf32>
    %185 = tpu.concatenate %183, %184 in 1 : vector<2x32xf32>, vector<2x32xf32> -> vector<2x64xf32>
    %186 = arith.negf %185 : vector<2x64xf32>
    %187 = math.exp %186 : vector<2x64xf32>
    %cst_50 = arith.constant 1.000000e+00 : f32
    %188 = vector.broadcast %cst_50 : f32 to vector<2x64xf32>
    %189 = arith.addf %188, %187 : vector<2x64xf32>
    %190 = arith.divf %188, %189 : vector<2x64xf32>
    %191 = vector.extract_strided_slice %180 {offsets = [0, 32], sizes = [2, 32], strides = [1, 1]} : vector<2x128xf32> to vector<2x32xf32>
    %192 = vector.extract_strided_slice %182 {offsets = [0, 32], sizes = [2, 32], strides = [1, 1]} : vector<2x128xf32> to vector<2x32xf32>
    %193 = tpu.concatenate %191, %192 in 1 : vector<2x32xf32>, vector<2x32xf32> -> vector<2x64xf32>
    %194 = arith.negf %193 : vector<2x64xf32>
    %195 = math.exp %194 : vector<2x64xf32>
    %cst_51 = arith.constant 1.000000e+00 : f32
    %196 = vector.broadcast %cst_51 : f32 to vector<2x64xf32>
    %197 = arith.addf %196, %195 : vector<2x64xf32>
    %198 = arith.divf %196, %197 : vector<2x64xf32>
    %199 = vector.extract_strided_slice %180 {offsets = [0, 64], sizes = [2, 32], strides = [1, 1]} : vector<2x128xf32> to vector<2x32xf32>
    %200 = vector.extract_strided_slice %182 {offsets = [0, 64], sizes = [2, 32], strides = [1, 1]} : vector<2x128xf32> to vector<2x32xf32>
    %201 = tpu.concatenate %199, %200 in 1 : vector<2x32xf32>, vector<2x32xf32> -> vector<2x64xf32>
    %202 = math.tanh %201 : vector<2x64xf32>
    %203 = vector.extract_strided_slice %180 {offsets = [0, 96], sizes = [2, 32], strides = [1, 1]} : vector<2x128xf32> to vector<2x32xf32>
    %204 = vector.extract_strided_slice %182 {offsets = [0, 96], sizes = [2, 32], strides = [1, 1]} : vector<2x128xf32> to vector<2x32xf32>
    %205 = tpu.concatenate %203, %204 in 1 : vector<2x32xf32>, vector<2x32xf32> -> vector<2x64xf32>
    %206 = arith.negf %205 : vector<2x64xf32>
    %207 = math.exp %206 : vector<2x64xf32>
    %cst_52 = arith.constant 1.000000e+00 : f32
    %208 = vector.broadcast %cst_52 : f32 to vector<2x64xf32>
    %209 = arith.addf %208, %207 : vector<2x64xf32>
    %210 = arith.divf %208, %209 : vector<2x64xf32>
    %211 = arith.mulf %198, %158 : vector<2x64xf32>
    %212 = arith.mulf %190, %202 : vector<2x64xf32>
    %213 = arith.addf %211, %212 : vector<2x64xf32>
    %214 = math.tanh %213 : vector<2x64xf32>
    %215 = arith.mulf %210, %214 : vector<2x64xf32>
    %216 = vector.extract_strided_slice %215 {offsets = [0, 0], sizes = [2, 32], strides = [1, 1]} : vector<2x64xf32> to vector<2x32xf32>
    %217 = arith.index_cast %c3_i32 : i32 to index
    %c0_53 = arith.constant 0 : index
    %c0_54 = arith.constant 0 : index
    %218 = vector.load %arg4[%217, %c0_53, %c0_54] : memref<8x2x32xf32, #tpu.memory_space<vmem>>, vector<1x2x32xf32>
    %219 = vector.shape_cast %218 : vector<1x2x32xf32> to vector<2x32xf32>
    %220 = vector.shape_cast %216 : vector<2x32xf32> to vector<1x2x32xf32>
    tpu.vector_store %arg4[%217, %c0_53, %c0_54], %220 {strides = array<i32>} : memref<8x2x32xf32, #tpu.memory_space<vmem>>, vector<1x2x32xf32>,
    %221 = vector.extract_strided_slice %215 {offsets = [0, 32], sizes = [2, 32], strides = [1, 1]} : vector<2x64xf32> to vector<2x32xf32>
    %222 = arith.index_cast %171 : i32 to index
    %c0_55 = arith.constant 0 : index
    %c0_56 = arith.constant 0 : index
    %223 = vector.load %arg5[%222, %c0_55, %c0_56] : memref<8x2x32xf32, #tpu.memory_space<vmem>>, vector<1x2x32xf32>
    %224 = vector.shape_cast %223 : vector<1x2x32xf32> to vector<2x32xf32>
    %225 = vector.shape_cast %221 : vector<2x32xf32> to vector<1x2x32xf32>
    tpu.vector_store %arg5[%222, %c0_55, %c0_56], %225 {strides = array<i32>} : memref<8x2x32xf32, #tpu.memory_space<vmem>>, vector<1x2x32xf32>,
    %c4_i32 = arith.constant 4 : i32
    %c7_i32_57 = arith.constant 7 : i32
    %226 = arith.subi %c7_i32_57, %c4_i32 : i32
    %227 = arith.index_cast %c4_i32 : i32 to index
    %c0_58 = arith.constant 0 : index
    %c0_59 = arith.constant 0 : index
    %228 = vector.load %arg1[%227, %c0_58, %c0_59] : memref<8x2x128xf32, #tpu.memory_space<vmem>>, vector<1x2x128xf32>
    %229 = vector.shape_cast %228 : vector<1x2x128xf32> to vector<2x128xf32>
    %230 = arith.index_cast %226 : i32 to index
    %c0_60 = arith.constant 0 : index
    %c0_61 = arith.constant 0 : index
    %231 = vector.load %arg2[%230, %c0_60, %c0_61] : memref<8x2x128xf32, #tpu.memory_space<vmem>>, vector<1x2x128xf32>
    %232 = vector.shape_cast %231 : vector<1x2x128xf32> to vector<2x128xf32>
    %cst_62 = arith.constant dense<0.000000e+00> : vector<2x256xf32>
    %233 = tpu.matmul %215, %3, %cst_62 {dimension_numbers = #tpu.dot_dimension_numbers<[1], [0], [0], [1], [0, 0, 1, 1], [], []>} : vector<2x64xf32>, vector<64x256xf32>, vector<2x256xf32> -> vector<2x256xf32>
    %234 = vector.extract_strided_slice %233 {offsets = [0, 0], sizes = [2, 128], strides = [1, 1]} : vector<2x256xf32> to vector<2x128xf32>
    %235 = arith.addf %229, %234 : vector<2x128xf32>
    %236 = vector.extract_strided_slice %233 {offsets = [0, 128], sizes = [2, 128], strides = [1, 1]} : vector<2x256xf32> to vector<2x128xf32>
    %237 = arith.addf %232, %236 : vector<2x128xf32>
    %238 = vector.extract_strided_slice %235 {offsets = [0, 0], sizes = [2, 32], strides = [1, 1]} : vector<2x128xf32> to vector<2x32xf32>
    %239 = vector.extract_strided_slice %237 {offsets = [0, 0], sizes = [2, 32], strides = [1, 1]} : vector<2x128xf32> to vector<2x32xf32>
    %240 = tpu.concatenate %238, %239 in 1 : vector<2x32xf32>, vector<2x32xf32> -> vector<2x64xf32>
    %241 = arith.negf %240 : vector<2x64xf32>
    %242 = math.exp %241 : vector<2x64xf32>
    %cst_63 = arith.constant 1.000000e+00 : f32
    %243 = vector.broadcast %cst_63 : f32 to vector<2x64xf32>
    %244 = arith.addf %243, %242 : vector<2x64xf32>
    %245 = arith.divf %243, %244 : vector<2x64xf32>
    %246 = vector.extract_strided_slice %235 {offsets = [0, 32], sizes = [2, 32], strides = [1, 1]} : vector<2x128xf32> to vector<2x32xf32>
    %247 = vector.extract_strided_slice %237 {offsets = [0, 32], sizes = [2, 32], strides = [1, 1]} : vector<2x128xf32> to vector<2x32xf32>
    %248 = tpu.concatenate %246, %247 in 1 : vector<2x32xf32>, vector<2x32xf32> -> vector<2x64xf32>
    %249 = arith.negf %248 : vector<2x64xf32>
    %250 = math.exp %249 : vector<2x64xf32>
    %cst_64 = arith.constant 1.000000e+00 : f32
    %251 = vector.broadcast %cst_64 : f32 to vector<2x64xf32>
    %252 = arith.addf %251, %250 : vector<2x64xf32>
    %253 = arith.divf %251, %252 : vector<2x64xf32>
    %254 = vector.extract_strided_slice %235 {offsets = [0, 64], sizes = [2, 32], strides = [1, 1]} : vector<2x128xf32> to vector<2x32xf32>
    %255 = vector.extract_strided_slice %237 {offsets = [0, 64], sizes = [2, 32], strides = [1, 1]} : vector<2x128xf32> to vector<2x32xf32>
    %256 = tpu.concatenate %254, %255 in 1 : vector<2x32xf32>, vector<2x32xf32> -> vector<2x64xf32>
    %257 = math.tanh %256 : vector<2x64xf32>
    %258 = vector.extract_strided_slice %235 {offsets = [0, 96], sizes = [2, 32], strides = [1, 1]} : vector<2x128xf32> to vector<2x32xf32>
    %259 = vector.extract_strided_slice %237 {offsets = [0, 96], sizes = [2, 32], strides = [1, 1]} : vector<2x128xf32> to vector<2x32xf32>
    %260 = tpu.concatenate %258, %259 in 1 : vector<2x32xf32>, vector<2x32xf32> -> vector<2x64xf32>
    %261 = arith.negf %260 : vector<2x64xf32>
    %262 = math.exp %261 : vector<2x64xf32>
    %cst_65 = arith.constant 1.000000e+00 : f32
    %263 = vector.broadcast %cst_65 : f32 to vector<2x64xf32>
    %264 = arith.addf %263, %262 : vector<2x64xf32>
    %265 = arith.divf %263, %264 : vector<2x64xf32>
    %266 = arith.mulf %253, %213 : vector<2x64xf32>
    %267 = arith.mulf %245, %257 : vector<2x64xf32>
    %268 = arith.addf %266, %267 : vector<2x64xf32>
    %269 = math.tanh %268 : vector<2x64xf32>
    %270 = arith.mulf %265, %269 : vector<2x64xf32>
    %271 = vector.extract_strided_slice %270 {offsets = [0, 0], sizes = [2, 32], strides = [1, 1]} : vector<2x64xf32> to vector<2x32xf32>
    %272 = arith.index_cast %c4_i32 : i32 to index
    %c0_66 = arith.constant 0 : index
    %c0_67 = arith.constant 0 : index
    %273 = vector.load %arg4[%272, %c0_66, %c0_67] : memref<8x2x32xf32, #tpu.memory_space<vmem>>, vector<1x2x32xf32>
    %274 = vector.shape_cast %273 : vector<1x2x32xf32> to vector<2x32xf32>
    %275 = vector.shape_cast %271 : vector<2x32xf32> to vector<1x2x32xf32>
    tpu.vector_store %arg4[%272, %c0_66, %c0_67], %275 {strides = array<i32>} : memref<8x2x32xf32, #tpu.memory_space<vmem>>, vector<1x2x32xf32>,
    %276 = vector.extract_strided_slice %270 {offsets = [0, 32], sizes = [2, 32], strides = [1, 1]} : vector<2x64xf32> to vector<2x32xf32>
    %277 = arith.index_cast %226 : i32 to index
    %c0_68 = arith.constant 0 : index
    %c0_69 = arith.constant 0 : index
    %278 = vector.load %arg5[%277, %c0_68, %c0_69] : memref<8x2x32xf32, #tpu.memory_space<vmem>>, vector<1x2x32xf32>
    %279 = vector.shape_cast %278 : vector<1x2x32xf32> to vector<2x32xf32>
    %280 = vector.shape_cast %276 : vector<2x32xf32> to vector<1x2x32xf32>
    tpu.vector_store %arg5[%277, %c0_68, %c0_69], %280 {strides = array<i32>} : memref<8x2x32xf32, #tpu.memory_space<vmem>>, vector<1x2x32xf32>,
    %c5_i32 = arith.constant 5 : i32
    %c7_i32_70 = arith.constant 7 : i32
    %281 = arith.subi %c7_i32_70, %c5_i32 : i32
    %282 = arith.index_cast %c5_i32 : i32 to index
    %c0_71 = arith.constant 0 : index
    %c0_72 = arith.constant 0 : index
    %283 = vector.load %arg1[%282, %c0_71, %c0_72] : memref<8x2x128xf32, #tpu.memory_space<vmem>>, vector<1x2x128xf32>
    %284 = vector.shape_cast %283 : vector<1x2x128xf32> to vector<2x128xf32>
    %285 = arith.index_cast %281 : i32 to index
    %c0_73 = arith.constant 0 : index
    %c0_74 = arith.constant 0 : index
    %286 = vector.load %arg2[%285, %c0_73, %c0_74] : memref<8x2x128xf32, #tpu.memory_space<vmem>>, vector<1x2x128xf32>
    %287 = vector.shape_cast %286 : vector<1x2x128xf32> to vector<2x128xf32>
    %cst_75 = arith.constant dense<0.000000e+00> : vector<2x256xf32>
    %288 = tpu.matmul %270, %3, %cst_75 {dimension_numbers = #tpu.dot_dimension_numbers<[1], [0], [0], [1], [0, 0, 1, 1], [], []>} : vector<2x64xf32>, vector<64x256xf32>, vector<2x256xf32> -> vector<2x256xf32>
    %289 = vector.extract_strided_slice %288 {offsets = [0, 0], sizes = [2, 128], strides = [1, 1]} : vector<2x256xf32> to vector<2x128xf32>
    %290 = arith.addf %284, %289 : vector<2x128xf32>
    %291 = vector.extract_strided_slice %288 {offsets = [0, 128], sizes = [2, 128], strides = [1, 1]} : vector<2x256xf32> to vector<2x128xf32>
    %292 = arith.addf %287, %291 : vector<2x128xf32>
    %293 = vector.extract_strided_slice %290 {offsets = [0, 0], sizes = [2, 32], strides = [1, 1]} : vector<2x128xf32> to vector<2x32xf32>
    %294 = vector.extract_strided_slice %292 {offsets = [0, 0], sizes = [2, 32], strides = [1, 1]} : vector<2x128xf32> to vector<2x32xf32>
    %295 = tpu.concatenate %293, %294 in 1 : vector<2x32xf32>, vector<2x32xf32> -> vector<2x64xf32>
    %296 = arith.negf %295 : vector<2x64xf32>
    %297 = math.exp %296 : vector<2x64xf32>
    %cst_76 = arith.constant 1.000000e+00 : f32
    %298 = vector.broadcast %cst_76 : f32 to vector<2x64xf32>
    %299 = arith.addf %298, %297 : vector<2x64xf32>
    %300 = arith.divf %298, %299 : vector<2x64xf32>
    %301 = vector.extract_strided_slice %290 {offsets = [0, 32], sizes = [2, 32], strides = [1, 1]} : vector<2x128xf32> to vector<2x32xf32>
    %302 = vector.extract_strided_slice %292 {offsets = [0, 32], sizes = [2, 32], strides = [1, 1]} : vector<2x128xf32> to vector<2x32xf32>
    %303 = tpu.concatenate %301, %302 in 1 : vector<2x32xf32>, vector<2x32xf32> -> vector<2x64xf32>
    %304 = arith.negf %303 : vector<2x64xf32>
    %305 = math.exp %304 : vector<2x64xf32>
    %cst_77 = arith.constant 1.000000e+00 : f32
    %306 = vector.broadcast %cst_77 : f32 to vector<2x64xf32>
    %307 = arith.addf %306, %305 : vector<2x64xf32>
    %308 = arith.divf %306, %307 : vector<2x64xf32>
    %309 = vector.extract_strided_slice %290 {offsets = [0, 64], sizes = [2, 32], strides = [1, 1]} : vector<2x128xf32> to vector<2x32xf32>
    %310 = vector.extract_strided_slice %292 {offsets = [0, 64], sizes = [2, 32], strides = [1, 1]} : vector<2x128xf32> to vector<2x32xf32>
    %311 = tpu.concatenate %309, %310 in 1 : vector<2x32xf32>, vector<2x32xf32> -> vector<2x64xf32>
    %312 = math.tanh %311 : vector<2x64xf32>
    %313 = vector.extract_strided_slice %290 {offsets = [0, 96], sizes = [2, 32], strides = [1, 1]} : vector<2x128xf32> to vector<2x32xf32>
    %314 = vector.extract_strided_slice %292 {offsets = [0, 96], sizes = [2, 32], strides = [1, 1]} : vector<2x128xf32> to vector<2x32xf32>
    %315 = tpu.concatenate %313, %314 in 1 : vector<2x32xf32>, vector<2x32xf32> -> vector<2x64xf32>
    %316 = arith.negf %315 : vector<2x64xf32>
    %317 = math.exp %316 : vector<2x64xf32>
    %cst_78 = arith.constant 1.000000e+00 : f32
    %318 = vector.broadcast %cst_78 : f32 to vector<2x64xf32>
    %319 = arith.addf %318, %317 : vector<2x64xf32>
    %320 = arith.divf %318, %319 : vector<2x64xf32>
    %321 = arith.mulf %308, %268 : vector<2x64xf32>
    %322 = arith.mulf %300, %312 : vector<2x64xf32>
    %323 = arith.addf %321, %322 : vector<2x64xf32>
    %324 = math.tanh %323 : vector<2x64xf32>
    %325 = arith.mulf %320, %324 : vector<2x64xf32>
    %326 = vector.extract_strided_slice %325 {offsets = [0, 0], sizes = [2, 32], strides = [1, 1]} : vector<2x64xf32> to vector<2x32xf32>
    %327 = arith.index_cast %c5_i32 : i32 to index
    %c0_79 = arith.constant 0 : index
    %c0_80 = arith.constant 0 : index
    %328 = vector.load %arg4[%327, %c0_79, %c0_80] : memref<8x2x32xf32, #tpu.memory_space<vmem>>, vector<1x2x32xf32>
    %329 = vector.shape_cast %328 : vector<1x2x32xf32> to vector<2x32xf32>
    %330 = vector.shape_cast %326 : vector<2x32xf32> to vector<1x2x32xf32>
    tpu.vector_store %arg4[%327, %c0_79, %c0_80], %330 {strides = array<i32>} : memref<8x2x32xf32, #tpu.memory_space<vmem>>, vector<1x2x32xf32>,
    %331 = vector.extract_strided_slice %325 {offsets = [0, 32], sizes = [2, 32], strides = [1, 1]} : vector<2x64xf32> to vector<2x32xf32>
    %332 = arith.index_cast %281 : i32 to index
    %c0_81 = arith.constant 0 : index
    %c0_82 = arith.constant 0 : index
    %333 = vector.load %arg5[%332, %c0_81, %c0_82] : memref<8x2x32xf32, #tpu.memory_space<vmem>>, vector<1x2x32xf32>
    %334 = vector.shape_cast %333 : vector<1x2x32xf32> to vector<2x32xf32>
    %335 = vector.shape_cast %331 : vector<2x32xf32> to vector<1x2x32xf32>
    tpu.vector_store %arg5[%332, %c0_81, %c0_82], %335 {strides = array<i32>} : memref<8x2x32xf32, #tpu.memory_space<vmem>>, vector<1x2x32xf32>,
    %c6_i32 = arith.constant 6 : i32
    %c7_i32_83 = arith.constant 7 : i32
    %336 = arith.subi %c7_i32_83, %c6_i32 : i32
    %337 = arith.index_cast %c6_i32 : i32 to index
    %c0_84 = arith.constant 0 : index
    %c0_85 = arith.constant 0 : index
    %338 = vector.load %arg1[%337, %c0_84, %c0_85] : memref<8x2x128xf32, #tpu.memory_space<vmem>>, vector<1x2x128xf32>
    %339 = vector.shape_cast %338 : vector<1x2x128xf32> to vector<2x128xf32>
    %340 = arith.index_cast %336 : i32 to index
    %c0_86 = arith.constant 0 : index
    %c0_87 = arith.constant 0 : index
    %341 = vector.load %arg2[%340, %c0_86, %c0_87] : memref<8x2x128xf32, #tpu.memory_space<vmem>>, vector<1x2x128xf32>
    %342 = vector.shape_cast %341 : vector<1x2x128xf32> to vector<2x128xf32>
    %cst_88 = arith.constant dense<0.000000e+00> : vector<2x256xf32>
    %343 = tpu.matmul %325, %3, %cst_88 {dimension_numbers = #tpu.dot_dimension_numbers<[1], [0], [0], [1], [0, 0, 1, 1], [], []>} : vector<2x64xf32>, vector<64x256xf32>, vector<2x256xf32> -> vector<2x256xf32>
    %344 = vector.extract_strided_slice %343 {offsets = [0, 0], sizes = [2, 128], strides = [1, 1]} : vector<2x256xf32> to vector<2x128xf32>
    %345 = arith.addf %339, %344 : vector<2x128xf32>
    %346 = vector.extract_strided_slice %343 {offsets = [0, 128], sizes = [2, 128], strides = [1, 1]} : vector<2x256xf32> to vector<2x128xf32>
    %347 = arith.addf %342, %346 : vector<2x128xf32>
    %348 = vector.extract_strided_slice %345 {offsets = [0, 0], sizes = [2, 32], strides = [1, 1]} : vector<2x128xf32> to vector<2x32xf32>
    %349 = vector.extract_strided_slice %347 {offsets = [0, 0], sizes = [2, 32], strides = [1, 1]} : vector<2x128xf32> to vector<2x32xf32>
    %350 = tpu.concatenate %348, %349 in 1 : vector<2x32xf32>, vector<2x32xf32> -> vector<2x64xf32>
    %351 = arith.negf %350 : vector<2x64xf32>
    %352 = math.exp %351 : vector<2x64xf32>
    %cst_89 = arith.constant 1.000000e+00 : f32
    %353 = vector.broadcast %cst_89 : f32 to vector<2x64xf32>
    %354 = arith.addf %353, %352 : vector<2x64xf32>
    %355 = arith.divf %353, %354 : vector<2x64xf32>
    %356 = vector.extract_strided_slice %345 {offsets = [0, 32], sizes = [2, 32], strides = [1, 1]} : vector<2x128xf32> to vector<2x32xf32>
    %357 = vector.extract_strided_slice %347 {offsets = [0, 32], sizes = [2, 32], strides = [1, 1]} : vector<2x128xf32> to vector<2x32xf32>
    %358 = tpu.concatenate %356, %357 in 1 : vector<2x32xf32>, vector<2x32xf32> -> vector<2x64xf32>
    %359 = arith.negf %358 : vector<2x64xf32>
    %360 = math.exp %359 : vector<2x64xf32>
    %cst_90 = arith.constant 1.000000e+00 : f32
    %361 = vector.broadcast %cst_90 : f32 to vector<2x64xf32>
    %362 = arith.addf %361, %360 : vector<2x64xf32>
    %363 = arith.divf %361, %362 : vector<2x64xf32>
    %364 = vector.extract_strided_slice %345 {offsets = [0, 64], sizes = [2, 32], strides = [1, 1]} : vector<2x128xf32> to vector<2x32xf32>
    %365 = vector.extract_strided_slice %347 {offsets = [0, 64], sizes = [2, 32], strides = [1, 1]} : vector<2x128xf32> to vector<2x32xf32>
    %366 = tpu.concatenate %364, %365 in 1 : vector<2x32xf32>, vector<2x32xf32> -> vector<2x64xf32>
    %367 = math.tanh %366 : vector<2x64xf32>
    %368 = vector.extract_strided_slice %345 {offsets = [0, 96], sizes = [2, 32], strides = [1, 1]} : vector<2x128xf32> to vector<2x32xf32>
    %369 = vector.extract_strided_slice %347 {offsets = [0, 96], sizes = [2, 32], strides = [1, 1]} : vector<2x128xf32> to vector<2x32xf32>
    %370 = tpu.concatenate %368, %369 in 1 : vector<2x32xf32>, vector<2x32xf32> -> vector<2x64xf32>
    %371 = arith.negf %370 : vector<2x64xf32>
    %372 = math.exp %371 : vector<2x64xf32>
    %cst_91 = arith.constant 1.000000e+00 : f32
    %373 = vector.broadcast %cst_91 : f32 to vector<2x64xf32>
    %374 = arith.addf %373, %372 : vector<2x64xf32>
    %375 = arith.divf %373, %374 : vector<2x64xf32>
    %376 = arith.mulf %363, %323 : vector<2x64xf32>
    %377 = arith.mulf %355, %367 : vector<2x64xf32>
    %378 = arith.addf %376, %377 : vector<2x64xf32>
    %379 = math.tanh %378 : vector<2x64xf32>
    %380 = arith.mulf %375, %379 : vector<2x64xf32>
    %381 = vector.extract_strided_slice %380 {offsets = [0, 0], sizes = [2, 32], strides = [1, 1]} : vector<2x64xf32> to vector<2x32xf32>
    %382 = arith.index_cast %c6_i32 : i32 to index
    %c0_92 = arith.constant 0 : index
    %c0_93 = arith.constant 0 : index
    %383 = vector.load %arg4[%382, %c0_92, %c0_93] : memref<8x2x32xf32, #tpu.memory_space<vmem>>, vector<1x2x32xf32>
    %384 = vector.shape_cast %383 : vector<1x2x32xf32> to vector<2x32xf32>
    %385 = vector.shape_cast %381 : vector<2x32xf32> to vector<1x2x32xf32>
    tpu.vector_store %arg4[%382, %c0_92, %c0_93], %385 {strides = array<i32>} : memref<8x2x32xf32, #tpu.memory_space<vmem>>, vector<1x2x32xf32>,
    %386 = vector.extract_strided_slice %380 {offsets = [0, 32], sizes = [2, 32], strides = [1, 1]} : vector<2x64xf32> to vector<2x32xf32>
    %387 = arith.index_cast %336 : i32 to index
    %c0_94 = arith.constant 0 : index
    %c0_95 = arith.constant 0 : index
    %388 = vector.load %arg5[%387, %c0_94, %c0_95] : memref<8x2x32xf32, #tpu.memory_space<vmem>>, vector<1x2x32xf32>
    %389 = vector.shape_cast %388 : vector<1x2x32xf32> to vector<2x32xf32>
    %390 = vector.shape_cast %386 : vector<2x32xf32> to vector<1x2x32xf32>
    tpu.vector_store %arg5[%387, %c0_94, %c0_95], %390 {strides = array<i32>} : memref<8x2x32xf32, #tpu.memory_space<vmem>>, vector<1x2x32xf32>,
    %c7_i32_96 = arith.constant 7 : i32
    %c7_i32_97 = arith.constant 7 : i32
    %391 = arith.subi %c7_i32_97, %c7_i32_96 : i32
    %392 = arith.index_cast %c7_i32_96 : i32 to index
    %c0_98 = arith.constant 0 : index
    %c0_99 = arith.constant 0 : index
    %393 = vector.load %arg1[%392, %c0_98, %c0_99] : memref<8x2x128xf32, #tpu.memory_space<vmem>>, vector<1x2x128xf32>
    %394 = vector.shape_cast %393 : vector<1x2x128xf32> to vector<2x128xf32>
    %395 = arith.index_cast %391 : i32 to index
    %c0_100 = arith.constant 0 : index
    %c0_101 = arith.constant 0 : index
    %396 = vector.load %arg2[%395, %c0_100, %c0_101] : memref<8x2x128xf32, #tpu.memory_space<vmem>>, vector<1x2x128xf32>
    %397 = vector.shape_cast %396 : vector<1x2x128xf32> to vector<2x128xf32>
    %cst_102 = arith.constant dense<0.000000e+00> : vector<2x256xf32>
    %398 = tpu.matmul %380, %3, %cst_102 {dimension_numbers = #tpu.dot_dimension_numbers<[1], [0], [0], [1], [0, 0, 1, 1], [], []>} : vector<2x64xf32>, vector<64x256xf32>, vector<2x256xf32> -> vector<2x256xf32>
    %399 = vector.extract_strided_slice %398 {offsets = [0, 0], sizes = [2, 128], strides = [1, 1]} : vector<2x256xf32> to vector<2x128xf32>
    %400 = arith.addf %394, %399 : vector<2x128xf32>
    %401 = vector.extract_strided_slice %398 {offsets = [0, 128], sizes = [2, 128], strides = [1, 1]} : vector<2x256xf32> to vector<2x128xf32>
    %402 = arith.addf %397, %401 : vector<2x128xf32>
    %403 = vector.extract_strided_slice %400 {offsets = [0, 0], sizes = [2, 32], strides = [1, 1]} : vector<2x128xf32> to vector<2x32xf32>
    %404 = vector.extract_strided_slice %402 {offsets = [0, 0], sizes = [2, 32], strides = [1, 1]} : vector<2x128xf32> to vector<2x32xf32>
    %405 = tpu.concatenate %403, %404 in 1 : vector<2x32xf32>, vector<2x32xf32> -> vector<2x64xf32>
    %406 = arith.negf %405 : vector<2x64xf32>
    %407 = math.exp %406 : vector<2x64xf32>
    %cst_103 = arith.constant 1.000000e+00 : f32
    %408 = vector.broadcast %cst_103 : f32 to vector<2x64xf32>
    %409 = arith.addf %408, %407 : vector<2x64xf32>
    %410 = arith.divf %408, %409 : vector<2x64xf32>
    %411 = vector.extract_strided_slice %400 {offsets = [0, 32], sizes = [2, 32], strides = [1, 1]} : vector<2x128xf32> to vector<2x32xf32>
    %412 = vector.extract_strided_slice %402 {offsets = [0, 32], sizes = [2, 32], strides = [1, 1]} : vector<2x128xf32> to vector<2x32xf32>
    %413 = tpu.concatenate %411, %412 in 1 : vector<2x32xf32>, vector<2x32xf32> -> vector<2x64xf32>
    %414 = arith.negf %413 : vector<2x64xf32>
    %415 = math.exp %414 : vector<2x64xf32>
    %cst_104 = arith.constant 1.000000e+00 : f32
    %416 = vector.broadcast %cst_104 : f32 to vector<2x64xf32>
    %417 = arith.addf %416, %415 : vector<2x64xf32>
    %418 = arith.divf %416, %417 : vector<2x64xf32>
    %419 = vector.extract_strided_slice %400 {offsets = [0, 64], sizes = [2, 32], strides = [1, 1]} : vector<2x128xf32> to vector<2x32xf32>
    %420 = vector.extract_strided_slice %402 {offsets = [0, 64], sizes = [2, 32], strides = [1, 1]} : vector<2x128xf32> to vector<2x32xf32>
    %421 = tpu.concatenate %419, %420 in 1 : vector<2x32xf32>, vector<2x32xf32> -> vector<2x64xf32>
    %422 = math.tanh %421 : vector<2x64xf32>
    %423 = vector.extract_strided_slice %400 {offsets = [0, 96], sizes = [2, 32], strides = [1, 1]} : vector<2x128xf32> to vector<2x32xf32>
    %424 = vector.extract_strided_slice %402 {offsets = [0, 96], sizes = [2, 32], strides = [1, 1]} : vector<2x128xf32> to vector<2x32xf32>
    %425 = tpu.concatenate %423, %424 in 1 : vector<2x32xf32>, vector<2x32xf32> -> vector<2x64xf32>
    %426 = arith.negf %425 : vector<2x64xf32>
    %427 = math.exp %426 : vector<2x64xf32>
    %cst_105 = arith.constant 1.000000e+00 : f32
    %428 = vector.broadcast %cst_105 : f32 to vector<2x64xf32>
    %429 = arith.addf %428, %427 : vector<2x64xf32>
    %430 = arith.divf %428, %429 : vector<2x64xf32>
    %431 = arith.mulf %418, %378 : vector<2x64xf32>
    %432 = arith.mulf %410, %422 : vector<2x64xf32>
    %433 = arith.addf %431, %432 : vector<2x64xf32>
    %434 = math.tanh %433 : vector<2x64xf32>
    %435 = arith.mulf %430, %434 : vector<2x64xf32>
    %436 = vector.extract_strided_slice %435 {offsets = [0, 0], sizes = [2, 32], strides = [1, 1]} : vector<2x64xf32> to vector<2x32xf32>
    %437 = arith.index_cast %c7_i32_96 : i32 to index
    %c0_106 = arith.constant 0 : index
    %c0_107 = arith.constant 0 : index
    %438 = vector.load %arg4[%437, %c0_106, %c0_107] : memref<8x2x32xf32, #tpu.memory_space<vmem>>, vector<1x2x32xf32>
    %439 = vector.shape_cast %438 : vector<1x2x32xf32> to vector<2x32xf32>
    %440 = vector.shape_cast %436 : vector<2x32xf32> to vector<1x2x32xf32>
    tpu.vector_store %arg4[%437, %c0_106, %c0_107], %440 {strides = array<i32>} : memref<8x2x32xf32, #tpu.memory_space<vmem>>, vector<1x2x32xf32>,
    %441 = vector.extract_strided_slice %435 {offsets = [0, 32], sizes = [2, 32], strides = [1, 1]} : vector<2x64xf32> to vector<2x32xf32>
    %442 = arith.index_cast %391 : i32 to index
    %c0_108 = arith.constant 0 : index
    %c0_109 = arith.constant 0 : index
    %443 = vector.load %arg5[%442, %c0_108, %c0_109] : memref<8x2x32xf32, #tpu.memory_space<vmem>>, vector<1x2x32xf32>
    %444 = vector.shape_cast %443 : vector<1x2x32xf32> to vector<2x32xf32>
    %445 = vector.shape_cast %441 : vector<2x32xf32> to vector<1x2x32xf32>
    tpu.vector_store %arg5[%442, %c0_108, %c0_109], %445 {strides = array<i32>} : memref<8x2x32xf32, #tpu.memory_space<vmem>>, vector<1x2x32xf32>,
    %c8_i32 = arith.constant 8 : i32
    %c0_110 = arith.constant 0 : index
    %c0_111 = arith.constant 0 : index
    %446 = vector.load %arg8[%c0_110, %c0_111] : memref<2x64xf32, #tpu.memory_space<vmem>>, vector<2x64xf32>
    tpu.vector_store %arg8[%c0_110, %c0_111], %435 {strides = array<i32>} : memref<2x64xf32, #tpu.memory_space<vmem>>, vector<2x64xf32>,
    %c0_112 = arith.constant 0 : index
    %c0_113 = arith.constant 0 : index
    %447 = vector.load %arg9[%c0_112, %c0_113] : memref<2x64xf32, #tpu.memory_space<vmem>>, vector<2x64xf32>
    tpu.vector_store %arg9[%c0_112, %c0_113], %433 {strides = array<i32>} : memref<2x64xf32, #tpu.memory_space<vmem>>, vector<2x64xf32>,
    %c0_i32_114 = arith.constant 0 : i32
    %448 = arith.cmpi eq, %arg0, %c0_i32_114 : i32
    %449 = arith.extui %448 : i1 to i32
    %c0_i32_115 = arith.constant 0 : i32
    %450 = arith.cmpi ne, %449, %c0_i32_115 : i32
    scf.if %450 {
      %451 = vector.extract_strided_slice %435 {offsets = [0, 0], sizes = [2, 32], strides = [1, 1]} : vector<2x64xf32> to vector<2x32xf32>
      %c0_116 = arith.constant 0 : index
      %c0_117 = arith.constant 0 : index
      %c0_118 = arith.constant 0 : index
      %452 = vector.load %arg6[%c0_116, %c0_117, %c0_118] : memref<2x2x32xf32, #tpu.memory_space<vmem>>, vector<1x2x32xf32>
      %453 = vector.shape_cast %452 : vector<1x2x32xf32> to vector<2x32xf32>
      %454 = vector.shape_cast %451 : vector<2x32xf32> to vector<1x2x32xf32>
      tpu.vector_store %arg6[%c0_116, %c0_117, %c0_118], %454 {strides = array<i32>} : memref<2x2x32xf32, #tpu.memory_space<vmem>>, vector<1x2x32xf32>,
      %455 = vector.extract_strided_slice %435 {offsets = [0, 32], sizes = [2, 32], strides = [1, 1]} : vector<2x64xf32> to vector<2x32xf32>
      %c1 = arith.constant 1 : index
      %c0_119 = arith.constant 0 : index
      %c0_120 = arith.constant 0 : index
      %456 = vector.load %arg6[%c1, %c0_119, %c0_120] : memref<2x2x32xf32, #tpu.memory_space<vmem>>, vector<1x2x32xf32>
      %457 = vector.shape_cast %456 : vector<1x2x32xf32> to vector<2x32xf32>
      %458 = vector.shape_cast %455 : vector<2x32xf32> to vector<1x2x32xf32>
      tpu.vector_store %arg6[%c1, %c0_119, %c0_120], %458 {strides = array<i32>} : memref<2x2x32xf32, #tpu.memory_space<vmem>>, vector<1x2x32xf32>,
      %459 = vector.extract_strided_slice %433 {offsets = [0, 0], sizes = [2, 32], strides = [1, 1]} : vector<2x64xf32> to vector<2x32xf32>
      %c0_121 = arith.constant 0 : index
      %c0_122 = arith.constant 0 : index
      %c0_123 = arith.constant 0 : index
      %460 = vector.load %arg7[%c0_121, %c0_122, %c0_123] : memref<2x2x32xf32, #tpu.memory_space<vmem>>, vector<1x2x32xf32>
      %461 = vector.shape_cast %460 : vector<1x2x32xf32> to vector<2x32xf32>
      %462 = vector.shape_cast %459 : vector<2x32xf32> to vector<1x2x32xf32>
      tpu.vector_store %arg7[%c0_121, %c0_122, %c0_123], %462 {strides = array<i32>} : memref<2x2x32xf32, #tpu.memory_space<vmem>>, vector<1x2x32xf32>,
      %463 = vector.extract_strided_slice %433 {offsets = [0, 32], sizes = [2, 32], strides = [1, 1]} : vector<2x64xf32> to vector<2x32xf32>
      %c1_124 = arith.constant 1 : index
      %c0_125 = arith.constant 0 : index
      %c0_126 = arith.constant 0 : index
      %464 = vector.load %arg7[%c1_124, %c0_125, %c0_126] : memref<2x2x32xf32, #tpu.memory_space<vmem>>, vector<1x2x32xf32>
      %465 = vector.shape_cast %464 : vector<1x2x32xf32> to vector<2x32xf32>
      %466 = vector.shape_cast %463 : vector<2x32xf32> to vector<1x2x32xf32>
      tpu.vector_store %arg7[%c1_124, %c0_125, %c0_126], %466 {strides = array<i32>} : memref<2x2x32xf32, #tpu.memory_space<vmem>>, vector<1x2x32xf32>,
    } else {
    }
    return
  }
  func.func @transform_0(%arg0: i32) -> (i32, i32, i32) {
    %c0_i32 = arith.constant 0 : i32
    %c0_i32_0 = arith.constant 0 : i32
    %c0_i32_1 = arith.constant 0 : i32
    return %arg0, %c0_i32, %c0_i32_0 : i32, i32, i32
  }
  func.func @transform_1(%arg0: i32) -> (i32, i32, i32) {
    %c0_i32 = arith.constant 0 : i32
    %0 = arith.subi %c0_i32, %arg0 : i32
    %c0_i32_0 = arith.constant 0 : i32
    %c0_i32_1 = arith.constant 0 : i32
    %c0_i32_2 = arith.constant 0 : i32
    return %0, %c0_i32_0, %c0_i32_1 : i32, i32, i32
  }
  func.func @transform_2(%arg0: i32) -> (i32, i32) {
    %c0_i32 = arith.constant 0 : i32
    %c0_i32_0 = arith.constant 0 : i32
    %c0_i32_1 = arith.constant 0 : i32
    return %c0_i32, %c0_i32_0 : i32, i32
  }
  func.func @transform_3(%arg0: i32) -> (i32, i32, i32) {
    %c0_i32 = arith.constant 0 : i32
    %c0_i32_0 = arith.constant 0 : i32
    %c0_i32_1 = arith.constant 0 : i32
    return %arg0, %c0_i32, %c0_i32_0 : i32, i32, i32
  }
  func.func @transform_4(%arg0: i32) -> (i32, i32, i32) {
    %c0_i32 = arith.constant 0 : i32
    %0 = arith.subi %c0_i32, %arg0 : i32
    %c0_i32_0 = arith.constant 0 : i32
    %c0_i32_1 = arith.constant 0 : i32
    %c0_i32_2 = arith.constant 0 : i32
    return %0, %c0_i32_0, %c0_i32_1 : i32, i32, i32
  }
  func.func @transform_5(%arg0: i32) -> (i32, i32, i32) {
    %c0_i32 = arith.constant 0 : i32
    %c0_i32_0 = arith.constant 0 : i32
    %c0_i32_1 = arith.constant 0 : i32
    %c0_i32_2 = arith.constant 0 : i32
    return %c0_i32, %c0_i32_0, %c0_i32_1 : i32, i32, i32
  }
  func.func @transform_6(%arg0: i32) -> (i32, i32, i32) {
    %c0_i32 = arith.constant 0 : i32
    %c0_i32_0 = arith.constant 0 : i32
    %c0_i32_1 = arith.constant 0 : i32
    %c0_i32_2 = arith.constant 0 : i32
    return %c0_i32, %c0_i32_0, %c0_i32_1 : i32, i32, i32
  }
}

module attributes {stable_mosaic.version = 11 : i64} {
  func.func @_heads_kernel(%arg0: i32, %arg1: memref<16x32xf32, #tpu.memory_space<vmem>>, %arg2: memref<16x32xf32, #tpu.memory_space<vmem>>, %arg3: memref<32x480xf32, #tpu.memory_space<vmem>>, %arg4: memref<32x480xf32, #tpu.memory_space<vmem>>, %arg5: memref<1x480xf32, #tpu.memory_space<vmem>>, %arg6: memref<128x16xf32, #tpu.memory_space<vmem>>, %arg7: memref<16x128xf32, #tpu.memory_space<vmem>>, %arg8: memref<2x256xf32, #tpu.memory_space<vmem>>, %arg9: memref<16x480xf32, #tpu.memory_space<vmem>>) attributes {dimension_semantics = [#tpu.dimension_semantics<parallel>], iteration_bounds = array<i64: 1>, scalar_prefetch = 0 : i64, scratch_operands = 0 : i64, tpu.core_type = #tpu.core_type<tc>, window_params = [{transform_indices = @transform_0, window_bounds = array<i64: 16, 32>}, {transform_indices = @transform_1, window_bounds = array<i64: 16, 32>}, {pipeline_mode = #tpu.pipeline_mode<synchronous>, transform_indices = @transform_2, window_bounds = array<i64: 32, 480>}, {pipeline_mode = #tpu.pipeline_mode<synchronous>, transform_indices = @transform_3, window_bounds = array<i64: 32, 480>}, {pipeline_mode = #tpu.pipeline_mode<synchronous>, transform_indices = @transform_4, window_bounds = array<i64: 1, 480>}, {pipeline_mode = #tpu.pipeline_mode<synchronous>, transform_indices = @transform_5, window_bounds = array<i64: 128, 16>}, {pipeline_mode = #tpu.pipeline_mode<synchronous>, transform_indices = @transform_6, window_bounds = array<i64: 16, 128>}, {pipeline_mode = #tpu.pipeline_mode<synchronous>, transform_indices = @transform_7, window_bounds = array<i64: 2, 256>}, {transform_indices = @transform_8, window_bounds = array<i64: 16, 480>}]} {
    %c0 = arith.constant 0 : index
    %c0_0 = arith.constant 0 : index
    %0 = vector.load %arg1[%c0, %c0_0] : memref<16x32xf32, #tpu.memory_space<vmem>>, vector<16x32xf32>
    %c0_1 = arith.constant 0 : index
    %c0_2 = arith.constant 0 : index
    %1 = vector.load %arg3[%c0_1, %c0_2] : memref<32x480xf32, #tpu.memory_space<vmem>>, vector<32x480xf32>
    %cst = arith.constant dense<0.000000e+00> : vector<16x480xf32>
    %2 = tpu.matmul %0, %1, %cst {dimension_numbers = #tpu.dot_dimension_numbers<[1], [0], [0], [1], [0, 0, 1, 1], [], []>} : vector<16x32xf32>, vector<32x480xf32>, vector<16x480xf32> -> vector<16x480xf32>
    %c0_3 = arith.constant 0 : index
    %c0_4 = arith.constant 0 : index
    %3 = vector.load %arg2[%c0_3, %c0_4] : memref<16x32xf32, #tpu.memory_space<vmem>>, vector<16x32xf32>
    %c0_5 = arith.constant 0 : index
    %c0_6 = arith.constant 0 : index
    %4 = vector.load %arg4[%c0_5, %c0_6] : memref<32x480xf32, #tpu.memory_space<vmem>>, vector<32x480xf32>
    %cst_7 = arith.constant dense<0.000000e+00> : vector<16x480xf32>
    %5 = tpu.matmul %3, %4, %cst_7 {dimension_numbers = #tpu.dot_dimension_numbers<[1], [0], [0], [1], [0, 0, 1, 1], [], []>} : vector<16x32xf32>, vector<32x480xf32>, vector<16x480xf32> -> vector<16x480xf32>
    %6 = arith.addf %2, %5 : vector<16x480xf32>
    %c0_8 = arith.constant 0 : index
    %c0_9 = arith.constant 0 : index
    %7 = vector.load %arg5[%c0_8, %c0_9] : memref<1x480xf32, #tpu.memory_space<vmem>>, vector<1x480xf32>
    %8 = vector.broadcast %7 : vector<1x480xf32> to vector<16x480xf32>
    %9 = arith.addf %6, %8 : vector<16x480xf32>
    %10 = vector.extract_strided_slice %9 {offsets = [0, 0], sizes = [16, 128], strides = [1, 1]} : vector<16x480xf32> to vector<16x128xf32>
    %11 = arith.negf %10 : vector<16x128xf32>
    %12 = math.exp %11 : vector<16x128xf32>
    %cst_10 = arith.constant 1.000000e+00 : f32
    %13 = vector.broadcast %cst_10 : f32 to vector<16x128xf32>
    %14 = arith.addf %13, %12 : vector<16x128xf32>
    %15 = arith.divf %13, %14 : vector<16x128xf32>
    %16 = arith.mulf %15, %15 : vector<16x128xf32>
    %c0_11 = arith.constant 0 : index
    %c0_12 = arith.constant 0 : index
    %17 = vector.load %arg6[%c0_11, %c0_12] : memref<128x16xf32, #tpu.memory_space<vmem>>, vector<128x16xf32>
    %cst_13 = arith.constant dense<0.000000e+00> : vector<16x16xf32>
    %18 = tpu.matmul %16, %17, %cst_13 {dimension_numbers = #tpu.dot_dimension_numbers<[1], [0], [0], [1], [0, 0, 1, 1], [], []>} : vector<16x128xf32>, vector<128x16xf32>, vector<16x16xf32> -> vector<16x16xf32>
    %c0_14 = arith.constant 0 : index
    %c0_15 = arith.constant 0 : index
    %19 = vector.load %arg7[%c0_14, %c0_15] : memref<16x128xf32, #tpu.memory_space<vmem>>, vector<16x128xf32>
    %cst_16 = arith.constant dense<0.000000e+00> : vector<16x128xf32>
    %20 = tpu.matmul %18, %19, %cst_16 {dimension_numbers = #tpu.dot_dimension_numbers<[1], [0], [0], [1], [0, 0, 1, 1], [], []>} : vector<16x16xf32>, vector<16x128xf32>, vector<16x128xf32> -> vector<16x128xf32>
    %cst_17 = arith.constant 1.000000e-24 : f32
    %21 = vector.broadcast %cst_17 : f32 to vector<16x128xf32>
    %22 = arith.maximumf %20, %21 : vector<16x128xf32>
    %23 = math.rsqrt %22 : vector<16x128xf32>
    %24 = arith.mulf %15, %23 : vector<16x128xf32>
    %25 = vector.extract_strided_slice %9 {offsets = [0, 128], sizes = [16, 256], strides = [1, 1]} : vector<16x480xf32> to vector<16x256xf32>
    %c128_i32 = arith.constant 128 : i32
    %26 = tpu.dynamic_rotate %25 by %c128_i32 dim 1 : vector<16x256xf32>, i32 -> vector<16x256xf32>
    %27 = arith.maximumf %25, %26 : vector<16x256xf32>
    %c64_i32 = arith.constant 64 : i32
    %28 = tpu.dynamic_rotate %27 by %c64_i32 dim 1 : vector<16x256xf32>, i32 -> vector<16x256xf32>
    %29 = arith.maximumf %27, %28 : vector<16x256xf32>
    %c32_i32 = arith.constant 32 : i32
    %30 = tpu.dynamic_rotate %29 by %c32_i32 dim 1 : vector<16x256xf32>, i32 -> vector<16x256xf32>
    %31 = arith.maximumf %29, %30 : vector<16x256xf32>
    %32 = arith.subf %25, %31 : vector<16x256xf32>
    %33 = math.exp %32 : vector<16x256xf32>
    %c128_i32_18 = arith.constant 128 : i32
    %34 = tpu.dynamic_rotate %33 by %c128_i32_18 dim 1 : vector<16x256xf32>, i32 -> vector<16x256xf32>
    %35 = arith.addf %33, %34 : vector<16x256xf32>
    %c64_i32_19 = arith.constant 64 : i32
    %36 = tpu.dynamic_rotate %35 by %c64_i32_19 dim 1 : vector<16x256xf32>, i32 -> vector<16x256xf32>
    %37 = arith.addf %35, %36 : vector<16x256xf32>
    %c32_i32_20 = arith.constant 32 : i32
    %38 = tpu.dynamic_rotate %37 by %c32_i32_20 dim 1 : vector<16x256xf32>, i32 -> vector<16x256xf32>
    %39 = arith.addf %37, %38 : vector<16x256xf32>
    %40 = arith.divf %33, %39 : vector<16x256xf32>
    %c0_21 = arith.constant 0 : index
    %c0_22 = arith.constant 0 : index
    %41 = vector.load %arg8[%c0_21, %c0_22] : memref<2x256xf32, #tpu.memory_space<vmem>>, vector<1x256xf32>
    %42 = vector.broadcast %41 : vector<1x256xf32> to vector<16x256xf32>
    %43 = arith.mulf %40, %42 : vector<16x256xf32>
    %c1 = arith.constant 1 : index
    %c0_23 = arith.constant 0 : index
    %44 = vector.load %arg8[%c1, %c0_23] : memref<2x256xf32, #tpu.memory_space<vmem>>, vector<1x256xf32>
    %45 = vector.broadcast %44 : vector<1x256xf32> to vector<16x256xf32>
    %46 = arith.mulf %40, %45 : vector<16x256xf32>
    %c128_i32_24 = arith.constant 128 : i32
    %47 = tpu.dynamic_rotate %43 by %c128_i32_24 dim 1 : vector<16x256xf32>, i32 -> vector<16x256xf32>
    %48 = arith.addf %43, %47 : vector<16x256xf32>
    %c128_i32_25 = arith.constant 128 : i32
    %49 = tpu.dynamic_rotate %46 by %c128_i32_25 dim 1 : vector<16x256xf32>, i32 -> vector<16x256xf32>
    %50 = arith.addf %46, %49 : vector<16x256xf32>
    %c64_i32_26 = arith.constant 64 : i32
    %51 = tpu.dynamic_rotate %48 by %c64_i32_26 dim 1 : vector<16x256xf32>, i32 -> vector<16x256xf32>
    %52 = arith.addf %48, %51 : vector<16x256xf32>
    %c64_i32_27 = arith.constant 64 : i32
    %53 = tpu.dynamic_rotate %50 by %c64_i32_27 dim 1 : vector<16x256xf32>, i32 -> vector<16x256xf32>
    %54 = arith.addf %50, %53 : vector<16x256xf32>
    %c32_i32_28 = arith.constant 32 : i32
    %55 = tpu.dynamic_rotate %52 by %c32_i32_28 dim 1 : vector<16x256xf32>, i32 -> vector<16x256xf32>
    %56 = arith.addf %52, %55 : vector<16x256xf32>
    %c32_i32_29 = arith.constant 32 : i32
    %57 = tpu.dynamic_rotate %54 by %c32_i32_29 dim 1 : vector<16x256xf32>, i32 -> vector<16x256xf32>
    %58 = arith.addf %54, %57 : vector<16x256xf32>
    %59 = vector.extract_strided_slice %56 {offsets = [0, 0], sizes = [16, 32], strides = [1, 1]} : vector<16x256xf32> to vector<16x32xf32>
    %60 = vector.extract_strided_slice %58 {offsets = [0, 0], sizes = [16, 32], strides = [1, 1]} : vector<16x256xf32> to vector<16x32xf32>
    %61 = vector.extract_strided_slice %9 {offsets = [0, 384], sizes = [16, 32], strides = [1, 1]} : vector<16x480xf32> to vector<16x32xf32>
    %62 = vector.extract_strided_slice %9 {offsets = [0, 416], sizes = [16, 32], strides = [1, 1]} : vector<16x480xf32> to vector<16x32xf32>
    %63 = vector.extract_strided_slice %9 {offsets = [0, 448], sizes = [16, 32], strides = [1, 1]} : vector<16x480xf32> to vector<16x32xf32>
    %64 = arith.maximumf %61, %62 : vector<16x32xf32>
    %65 = arith.maximumf %64, %63 : vector<16x32xf32>
    %66 = arith.subf %61, %65 : vector<16x32xf32>
    %67 = math.exp %66 : vector<16x32xf32>
    %68 = arith.subf %62, %65 : vector<16x32xf32>
    %69 = math.exp %68 : vector<16x32xf32>
    %70 = arith.subf %63, %65 : vector<16x32xf32>
    %71 = math.exp %70 : vector<16x32xf32>
    %cst_30 = arith.constant 2.000000e+00 : f32
    %72 = vector.broadcast %cst_30 : f32 to vector<16x32xf32>
    %73 = arith.mulf %72, %71 : vector<16x32xf32>
    %74 = arith.addf %69, %73 : vector<16x32xf32>
    %75 = arith.addf %67, %69 : vector<16x32xf32>
    %76 = arith.addf %75, %71 : vector<16x32xf32>
    %77 = arith.divf %74, %76 : vector<16x32xf32>
    %78 = arith.mulf %59, %59 : vector<16x32xf32>
    %79 = arith.mulf %60, %60 : vector<16x32xf32>
    %80 = arith.addf %78, %79 : vector<16x32xf32>
    %cst_31 = arith.constant 1.000000e-30 : f32
    %81 = vector.broadcast %cst_31 : f32 to vector<16x32xf32>
    %82 = arith.maximumf %80, %81 : vector<16x32xf32>
    %83 = math.rsqrt %82 : vector<16x32xf32>
    %84 = arith.mulf %77, %83 : vector<16x32xf32>
    %85 = arith.mulf %84, %59 : vector<16x32xf32>
    %86 = arith.mulf %84, %60 : vector<16x32xf32>
    %87 = tpu.concatenate %24, %77, %40, %85, %86 in 1 : vector<16x128xf32>, vector<16x32xf32>, vector<16x256xf32>, vector<16x32xf32>, vector<16x32xf32> -> vector<16x480xf32>
    %c0_32 = arith.constant 0 : index
    %c0_33 = arith.constant 0 : index
    %88 = vector.load %arg9[%c0_32, %c0_33] : memref<16x480xf32, #tpu.memory_space<vmem>>, vector<16x480xf32>
    tpu.vector_store %arg9[%c0_32, %c0_33], %87 {strides = array<i32>} : memref<16x480xf32, #tpu.memory_space<vmem>>, vector<16x480xf32>,
    return
  }
  func.func @transform_0(%arg0: i32) -> (i32, i32) {
    %c0_i32 = arith.constant 0 : i32
    %c0_i32_0 = arith.constant 0 : i32
    return %arg0, %c0_i32 : i32, i32
  }
  func.func @transform_1(%arg0: i32) -> (i32, i32) {
    %c0_i32 = arith.constant 0 : i32
    %c0_i32_0 = arith.constant 0 : i32
    return %arg0, %c0_i32 : i32, i32
  }
  func.func @transform_2(%arg0: i32) -> (i32, i32) {
    %c0_i32 = arith.constant 0 : i32
    %c0_i32_0 = arith.constant 0 : i32
    %c0_i32_1 = arith.constant 0 : i32
    return %c0_i32, %c0_i32_0 : i32, i32
  }
  func.func @transform_3(%arg0: i32) -> (i32, i32) {
    %c0_i32 = arith.constant 0 : i32
    %c0_i32_0 = arith.constant 0 : i32
    %c0_i32_1 = arith.constant 0 : i32
    return %c0_i32, %c0_i32_0 : i32, i32
  }
  func.func @transform_4(%arg0: i32) -> (i32, i32) {
    %c0_i32 = arith.constant 0 : i32
    %c0_i32_0 = arith.constant 0 : i32
    %c0_i32_1 = arith.constant 0 : i32
    return %c0_i32, %c0_i32_0 : i32, i32
  }
  func.func @transform_5(%arg0: i32) -> (i32, i32) {
    %c0_i32 = arith.constant 0 : i32
    %c0_i32_0 = arith.constant 0 : i32
    %c0_i32_1 = arith.constant 0 : i32
    return %c0_i32, %c0_i32_0 : i32, i32
  }
  func.func @transform_6(%arg0: i32) -> (i32, i32) {
    %c0_i32 = arith.constant 0 : i32
    %c0_i32_0 = arith.constant 0 : i32
    %c0_i32_1 = arith.constant 0 : i32
    return %c0_i32, %c0_i32_0 : i32, i32
  }
  func.func @transform_7(%arg0: i32) -> (i32, i32) {
    %c0_i32 = arith.constant 0 : i32
    %c0_i32_0 = arith.constant 0 : i32
    %c0_i32_1 = arith.constant 0 : i32
    return %c0_i32, %c0_i32_0 : i32, i32
  }
  func.func @transform_8(%arg0: i32) -> (i32, i32) {
    %c0_i32 = arith.constant 0 : i32
    %c0_i32_0 = arith.constant 0 : i32
    return %arg0, %c0_i32 : i32, i32
  }
}

</mosaic_0001>

<llo_original>
// kernel: chimera_magphasebook_forward.5
$region0: #{chimera_magphasebook_forward.5}
  #allocation0 [shape = 'u32[]', space=smem, size = 0x4, offset = 0x4, fixed_abs, tag = 'smem constant byte address 0x4 - core index']
  #allocation1 [shape = 'u32[72,128]{1,0:T(1,128)}', space=vmem, size = 0x9000, scoped, tag = 'internal scratch']
  %s0 = inlined_call_operand.vmem [shape: f32[16,32], index: 0, kind: input, shape index: {}]
  %s1 = inlined_call_operand.vmem [shape: f32[16,32], index: 1, kind: input, shape index: {}]
  %s2 = inlined_call_operand.vmem [shape: f32[32,480], index: 2, kind: input, shape index: {}]
  %s3 = inlined_call_operand.hbm [shape: f32[32,480], index: 3, kind: input, shape index: {}]
  %s4 = inlined_call_operand.vmem [shape: f32[1,480], index: 4, kind: input, shape index: {}]
  %s5 = inlined_call_operand.vmem [shape: f32[128,16], index: 5, kind: input, shape index: {}]
  %s6 = inlined_call_operand.vmem [shape: f32[16,128], index: 6, kind: input, shape index: {}]
  %s7 = inlined_call_operand.vmem [shape: f32[2,256], index: 7, kind: input, shape index: {}]
  %s8 = inlined_call_operand.vmem [shape: f32[16,480], index: 8, kind: output, shape index: {}]
  %s9 = sld [smem:[#allocation0]]
  $region46: #{chimera_magphasebook_forward.5} parent=0
    _
  %s11 = ssub.s32 1, %s9
  %s12 = scalar_select 0, %s11, %s9
  $region1: #{chimera_magphasebook_forward.5} parent=0
    #allocation2 [shape = 'u8[65536]{0}', space=vmem, size = 0x10000, scoped, tag = 'input window, operand 3, single buffered']
    #allocation3 [shape = 's32[1]{0}', space=sflag, size = 0x4, scoped, tag = 'scoped memory for chimera_magphasebook_forward.5']
    %13 = vsyncpa [#allocation3], 0
    // Predicated region
    $region2: #{chimera_magphasebook_forward.5} parent=1 // pred_check
      _
    $region3: #{chimera_magphasebook_forward.5} parent=1 // pred_check_branch
      %15 = sbr.rel (0) target = $region5
    $region4: #{chimera_magphasebook_forward.5} parent=1 // pred_region
      _
    $region5: #{chimera_magphasebook_forward.5} parent=1 // pred_fallthru
      _
    // Predicated region
    $region6: #{chimera_magphasebook_forward.5} parent=1 // pred_check
      _
    $region7: #{chimera_magphasebook_forward.5} parent=1 // pred_check_branch
      %17 = sbr.rel (0) target = $region9
    $region8: #{chimera_magphasebook_forward.5} parent=1 // pred_region
      _
    $region9: #{chimera_magphasebook_forward.5} parent=1 // pred_fallthru
      _
    // Predicated region
    $region10: #{chimera_magphasebook_forward.5} parent=1 // pred_check
      _
    $region11: #{chimera_magphasebook_forward.5} parent=1 // pred_check_branch
      %19 = sbr.rel (0) target = $region13
    $region12: #{chimera_magphasebook_forward.5} parent=1 // pred_region
      _
    $region13: #{chimera_magphasebook_forward.5} parent=1 // pred_fallthru
      _
    // Predicated region
    $region14: #{chimera_magphasebook_forward.5} parent=1 // pred_check
      _
    $region15: #{chimera_magphasebook_forward.5} parent=1 // pred_check_branch
      %21 = sbr.rel (0) target = $region17
    $region16: #{chimera_magphasebook_forward.5} parent=1 // pred_region
      %23 = vsyncadd [#allocation3], 0
      %s24 = sshll.u32 %s3, 4
      %s25 = int_to_ptr.hbm [resolvable:$true] %s24
      %s26 = sshll.u32 [#allocation2], 4
      %s27 = int_to_ptr.vmem [resolvable:$true] %s26
      %32 = dma.hbm_to_vmem [thread:$0]  %s25, 2048, %s27, [#allocation3], 512, 512, 32
    $region17: #{chimera_magphasebook_forward.5} parent=1 // pred_fallthru
      _
    // Predicated region
    $region18: #{chimera_magphasebook_forward.5} parent=1 // pred_check
      _
    $region19: #{chimera_magphasebook_forward.5} parent=1 // pred_check_branch
      %34 = sbr.rel (0) target = $region21
    $region20: #{chimera_magphasebook_forward.5} parent=1 // pred_region
      _
    $region21: #{chimera_magphasebook_forward.5} parent=1 // pred_fallthru
      _
    // Predicated region
    $region22: #{chimera_magphasebook_forward.5} parent=1 // pred_check
      _
    $region23: #{chimera_magphasebook_forward.5} parent=1 // pred_check_branch
      %36 = sbr.rel (0) target = $region25
    $region24: #{chimera_magphasebook_forward.5} parent=1 // pred_region
      _
    $region25: #{chimera_magphasebook_forward.5} parent=1 // pred_fallthru
      _
    // Predicated region
    $region26: #{chimera_magphasebook_forward.5} parent=1 // pred_check
      _
    $region27: #{chimera_magphasebook_forward.5} parent=1 // pred_check_branch
      %38 = sbr.rel (0) target = $region29
    $region28: #{chimera_magphasebook_forward.5} parent=1 // pred_region
      _
    $region29: #{chimera_magphasebook_forward.5} parent=1 // pred_fallthru
      _
    // Predicated region
    $region30: #{chimera_magphasebook_forward.5} parent=1 // pred_check
      _
    $region31: #{chimera_magphasebook_forward.5} parent=1 // pred_check_branch
      %40 = sbr.rel (0) target = $region33
    $region32: #{chimera_magphasebook_forward.5} parent=1 // pred_region
      _
    $region33: #{chimera_magphasebook_forward.5} parent=1 // pred_fallthru
      _
    // Predicated region
    $region34: #{chimera_magphasebook_forward.5} parent=1 // pred_check
      _
    $region35: #{chimera_magphasebook_forward.5} parent=1 // pred_check_branch
      %42 = sbr.rel (0) target = $region37
    $region36: #{chimera_magphasebook_forward.5} parent=1 // pred_region
      %44 = dma.done [#allocation3], 2048
    $region37: #{chimera_magphasebook_forward.5} parent=1 // pred_fallthru
      _
    %v45 = vld [vmem:[%s0] sm:$0xff]
    %v46 = vld [vmem:[%s0 + $0x8] sm:$0xff]
    %v47 = vld [vmem:[%s2] sm:$0xff]
    %v48 = vld [vmem:[%s2 + $0x8] sm:$0xff]
    %v49 = vld [vmem:[%s2 + $0x10] sm:$0xff]
    %v50 = vld [vmem:[%s2 + $0x18] sm:$0xff]
    %v51 = vld [vmem:[%s2 + $0x20] sm:$0xff]
    %v52 = vld [vmem:[%s2 + $0x28] sm:$0xff]
    %v53 = vld [vmem:[%s2 + $0x30] sm:$0xff]
    %v54 = vld [vmem:[%s2 + $0x38] sm:$0xff]
    %v55 = vld [vmem:[%s2 + $0x40] sm:$0xff]
    %v56 = vld [vmem:[%s2 + $0x48] sm:$0xff]
    %v57 = vld [vmem:[%s2 + $0x50] sm:$0xff]
    %v58 = vld [vmem:[%s2 + $0x58] sm:$0xff]
    %v59 = vld [vmem:[%s2 + $0x60] sm:$0xff]
    %v60 = vld [vmem:[%s2 + $0x68] sm:$0xff]
    %v61 = vld [vmem:[%s2 + $0x70] sm:$0xff]
    %v62 = vld [vmem:[%s2 + $0x78] sm:$0xff]
    %v63 = vld [vmem:[%s1] sm:$0xff]
    %v64 = vld [vmem:[%s1 + $0x8] sm:$0xff]
    %v65 = vld [vmem:[#allocation2] sm:$0xff]
    %v66 = vld [vmem:[#allocation2 + $0x8] sm:$0xff]
    %v67 = vld [vmem:[#allocation2 + $0x10] sm:$0xff]
    %v68 = vld [vmem:[#allocation2 + $0x18] sm:$0xff]
    %v69 = vld [vmem:[#allocation2 + $0x20] sm:$0xff]
    %v70 = vld [vmem:[#allocation2 + $0x28] sm:$0xff]
    %v71 = vld [vmem:[#allocation2 + $0x30] sm:$0xff]
    %v72 = vld [vmem:[#allocation2 + $0x38] sm:$0xff]
    %v73 = vld [vmem:[#allocation2 + $0x40] sm:$0xff]
    %v74 = vld [vmem:[#allocation2 + $0x48] sm:$0xff]
    %v75 = vld [vmem:[#allocation2 + $0x50] sm:$0xff]
    %v76 = vld [vmem:[#allocation2 + $0x58] sm:$0xff]
    %v77 = vld [vmem:[#allocation2 + $0x60] sm:$0xff]
    %v78 = vld [vmem:[#allocation2 + $0x68] sm:$0xff]
    %v79 = vld [vmem:[#allocation2 + $0x70] sm:$0xff]
    %v80 = vld [vmem:[#allocation2 + $0x78] sm:$0xff]
    %vm81 = vcmask 261120
    %v83 = vsel %vm81, %v63, 0
    %v86 = vsel %vm81, %v64, 0
    %88 = vmatpush.msra.mxu0 0.0
    %89 = vmatpush.msra.mxu0 0.0
    %90 = vmatpush.msra.mxu0 0.0
    %91 = vmatpush.msra.mxu0 0.0
    %92 = vmatpush.msra.mxu0 0.0
    %93 = vmatpush.msra.mxu0 0.0
    %94 = vmatpush.msra.mxu0 0.0
    %95 = vmatpush.msra.mxu0 0.0
    %96 = vmatpush.msra.mxu0 0.0
    %97 = vmatpush.msra.mxu0 0.0
    %98 = vmatpush.msra.mxu0 0.0
    %99 = vmatpush.msra.mxu0 0.0
    %100 = vmatpush.msra.mxu0 %v77
    %101 = vmatpush.msra.mxu0 %v73
    %102 = vmatpush.msra.mxu0 %v69
    %103 = vmatpush.msra.mxu0 %v65
    %104 = vmatmul.f32.gmra.mxu0 %v83
    %v105 = vpop.f32.mrf.mxu0
    %v106 = vadd.f32 0.0, %v105
    %107 = vmatmul.f32.gmra.mxu0 %v86
    %v108 = vpop.f32.mrf.mxu0
    %v109 = vadd.f32 0.0, %v108
    %110 = vdwg.mxu0
    %111 = vmatpush.msra.mxu0 0.0
    %112 = vmatpush.msra.mxu0 0.0
    %113 = vmatpush.msra.mxu0 0.0
    %114 = vmatpush.msra.mxu0 0.0
    %115 = vmatpush.msra.mxu0 0.0
    %116 = vmatpush.msra.mxu0 0.0
    %117 = vmatpush.msra.mxu0 0.0
    %118 = vmatpush.msra.mxu0 0.0
    %119 = vmatpush.msra.mxu0 0.0
    %120 = vmatpush.msra.mxu0 0.0
    %121 = vmatpush.msra.mxu0 0.0
    %122 = vmatpush.msra.mxu0 0.0
    %123 = vmatpush.msra.mxu0 %v78
    %124 = vmatpush.msra.mxu0 %v74
    %125 = vmatpush.msra.mxu0 %v70
    %126 = vmatpush.msra.mxu0 %v66
    %127 = vmatmul.f32.gmra.mxu0 %v83
    %v128 = vpop.f32.mrf.mxu0
    %v129 = vadd.f32 0.0, %v128
    %130 = vmatmul.f32.gmra.mxu0 %v86
    %v131 = vpop.f32.mrf.mxu0
    %v132 = vadd.f32 0.0, %v131
    %133 = vdwg.mxu0
    %134 = vmatpush.msra.mxu0 0.0
    %135 = vmatpush.msra.mxu0 0.0
    %136 = vmatpush.msra.mxu0 0.0
    %137 = vmatpush.msra.mxu0 0.0
    %138 = vmatpush.msra.mxu0 0.0
    %139 = vmatpush.msra.mxu0 0.0
    %140 = vmatpush.msra.mxu0 0.0
    %141 = vmatpush.msra.mxu0 0.0
    %142 = vmatpush.msra.mxu0 0.0
    %143 = vmatpush.msra.mxu0 0.0
    %144 = vmatpush.msra.mxu0 0.0
    %145 = vmatpush.msra.mxu0 0.0
    %146 = vmatpush.msra.mxu0 %v79
    %147 = vmatpush.msra.mxu0 %v75
    %148 = vmatpush.msra.mxu0 %v71
    %149 = vmatpush.msra.mxu0 %v67
    %150 = vmatmul.f32.gmra.mxu0 %v83
    %v151 = vpop.f32.mrf.mxu0
    %v152 = vadd.f32 0.0, %v151
    %153 = vmatmul.f32.gmra.mxu0 %v86
    %v154 = vpop.f32.mrf.mxu0
    %v155 = vadd.f32 0.0, %v154
    %156 = vdwg.mxu0
    %157 = vmatpush.msra.mxu0 0.0
    %158 = vmatpush.msra.mxu0 0.0
    %159 = vmatpush.msra.mxu0 0.0
    %160 = vmatpush.msra.mxu0 0.0
    %161 = vmatpush.msra.mxu0 0.0
    %162 = vmatpush.msra.mxu0 0.0
    %163 = vmatpush.msra.mxu0 0.0
    %164 = vmatpush.msra.mxu0 0.0
    %165 = vmatpush.msra.mxu0 0.0
    %166 = vmatpush.msra.mxu0 0.0
    %167 = vmatpush.msra.mxu0 0.0
    %168 = vmatpush.msra.mxu0 0.0
    %169 = vmatpush.msra.mxu0 %v80
    %170 = vmatpush.msra.mxu0 %v76
    %171 = vmatpush.msra.mxu0 %v72
    %172 = vmatpush.msra.mxu0 %v68
    %173 = vmatmul.f32.gmra.mxu0 %v83
    %v174 = vpop.f32.mrf.mxu0
    %v175 = vadd.f32 0.0, %v174
    %176 = vmatmul.f32.gmra.mxu0 %v86
    %v177 = vpop.f32.mrf.mxu0
    %v178 = vadd.f32 0.0, %v177
    %179 = vdwg.mxu0
    %v181 = vsel %vm81, %v45, 0
    %v184 = vsel %vm81, %v46, 0
    %186 = vmatpush.msra.mxu0 0.0
    %187 = vmatpush.msra.mxu0 0.0
    %188 = vmatpush.msra.mxu0 0.0
    %189 = vmatpush.msra.mxu0 0.0
    %190 = vmatpush.msra.mxu0 0.0
    %191 = vmatpush.msra.mxu0 0.0
    %192 = vmatpush.msra.mxu0 0.0
    %193 = vmatpush.msra.mxu0 0.0
    %194 = vmatpush.msra.mxu0 0.0
    %195 = vmatpush.msra.mxu0 0.0
    %196 = vmatpush.msra.mxu0 0.0
    %197 = vmatpush.msra.mxu0 0.0
    %198 = vmatpush.msra.mxu0 %v59
    %199 = vmatpush.msra.mxu0 %v55
    %200 = vmatpush.msra.mxu0 %v51
    %201 = vmatpush.msra.mxu0 %v47
    %202 = vmatmul.f32.gmra.mxu0 %v181
    %v203 = vpop.f32.mrf.mxu0
    %v204 = vadd.f32 %v106, %v203
    %205 = vmatmul.f32.gmra.mxu0 %v184
    %v206 = vpop.f32.mrf.mxu0
    %v207 = vadd.f32 %v109, %v206
    %208 = vdwg.mxu0
    %209 = vmatpush.msra.mxu0 0.0
    %210 = vmatpush.msra.mxu0 0.0
    %211 = vmatpush.msra.mxu0 0.0
    %212 = vmatpush.msra.mxu0 0.0
    %213 = vmatpush.msra.mxu0 0.0
    %214 = vmatpush.msra.mxu0 0.0
    %215 = vmatpush.msra.mxu0 0.0
    %216 = vmatpush.msra.mxu0 0.0
    %217 = vmatpush.msra.mxu0 0.0
    %218 = vmatpush.msra.mxu0 0.0
    %219 = vmatpush.msra.mxu0 0.0
    %220 = vmatpush.msra.mxu0 0.0
    %221 = vmatpush.msra.mxu0 %v60
    %222 = vmatpush.msra.mxu0 %v56
    %223 = vmatpush.msra.mxu0 %v52
    %224 = vmatpush.msra.mxu0 %v48
    %225 = vmatmul.f32.gmra.mxu0 %v181
    %v226 = vpop.f32.mrf.mxu0
    %v227 = vadd.f32 %v129, %v226
    %228 = vmatmul.f32.gmra.mxu0 %v184
    %v229 = vpop.f32.mrf.mxu0
    %v230 = vadd.f32 %v132, %v229
    %231 = vdwg.mxu0
    %232 = vmatpush.msra.mxu0 0.0
    %233 = vmatpush.msra.mxu0 0.0
    %234 = vmatpush.msra.mxu0 0.0
    %235 = vmatpush.msra.mxu0 0.0
    %236 = vmatpush.msra.mxu0 0.0
    %237 = vmatpush.msra.mxu0 0.0
    %238 = vmatpush.msra.mxu0 0.0
    %239 = vmatpush.msra.mxu0 0.0
    %240 = vmatpush.msra.mxu0 0.0
    %241 = vmatpush.msra.mxu0 0.0
    %242 = vmatpush.msra.mxu0 0.0
    %243 = vmatpush.msra.mxu0 0.0
    %244 = vmatpush.msra.mxu0 %v61
    %245 = vmatpush.msra.mxu0 %v57
    %246 = vmatpush.msra.mxu0 %v53
    %247 = vmatpush.msra.mxu0 %v49
    %248 = vmatmul.f32.gmra.mxu0 %v181
    %v249 = vpop.f32.mrf.mxu0
    %v250 = vadd.f32 %v152, %v249
    %251 = vmatmul.f32.gmra.mxu0 %v184
    %v252 = vpop.f32.mrf.mxu0
    %v253 = vadd.f32 %v155, %v252
    %254 = vdwg.mxu0
    %255 = vmatpush.msra.mxu0 0.0
    %256 = vmatpush.msra.mxu0 0.0
    %257 = vmatpush.msra.mxu0 0.0
    %258 = vmatpush.msra.mxu0 0.0
    %259 = vmatpush.msra.mxu0 0.0
    %260 = vmatpush.msra.mxu0 0.0
    %261 = vmatpush.msra.mxu0 0.0
    %262 = vmatpush.msra.mxu0 0.0
    %263 = vmatpush.msra.mxu0 0.0
    %264 = vmatpush.msra.mxu0 0.0
    %265 = vmatpush.msra.mxu0 0.0
    %266 = vmatpush.msra.mxu0 0.0
    %267 = vmatpush.msra.mxu0 %v62
    %268 = vmatpush.msra.mxu0 %v58
    %269 = vmatpush.msra.mxu0 %v54
    %270 = vmatpush.msra.mxu0 %v50
    %271 = vmatmul.f32.gmra.mxu0 %v181
    %v272 = vpop.f32.mrf.mxu0
    %v273 = vadd.f32 %v175, %v272
    %274 = vmatmul.f32.gmra.mxu0 %v184
    %v275 = vpop.f32.mrf.mxu0
    %v276 = vadd.f32 %v178, %v275
    %277 = vdwg.mxu0
    %v278 = vld [vmem:[%s4] sm:$0xf]
    %v280 = vperm.slane %v278, 0
    %v281 = vperm.slane %v278, 1
    %v282 = vperm.slane %v278, 2
    %v283 = vperm.slane %v278, 3
    %v288 = vadd.f32 %v204, %v280
    %v289 = vadd.f32 %v227, %v281
    %v290 = vadd.f32 %v250, %v282
    %v291 = vadd.f32 %v273, %v283
    %v292 = vadd.f32 %v207, %v280
    %v293 = vadd.f32 %v230, %v281
    %v294 = vadd.f32 %v253, %v282
    %v295 = vadd.f32 %v276, %v283
    %v296 = vxor.u32 %v288, 2147483648
    %v297 = vxor.u32 %v292, 2147483648
    %v298 = vmul.f32 %v296, 1.442695
    %v299 = vpow.pop %v298
    %v300 = vmul.f32 %v297, 1.442695
    %v301 = vpow.pop %v300
    %v302 = vadd.f32 %v299, 1.0
    %v303 = vadd.f32 %v301, 1.0
    %v304 = vrcp.pop %v302
    %v305 = vmul.f32 %v302, %v304
    %v306 = vsub.f32 1.0, %v305
    %v307 = vmul.f32 %v304, %v306
    %v308 = vadd.f32 %v304, %v307
    %vm309 = vweird.f32 %v302
    %vm310 = vweird.f32 %v304
    %vm311 = vmor %vm309, %vm310
    %v312 = vsel %vm311, %v304, %v308
    %v313 = vand.u32 2147483647, %v302
    %vm314 = vcmp.eq.f32.partialorder %v313, 8.507059e+37
    %v315 = vand.u32 %v302, 2147483648
    %v316 = vor.u32 1.1754944e-38, %v315
    %v317 = vsel %vm314, %v316, %v312
    %v318 = vmul.f32 1.0, %v317
    %v319 = vrcp.pop %v303
    %v320 = vmul.f32 %v303, %v319
    %v321 = vsub.f32 1.0, %v320
    %v322 = vmul.f32 %v319, %v321
    %v323 = vadd.f32 %v319, %v322
    %vm324 = vweird.f32 %v303
    %vm325 = vweird.f32 %v319
    %vm326 = vmor %vm324, %vm325
    %v327 = vsel %vm326, %v319, %v323
    %v328 = vand.u32 2147483647, %v303
    %vm329 = vcmp.eq.f32.partialorder %v328, 8.507059e+37
    %v330 = vand.u32 %v303, 2147483648
    %v331 = vor.u32 1.1754944e-38, %v330
    %v332 = vsel %vm329, %v331, %v327
    %v333 = vmul.f32 1.0, %v332
    %v334 = vmul.f32 %v318, %v318
    %v335 = vmul.f32 %v333, %v333
    %v336 = vld [vmem:[%s5] sm:$0xff]
    %v337 = vld [vmem:[%s5 + $0x8] sm:$0xff]
    %v338 = vld [vmem:[%s5 + $0x10] sm:$0xff]
    %v339 = vld [vmem:[%s5 + $0x18] sm:$0xff]
    %v340 = vld [vmem:[%s5 + $0x20] sm:$0xff]
    %v341 = vld [vmem:[%s5 + $0x28] sm:$0xff]
    %v342 = vld [vmem:[%s5 + $0x30] sm:$0xff]
    %v343 = vld [vmem:[%s5 + $0x38] sm:$0xff]
    %v344 = vld [vmem:[%s5 + $0x40] sm:$0xff]
    %v345 = vld [vmem:[%s5 + $0x48] sm:$0xff]
    %v346 = vld [vmem:[%s5 + $0x50] sm:$0xff]
    %v347 = vld [vmem:[%s5 + $0x58] sm:$0xff]
    %v348 = vld [vmem:[%s5 + $0x60] sm:$0xff]
    %v349 = vld [vmem:[%s5 + $0x68] sm:$0xff]
    %v350 = vld [vmem:[%s5 + $0x70] sm:$0xff]
    %v351 = vld [vmem:[%s5 + $0x78] sm:$0xff]
    %352 = vmatpush.msra.mxu0 %v351
    %353 = vmatpush.msra.mxu0 %v350
    %354 = vmatpush.msra.mxu0 %v349
    %355 = vmatpush.msra.mxu0 %v348
    %356 = vmatpush.msra.mxu0 %v347
    %357 = vmatpush.msra.mxu0 %v346
    %358 = vmatpush.msra.mxu0 %v345
    %359 = vmatpush.msra.mxu0 %v344
    %360 = vmatpush.msra.mxu0 %v343
    %361 = vmatpush.msra.mxu0 %v342
    %362 = vmatpush.msra.mxu0 %v341
    %363 = vmatpush.msra.mxu0 %v340
    %364 = vmatpush.msra.mxu0 %v339
    %365 = vmatpush.msra.mxu0 %v338
    %366 = vmatpush.msra.mxu0 %v337
    %367 = vmatpush.msra.mxu0 %v336
    %368 = vmatmul.f32.gmra.mxu0 %v334
    %v369 = vpop.f32.mrf.mxu0
    %v370 = vadd.f32 0.0, %v369
    %371 = vmatmul.f32.gmra.mxu0 %v335
    %v372 = vpop.f32.mrf.mxu0
    %v373 = vadd.f32 0.0, %v372
    %374 = vdwg.mxu0
    %v375 = vld [vmem:[%s6] sm:$0xff]
    %v376 = vld [vmem:[%s6 + $0x8] sm:$0xff]
    %vm377 = vcmask 130048
    %v379 = vsel %vm377, %v370, 0
    %v382 = vsel %vm377, %v373, 0
    %384 = vmatpush.msra.mxu0 0.0
    %385 = vmatpush.msra.mxu0 0.0
    %386 = vmatpush.msra.mxu0 0.0
    %387 = vmatpush.msra.mxu0 0.0
    %388 = vmatpush.msra.mxu0 0.0
    %389 = vmatpush.msra.mxu0 0.0
    %390 = vmatpush.msra.mxu0 0.0
    %391 = vmatpush.msra.mxu0 0.0
    %392 = vmatpush.msra.mxu0 0.0
    %393 = vmatpush.msra.mxu0 0.0
    %394 = vmatpush.msra.mxu0 0.0
    %395 = vmatpush.msra.mxu0 0.0
    %396 = vmatpush.msra.mxu0 0.0
    %397 = vmatpush.msra.mxu0 0.0
    %398 = vmatpush.msra.mxu0 %v376
    %399 = vmatpush.msra.mxu0 %v375
    %400 = vmatmul.f32.gmra.mxu0 %v379
    %v401 = vpop.f32.mrf.mxu0
    %v402 = vadd.f32 0.0, %v401
    %403 = vmatmul.f32.gmra.mxu0 %v382
    %v404 = vpop.f32.mrf.mxu0
    %v405 = vadd.f32 0.0, %v404
    %406 = vdwg.mxu0
    %v407 = vmax.f32 %v402, 1e-24
    %v408 = vmax.f32 %v405, 1e-24
    %v409 = vrsqrt.pop %v407
    %v410 = vmul.f32 %v409, %v407
    %v411 = vmul.f32 %v410, %v409
    %v412 = vmul.f32 0.5, %v411
    %v413 = vsub.f32 1.5, %v412
    %v414 = vmul.f32 %v409, %v413
    %vm415 = vweird.f32 %v407
    %vm416 = vweird.f32 %v409
    %vm417 = vmor %vm415, %vm416
    %v418 = vsel %vm417, %v409, %v414
    %v419 = vrsqrt.pop %v408
    %v420 = vmul.f32 %v419, %v408
    %v421 = vmul.f32 %v420, %v419
    %v422 = vmul.f32 0.5, %v421
    %v423 = vsub.f32 1.5, %v422
    %v424 = vmul.f32 %v419, %v423
    %vm425 = vweird.f32 %v408
    %vm426 = vweird.f32 %v419
    %vm427 = vmor %vm425, %vm426
    %v428 = vsel %vm427, %v419, %v424
    %v429 = vmul.f32 %v318, %v418
    %v430 = vmul.f32 %v333, %v428
    %v431 = vmax.f32 %v289, %v290
    %v432 = vmax.f32 %v293, %v294
    %433 = vrot.lane.b32.xlu0 %v431, 64
    %v434 = vpop.permute.xlu0 %433
    %435 = vrot.lane.b32.xlu0 %v432, 64
    %v436 = vpop.permute.xlu0 %435
    %v437 = vlaneseq
    %v438 = vand.u32 %v437, 127
    %v439 = vmax.f32 %v431, %v434
    %v440 = vmax.f32 %v432, %v436
    %441 = vrot.lane.b32.xlu0 %v439, 32
    %v442 = vpop.permute.xlu0 %441
    %443 = vrot.lane.b32.xlu0 %v440, 32
    %v444 = vpop.permute.xlu0 %443
    %v445 = vmax.f32 %v439, %v442
    %v446 = vmax.f32 %v440, %v444
    %v447 = vsub.f32 %v289, %v445
    %v448 = vsub.f32 %v290, %v445
    %v449 = vsub.f32 %v293, %v446
    %v450 = vsub.f32 %v294, %v446
    %v451 = vmul.f32 %v447, 1.442695
    %v452 = vpow.pop %v451
    %v453 = vmul.f32 %v448, 1.442695
    %v454 = vpow.pop %v453
    %v455 = vmul.f32 %v449, 1.442695
    %v456 = vpow.pop %v455
    %v457 = vmul.f32 %v450, 1.442695
    %v458 = vpow.pop %v457
    %v459 = vadd.f32 %v452, %v454
    %v460 = vadd.f32 %v456, %v458
    %461 = vrot.lane.b32.xlu0 %v459, 64
    %v462 = vpop.permute.xlu0 %461
    %463 = vrot.lane.b32.xlu0 %v460, 64
    %v464 = vpop.permute.xlu0 %463
    %v465 = vadd.f32 %v459, %v462
    %v466 = vadd.f32 %v460, %v464
    %467 = vrot.lane.b32.xlu0 %v465, 32
    %v468 = vpop.permute.xlu0 %467
    %469 = vrot.lane.b32.xlu0 %v466, 32
    %v470 = vpop.permute.xlu0 %469
    %v471 = vadd.f32 %v465, %v468
    %v472 = vadd.f32 %v466, %v470
    %v473 = vrcp.pop %v471
    %v474 = vmul.f32 %v471, %v473
    %v475 = vsub.f32 1.0, %v474
    %v476 = vmul.f32 %v473, %v475
    %v477 = vadd.f32 %v473, %v476
    %vm478 = vweird.f32 %v471
    %vm479 = vweird.f32 %v473
    %vm480 = vmor %vm478, %vm479
    %v481 = vsel %vm480, %v473, %v477
    %v482 = vand.u32 2147483647, %v471
    %vm483 = vcmp.eq.f32.partialorder %v482, 8.507059e+37
    %v484 = vand.u32 %v471, 2147483648
    %v485 = vor.u32 1.1754944e-38, %v484
    %v486 = vsel %vm483, %v485, %v481
    %v487 = vmul.f32 %v452, %v486
    %v488 = vmul.f32 %v454, %v486
    %v489 = vrcp.pop %v472
    %v490 = vmul.f32 %v472, %v489
    %v491 = vsub.f32 1.0, %v490
    %v492 = vmul.f32 %v489, %v491
    %v493 = vadd.f32 %v489, %v492
    %vm494 = vweird.f32 %v472
    %vm495 = vweird.f32 %v489
    %vm496 = vmor %vm494, %vm495
    %v497 = vsel %vm496, %v489, %v493
    %v498 = vand.u32 2147483647, %v472
    %vm499 = vcmp.eq.f32.partialorder %v498, 8.507059e+37
    %v500 = vand.u32 %v472, 2147483648
    %v501 = vor.u32 1.1754944e-38, %v500
    %v502 = vsel %vm499, %v501, %v497
    %v503 = vmul.f32 %v456, %v502
    %v504 = vmul.f32 %v458, %v502
    %v505 = vld [vmem:[%s7] ss:$2 sm:$0x3]
    %v507 = vperm.slane %v505, 0
    %v508 = vperm.slane %v505, 1
    %v511 = vmul.f32 %v487, %v507
    %v512 = vmul.f32 %v488, %v508
    %v513 = vmul.f32 %v503, %v507
    %v514 = vmul.f32 %v504, %v508
    %s515 = scalar_lea.vmem %s7, 1
    %v516 = vld [vmem:[%s515] ss:$2 sm:$0x3]
    %v518 = vperm.slane %v516, 0
    %v519 = vperm.slane %v516, 1
    %v522 = vmul.f32 %v487, %v518
    %v523 = vmul.f32 %v488, %v519
    %v524 = vmul.f32 %v503, %v518
    %v525 = vmul.f32 %v504, %v519
    %v526 = vadd.f32 %v511, %v512
    %v527 = vadd.f32 %v513, %v514
    %v528 = vadd.f32 %v522, %v523
    %v529 = vadd.f32 %v524, %v525
    %530 = vrot.lane.b32.xlu0 %v526, 64
    %v531 = vpop.permute.xlu0 %530
    %532 = vrot.lane.b32.xlu0 %v527, 64
    %v533 = vpop.permute.xlu0 %532
    %v534 = vadd.f32 %v526, %v531
    %v535 = vadd.f32 %v527, %v533
    %536 = vrot.lane.b32.xlu0 %v528, 64
    %v537 = vpop.permute.xlu0 %536
    %538 = vrot.lane.b32.xlu0 %v529, 64
    %v539 = vpop.permute.xlu0 %538
    %v540 = vadd.f32 %v528, %v537
    %v541 = vadd.f32 %v529, %v539
    %542 = vrot.lane.b32.xlu0 %v534, 32
    %v543 = vpop.permute.xlu0 %542
    %544 = vrot.lane.b32.xlu0 %v535, 32
    %v545 = vpop.permute.xlu0 %544
    %v546 = vadd.f32 %v534, %v543
    %v547 = vadd.f32 %v535, %v545
    %548 = vrot.lane.b32.xlu0 %v540, 32
    %v549 = vpop.permute.xlu0 %548
    %550 = vrot.lane.b32.xlu0 %v541, 32
    %v551 = vpop.permute.xlu0 %550
    %v552 = vadd.f32 %v540, %v549
    %v553 = vadd.f32 %v541, %v551
    %556 = vrot.lane.b32.xlu0 %v291, 96
    %v557 = vpop.permute.xlu0 %556
    %558 = vrot.lane.b32.xlu0 %v295, 96
    %v559 = vpop.permute.xlu0 %558
    %v562 = vmax.f32 %v291, %v557
    %v563 = vmax.f32 %v295, %v559
    %564 = vrot.lane.b32.xlu0 %v291, 64
    %v565 = vpop.permute.xlu0 %564
    %566 = vrot.lane.b32.xlu0 %v295, 64
    %v567 = vpop.permute.xlu0 %566
    %v570 = vmax.f32 %v562, %v565
    %v571 = vmax.f32 %v563, %v567
    %v572 = vsub.f32 %v291, %v570
    %v573 = vsub.f32 %v295, %v571
    %v574 = vmul.f32 %v572, 1.442695
    %v575 = vpow.pop %v574
    %v576 = vmul.f32 %v573, 1.442695
    %v577 = vpow.pop %v576
    %580 = vrot.lane.b32.xlu0 %v570, 32
    %v581 = vpop.permute.xlu0 %580
    %582 = vrot.lane.b32.xlu0 %v571, 32
    %v583 = vpop.permute.xlu0 %582
    %v586 = vsub.f32 %v291, %v581
    %v587 = vsub.f32 %v295, %v583
    %v588 = vmul.f32 %v586, 1.442695
    %v589 = vpow.pop %v588
    %v590 = vmul.f32 %v587, 1.442695
    %v591 = vpow.pop %v590
    %592 = vrot.lane.b32.xlu0 %v570, 64
    %v593 = vpop.permute.xlu0 %592
    %594 = vrot.lane.b32.xlu0 %v571, 64
    %v595 = vpop.permute.xlu0 %594
    %v598 = vsub.f32 %v291, %v593
    %v599 = vsub.f32 %v295, %v595
    %v600 = vmul.f32 %v598, 1.442695
    %v601 = vpow.pop %v600
    %v602 = vmul.f32 %v599, 1.442695
    %v603 = vpow.pop %v602
    %v604 = vmul.f32 %v601, 2.0
    %v605 = vmul.f32 %v603, 2.0
    %608 = vrot.lane.b32.xlu0 %v604, 96
    %v609 = vpop.permute.xlu0 %608
    %610 = vrot.lane.b32.xlu0 %v605, 96
    %v611 = vpop.permute.xlu0 %610
    %v614 = vadd.f32 %v589, %v609
    %v615 = vadd.f32 %v591, %v611
    %618 = vrot.lane.b32.xlu0 %v589, 96
    %v619 = vpop.permute.xlu0 %618
    %620 = vrot.lane.b32.xlu0 %v591, 96
    %v621 = vpop.permute.xlu0 %620
    %v624 = vadd.f32 %v575, %v619
    %v625 = vadd.f32 %v577, %v621
    %628 = vrot.lane.b32.xlu0 %v601, 64
    %v629 = vpop.permute.xlu0 %628
    %630 = vrot.lane.b32.xlu0 %v603, 64
    %v631 = vpop.permute.xlu0 %630
    %v634 = vadd.f32 %v624, %v629
    %v635 = vadd.f32 %v625, %v631
    %638 = vrot.lane.b32.xlu0 %v634, 32
    %v639 = vpop.permute.xlu0 %638
    %640 = vrot.lane.b32.xlu0 %v635, 32
    %v641 = vpop.permute.xlu0 %640
    %v644 = vrcp.pop %v639
    %v645 = vmul.f32 %v639, %v644
    %v646 = vsub.f32 1.0, %v645
    %v647 = vmul.f32 %v644, %v646
    %v648 = vadd.f32 %v644, %v647
    %vm649 = vweird.f32 %v639
    %vm650 = vweird.f32 %v644
    %vm651 = vmor %vm649, %vm650
    %v652 = vsel %vm651, %v644, %v648
    %v653 = vand.u32 2147483647, %v639
    %vm654 = vcmp.eq.f32.partialorder %v653, 8.507059e+37
    %v655 = vand.u32 %v639, 2147483648
    %v656 = vor.u32 1.1754944e-38, %v655
    %v657 = vsel %vm654, %v656, %v652
    %v658 = vmul.f32 %v614, %v657
    %v659 = vrcp.pop %v641
    %v660 = vmul.f32 %v641, %v659
    %v661 = vsub.f32 1.0, %v660
    %v662 = vmul.f32 %v659, %v661
    %v663 = vadd.f32 %v659, %v662
    %vm664 = vweird.f32 %v641
    %vm665 = vweird.f32 %v659
    %vm666 = vmor %vm664, %vm665
    %v667 = vsel %vm666, %v659, %v663
    %v668 = vand.u32 2147483647, %v641
    %vm669 = vcmp.eq.f32.partialorder %v668, 8.507059e+37
    %v670 = vand.u32 %v641, 2147483648
    %v671 = vor.u32 1.1754944e-38, %v670
    %v672 = vsel %vm669, %v671, %v667
    %v673 = vmul.f32 %v615, %v672
    %v674 = vmul.f32 %v546, %v546
    %v675 = vmul.f32 %v547, %v547
    %v676 = vmul.f32 %v552, %v552
    %v677 = vmul.f32 %v553, %v553
    %v678 = vadd.f32 %v674, %v676
    %v679 = vadd.f32 %v675, %v677
    %v680 = vmax.f32 %v678, 1e-30
    %v681 = vmax.f32 %v679, 1e-30
    %v682 = vrsqrt.pop %v680
    %v683 = vmul.f32 %v682, %v680
    %v684 = vmul.f32 %v683, %v682
    %v685 = vmul.f32 0.5, %v684
    %v686 = vsub.f32 1.5, %v685
    %v687 = vmul.f32 %v682, %v686
    %vm688 = vweird.f32 %v680
    %vm689 = vweird.f32 %v682
    %vm690 = vmor %vm688, %vm689
    %v691 = vsel %vm690, %v682, %v687
    %v692 = vrsqrt.pop %v681
    %v693 = vmul.f32 %v692, %v681
    %v694 = vmul.f32 %v693, %v692
    %v695 = vmul.f32 0.5, %v694
    %v696 = vsub.f32 1.5, %v695
    %v697 = vmul.f32 %v692, %v696
    %vm698 = vweird.f32 %v681
    %vm699 = vweird.f32 %v692
    %vm700 = vmor %vm698, %vm699
    %v701 = vsel %vm700, %v692, %v697
    %704 = vrot.lane.b32.xlu0 %v691, 32
    %v705 = vpop.permute.xlu0 %704
    %706 = vrot.lane.b32.xlu0 %v701, 32
    %v707 = vpop.permute.xlu0 %706
    %v710 = vmul.f32 %v658, %v705
    %v711 = vmul.f32 %v673, %v707
    %714 = vrot.lane.b32.xlu0 %v546, 32
    %v715 = vpop.permute.xlu0 %714
    %716 = vrot.lane.b32.xlu0 %v547, 32
    %v717 = vpop.permute.xlu0 %716
    %v720 = vmul.f32 %v710, %v715
    %v721 = vmul.f32 %v711, %v717
    %724 = vrot.lane.b32.xlu0 %v552, 32
    %v725 = vpop.permute.xlu0 %724
    %726 = vrot.lane.b32.xlu0 %v553, 32
    %v727 = vpop.permute.xlu0 %726
    %v730 = vmul.f32 %v710, %v725
    %v731 = vmul.f32 %v711, %v727
    %734 = vrot.lane.b32.xlu0 %v658, 96
    %v735 = vpop.permute.xlu0 %734
    %736 = vrot.lane.b32.xlu0 %v673, 96
    %v737 = vpop.permute.xlu0 %736
    %744 = vrot.lane.b32.xlu0 %v487, 32
    %v745 = vpop.permute.xlu0 %744
    %746 = vrot.lane.b32.xlu0 %v488, 32
    %v747 = vpop.permute.xlu0 %746
    %748 = vrot.lane.b32.xlu0 %v503, 32
    %v749 = vpop.permute.xlu0 %748
    %750 = vrot.lane.b32.xlu0 %v504, 32
    %v751 = vpop.permute.xlu0 %750
    %v752 = vsel %vm81, %v745, %v747
    %v753 = vsel %vm81, %v749, %v751
    %762 = vrot.lane.b32.xlu0 %v730, 32
    %v763 = vpop.permute.xlu0 %762
    %764 = vrot.lane.b32.xlu0 %v731, 32
    %v765 = vpop.permute.xlu0 %764
    %v768 = vsel %vm81, %v735, %v745
    %v769 = vsel %vm81, %v737, %v749
    %v770 = vsel %vm81, %v747, %v720
    %v771 = vsel %vm81, %v751, %v721
    %vm772 = vcmask 523264
    %v773 = vsel %vm772, %v770, %v763
    %v774 = vsel %vm772, %v771, %v765
    %775 = vst [vmem:[%s8] sm:$0xff] %v429
    %776 = vst [vmem:[%s8 + $0x8] sm:$0xff] %v768
    %777 = vst [vmem:[%s8 + $0x10] sm:$0xff] %v752
    %vm778 = vcmask 785408
    %779 = vst.msk [vmem:[%s8 + $0x18] sm:$0xff] %vm778, %v773
    %780 = vst [vmem:[%s8 + $0x20] sm:$0xff] %v430
    %781 = vst [vmem:[%s8 + $0x28] sm:$0xff] %v769
    %782 = vst [vmem:[%s8 + $0x30] sm:$0xff] %v753
    %783 = vst.msk [vmem:[%s8 + $0x38] sm:$0xff] %vm778, %v774
    // Predicated region
    $region38: #{chimera_magphasebook_forward.5} parent=1 // pred_check
      _
    $region39: #{chimera_magphasebook_forward.5} parent=1 // pred_check_branch
      %785 = sbr.rel (0) target = $region41
    $region40: #{chimera_magphasebook_forward.5} parent=1 // pred_region
      _
    $region41: #{chimera_magphasebook_forward.5} parent=1 // pred_fallthru
      _
    // Predicated region
    $region42: #{chimera_magphasebook_forward.5} parent=1 // pred_check
      _
    $region43: #{chimera_magphasebook_forward.5} parent=1 // pred_check_branch
      %787 = sbr.rel (0) target = $region45
    $region44: #{chimera_magphasebook_forward.5} parent=1 // pred_region
      _
    $region45: #{chimera_magphasebook_forward.5} parent=1 // pred_fallthru
      _
    %788 = vsyncpa [#allocation3], 1

// kernel: chimera_magphasebook_forward.3
$region0: #{chimera_magphasebook_forward.3}
  #allocation0 [shape = 'u32[]', space=smem, size = 0x4, offset = 0x4, fixed_abs, tag = 'smem constant byte address 0x4 - core index']
  #allocation1 [shape = 'u32[72,128]{1,0:T(1,128)}', space=vmem, size = 0x9000, scoped, tag = 'internal scratch']
  #allocation2 [shape = 'f32[2,64]{1,0:T(2,128)}', space=vmem, size = 0x400, scoped, tag = 'scratch operand']
  #allocation3 [shape = 'f32[2,64]{1,0:T(2,128)}', space=vmem, size = 0x400, scoped, tag = 'scratch operand']
  %s0 = inlined_call_operand.vmem [shape: f32[8,2,128], index: 0, kind: input, shape index: {}]
  %s1 = inlined_call_operand.vmem [shape: f32[8,2,128], index: 1, kind: input, shape index: {}]
  %s2 = inlined_call_operand.hbm [shape: f32[64,256], index: 2, kind: input, shape index: {}]
  %s3 = inlined_call_operand.vmem [shape: f32[8,2,32], index: 3, kind: output, shape index: {0}]
  %s4 = inlined_call_operand.vmem [shape: f32[8,2,32], index: 4, kind: output, shape index: {1}]
  %s5 = inlined_call_operand.vmem [shape: f32[2,2,32], index: 5, kind: output, shape index: {2}]
  %s6 = inlined_call_operand.vmem [shape: f32[2,2,32], index: 6, kind: output, shape index: {3}]
  %7 = xla_tuple %s3, %s4, %s5, %s6
  %s8 = sld [smem:[#allocation0]]
  $region58: #{chimera_magphasebook_forward.3} parent=0
    _
  %s10 = ssub.s32 1, %s8
  %s11 = scalar_select 0, %s10, %s8
  $region1: #{chimera_magphasebook_forward.3} parent=0
    #allocation4 [shape = 'u8[65536]{0}', space=vmem, size = 0x10000, scoped, tag = 'input window, operand 2, single buffered']
    #allocation5 [shape = 's32[1]{0}', space=sflag, size = 0x4, scoped, tag = 'scoped memory for chimera_magphasebook_forward.3']
    %12 = vsyncpa [#allocation5], 0
    // Predicated region
    $region2: #{chimera_magphasebook_forward.3} parent=1 // pred_check
      _
    $region3: #{chimera_magphasebook_forward.3} parent=1 // pred_check_branch
      %14 = sbr.rel (0) target = $region5
    $region4: #{chimera_magphasebook_forward.3} parent=1 // pred_region
      _
    $region5: #{chimera_magphasebook_forward.3} parent=1 // pred_fallthru
      _
    // Predicated region
    $region6: #{chimera_magphasebook_forward.3} parent=1 // pred_check
      _
    $region7: #{chimera_magphasebook_forward.3} parent=1 // pred_check_branch
      %16 = sbr.rel (0) target = $region9
    $region8: #{chimera_magphasebook_forward.3} parent=1 // pred_region
      %s17 = ssub.s32 0, 0
      %s18 = smul.u32 8, %s17
      %p19 = scmp.lt.s32.totalorder %s18, 7
      %s20 = scalar_select %p19, %s18, 7
      %s21 = smul.addr %s20, 2
      %s22 = scalar_lea.vmem %s1, %s21
      %s23 = ssub.s32 0, 0
      %s24 = smul.u32 8, %s23
    $region9: #{chimera_magphasebook_forward.3} parent=1 // pred_fallthru
      _
    // Predicated region
    $region10: #{chimera_magphasebook_forward.3} parent=1 // pred_check
      _
    $region11: #{chimera_magphasebook_forward.3} parent=1 // pred_check_branch
      %26 = sbr.rel (0) target = $region13
    $region12: #{chimera_magphasebook_forward.3} parent=1 // pred_region
      %28 = vsyncadd [#allocation5], 0
      %s29 = sshll.u32 %s2, 4
      %s30 = int_to_ptr.hbm [resolvable:$true] %s29
      %s31 = sshll.u32 [#allocation4], 4
      %s32 = int_to_ptr.vmem [resolvable:$true] %s31
      %37 = dma.hbm_to_vmem [thread:$0]  %s30, 2048, %s32, [#allocation5], 256, 256, 16
    $region13: #{chimera_magphasebook_forward.3} parent=1 // pred_fallthru
      _
    // Predicated region
    $region14: #{chimera_magphasebook_forward.3} parent=1 // pred_check
      _
    $region15: #{chimera_magphasebook_forward.3} parent=1 // pred_check_branch
      %39 = sbr.rel (0) target = $region17
    $region16: #{chimera_magphasebook_forward.3} parent=1 // pred_region
      %41 = dma.done [#allocation5], 2048
    $region17: #{chimera_magphasebook_forward.3} parent=1 // pred_fallthru
      _
    %s42 = ssub.s32 0, 0
    %s43 = smul.u32 8, %s42
    %p44 = scmp.lt.s32.totalorder %s43, 7
    %s45 = scalar_select %p44, %s43, 7
    %s46 = smul.addr %s45, 2
    %s47 = scalar_lea.vmem %s1, %s46
    %s48 = ssub.s32 0, 0
    %s49 = smul.u32 8, %s48
    %p50 = scmp.lt.s32.totalorder %s49, 7
    %s51 = scalar_select %p50, %s49, 7
    %s52 = smul.addr %s51, 2
    %s53 = scalar_lea.vmem %s4, %s52
    %s54 = ssub.s32 0, 0
    %s55 = smul.u32 8, %s54
    %p56 = scmp.lt.s32.totalorder %s55, 7
    %s57 = scalar_select %p56, %s55, 7
    %s58 = smul.addr %s57, 2
    %s59 = scalar_lea.vmem %s1, %s58
    %s60 = ssub.s32 0, 0
    %s61 = smul.u32 8, %s60
    %s62 = ssub.s32 0, 0
    %s63 = smul.u32 8, %s62
    %p64 = scmp.lt.s32.totalorder %s63, 7
    %s65 = scalar_select %p64, %s63, 7
    %s66 = smul.addr %s65, 2
    %s67 = scalar_lea.vmem %s4, %s66
    %s68 = ssub.s32 0, 0
    %s69 = smul.u32 8, %s68
    %p70 = scmp.eq.s32.totalorder 0, 0
    // Predicated region
    $region18: #{chimera_magphasebook_forward.3} parent=1 // pred_check
      %p71 = pneg %p70
    $region19: #{chimera_magphasebook_forward.3} parent=1 // pred_check_branch
      %73 = sbr.rel (%p71) target = $region21
    $region20: #{chimera_magphasebook_forward.3} parent=1 // pred_region
      %vm74 = vcmask 517120
      %75 = vst.msk [vmem:[#allocation2] sm:$0x3] %vm74, 0.0
      %76 = vst.msk [vmem:[#allocation3] sm:$0x3] %vm74, 0.0
    $region21: #{chimera_magphasebook_forward.3} parent=1 // pred_fallthru
      _
    %v77 = vld [vmem:[#allocation4] sm:$0xff]
    %v78 = vld [vmem:[#allocation4 + $0x8] sm:$0xff]
    %v79 = vld [vmem:[#allocation4 + $0x10] sm:$0xff]
    %v80 = vld [vmem:[#allocation4 + $0x18] sm:$0xff]
    %v81 = vld [vmem:[#allocation4 + $0x20] sm:$0xff]
    %v82 = vld [vmem:[#allocation4 + $0x28] sm:$0xff]
    %v83 = vld [vmem:[#allocation4 + $0x30] sm:$0xff]
    %v84 = vld [vmem:[#allocation4 + $0x38] sm:$0xff]
    %v85 = vld [vmem:[#allocation4 + $0x40] sm:$0xff]
    %v86 = vld [vmem:[#allocation4 + $0x48] sm:$0xff]
    %v87 = vld [vmem:[#allocation4 + $0x50] sm:$0xff]
    %v88 = vld [vmem:[#allocation4 + $0x58] sm:$0xff]
    %v89 = vld [vmem:[#allocation4 + $0x60] sm:$0xff]
    %v90 = vld [vmem:[#allocation4 + $0x68] sm:$0xff]
    %v91 = vld [vmem:[#allocation4 + $0x70] sm:$0xff]
    %v92 = vld [vmem:[#allocation4 + $0x78] sm:$0xff]
    %v93 = vld [vmem:[#allocation2] sm:$0x3]
    %v94 = vld [vmem:[#allocation3] sm:$0x3]
    %v95 = vld [vmem:[%s0] sm:$0x3]
    %s96 = scalar_lea.vmem %s59, 14
    %v97 = vld [vmem:[%s96] sm:$0x3]
    %vm98 = vcmask 523264
    %v100 = vsel %vm98, %v93, 0
    %102 = vmatpush.msra.mxu0 0.0
    %103 = vmatpush.msra.mxu0 0.0
    %104 = vmatpush.msra.mxu0 0.0
    %105 = vmatpush.msra.mxu0 0.0
    %106 = vmatpush.msra.mxu0 0.0
    %107 = vmatpush.msra.mxu0 0.0
    %108 = vmatpush.msra.mxu0 0.0
    %109 = vmatpush.msra.mxu0 0.0
    %110 = vmatpush.msra.mxu0 %v91
    %111 = vmatpush.msra.mxu0 %v89
    %112 = vmatpush.msra.mxu0 %v87
    %113 = vmatpush.msra.mxu0 %v85
    %114 = vmatpush.msra.mxu0 %v83
    %115 = vmatpush.msra.mxu0 %v81
    %116 = vmatpush.msra.mxu0 %v79
    %117 = vmatpush.msra.mxu0 %v77
    %118 = vmatmul.f32.gmra.mxu0 %v100
    %v119 = vpop.f32.mrf.mxu0
    %v120 = vadd.f32 0.0, %v119
    %121 = vdwg.mxu0
    %122 = vmatpush.msra.mxu0 0.0
    %123 = vmatpush.msra.mxu0 0.0
    %124 = vmatpush.msra.mxu0 0.0
    %125 = vmatpush.msra.mxu0 0.0
    %126 = vmatpush.msra.mxu0 0.0
    %127 = vmatpush.msra.mxu0 0.0
    %128 = vmatpush.msra.mxu0 0.0
    %129 = vmatpush.msra.mxu0 0.0
    %130 = vmatpush.msra.mxu0 %v92
    %131 = vmatpush.msra.mxu0 %v90
    %132 = vmatpush.msra.mxu0 %v88
    %133 = vmatpush.msra.mxu0 %v86
    %134 = vmatpush.msra.mxu0 %v84
    %135 = vmatpush.msra.mxu0 %v82
    %136 = vmatpush.msra.mxu0 %v80
    %137 = vmatpush.msra.mxu0 %v78
    %138 = vmatmul.f32.gmra.mxu0 %v100
    %v139 = vpop.f32.mrf.mxu0
    %v140 = vadd.f32 0.0, %v139
    %141 = vdwg.mxu0
    %v142 = vadd.f32 %v95, %v120
    %v143 = vadd.f32 %v97, %v140
    %145 = vrot.lane.b32.xlu0 %v143, 32
    %v146 = vpop.permute.xlu0 %145
    %vm148 = vcmask 261120
    %v149 = vsel %vm148, %v142, %v146
    %v150 = vxor.u32 %v149, 2147483648
    %v151 = vmul.f32 %v150, 1.442695
    %v152 = vpow.pop %v151
    %v153 = vadd.f32 %v152, 1.0
    %v154 = vrcp.pop %v153
    %v155 = vmul.f32 %v153, %v154
    %v156 = vsub.f32 1.0, %v155
    %v157 = vmul.f32 %v154, %v156
    %v158 = vadd.f32 %v154, %v157
    %vm159 = vweird.f32 %v153
    %vm160 = vweird.f32 %v154
    %vm161 = vmor %vm159, %vm160
    %v162 = vsel %vm161, %v154, %v158
    %v163 = vand.u32 2147483647, %v153
    %vm164 = vcmp.eq.f32.partialorder %v163, 8.507059e+37
    %v165 = vand.u32 %v153, 2147483648
    %v166 = vor.u32 1.1754944e-38, %v165
    %v167 = vsel %vm164, %v166, %v162
    %v168 = vmul.f32 1.0, %v167
    %170 = vrot.lane.b32.xlu0 %v142, 96
    %v171 = vpop.permute.xlu0 %170
    %v173 = vsel %vm148, %v171, %v143
    %v174 = vxor.u32 %v173, 2147483648
    %v175 = vmul.f32 %v174, 1.442695
    %v176 = vpow.pop %v175
    %v177 = vadd.f32 %v176, 1.0
    %v178 = vrcp.pop %v177
    %v179 = vmul.f32 %v177, %v178
    %v180 = vsub.f32 1.0, %v179
    %v181 = vmul.f32 %v178, %v180
    %v182 = vadd.f32 %v178, %v181
    %vm183 = vweird.f32 %v177
    %vm184 = vweird.f32 %v178
    %vm185 = vmor %vm183, %vm184
    %v186 = vsel %vm185, %v178, %v182
    %v187 = vand.u32 2147483647, %v177
    %vm188 = vcmp.eq.f32.partialorder %v187, 8.507059e+37
    %v189 = vand.u32 %v177, 2147483648
    %v190 = vor.u32 1.1754944e-38, %v189
    %v191 = vsel %vm188, %v190, %v186
    %v192 = vmul.f32 1.0, %v191
    %193 = vrot.lane.b32.xlu0 %v142, 64
    %v194 = vpop.permute.xlu0 %193
    %196 = vrot.lane.b32.xlu0 %v143, 96
    %v197 = vpop.permute.xlu0 %196
    %v199 = vsel %vm148, %v194, %v197
    %v200 = vtanh.pop %v199
    %201 = vrot.lane.b32.xlu0 %v142, 32
    %v202 = vpop.permute.xlu0 %201
    %204 = vrot.lane.b32.xlu0 %v143, 64
    %v205 = vpop.permute.xlu0 %204
    %v207 = vsel %vm148, %v202, %v205
    %v208 = vxor.u32 %v207, 2147483648
    %v209 = vmul.f32 %v208, 1.442695
    %v210 = vpow.pop %v209
    %v211 = vadd.f32 %v210, 1.0
    %v212 = vrcp.pop %v211
    %v213 = vmul.f32 %v211, %v212
    %v214 = vsub.f32 1.0, %v213
    %v215 = vmul.f32 %v212, %v214
    %v216 = vadd.f32 %v212, %v215
    %vm217 = vweird.f32 %v211
    %vm218 = vweird.f32 %v212
    %vm219 = vmor %vm217, %vm218
    %v220 = vsel %vm219, %v212, %v216
    %v221 = vand.u32 2147483647, %v211
    %vm222 = vcmp.eq.f32.partialorder %v221, 8.507059e+37
    %v223 = vand.u32 %v211, 2147483648
    %v224 = vor.u32 1.1754944e-38, %v223
    %v225 = vsel %vm222, %v224, %v220
    %v226 = vmul.f32 1.0, %v225
    %v227 = vmul.f32 %v192, %v94
    %v228 = vmul.f32 %v168, %v200
    %v229 = vadd.f32 %v227, %v228
    %v230 = vtanh.pop %v229
    %v231 = vmul.f32 %v226, %v230
    %vm232 = vcmask 254976
    %233 = vst.msk [vmem:[%s3] sm:$0x3] %vm232, %v231
    %235 = vrot.lane.b32.xlu0 %v231, 96
    %v236 = vpop.permute.xlu0 %235
    %s238 = scalar_lea.vmem %s67, 14
    %239 = vst.msk [vmem:[%s238] sm:$0x3] %vm232, %v236
    %s240 = scalar_lea.vmem %s0, 2
    %v241 = vld [vmem:[%s240] sm:$0x3]
    %s242 = scalar_lea.vmem %s59, 12
    %v243 = vld [vmem:[%s242] sm:$0x3]
    %v244 = vsel %vm98, %v231, 0
    %246 = vmatpush.msra.mxu0 0.0
    %247 = vmatpush.msra.mxu0 0.0
    %248 = vmatpush.msra.mxu0 0.0
    %249 = vmatpush.msra.mxu0 0.0
    %250 = vmatpush.msra.mxu0 0.0
    %251 = vmatpush.msra.mxu0 0.0
    %252 = vmatpush.msra.mxu0 0.0
    %253 = vmatpush.msra.mxu0 0.0
    %254 = vmatpush.msra.mxu0 %v91
    %255 = vmatpush.msra.mxu0 %v89
    %256 = vmatpush.msra.mxu0 %v87
    %257 = vmatpush.msra.mxu0 %v85
    %258 = vmatpush.msra.mxu0 %v83
    %259 = vmatpush.msra.mxu0 %v81
    %260 = vmatpush.msra.mxu0 %v79
    %261 = vmatpush.msra.mxu0 %v77
    %262 = vmatmul.f32.gmra.mxu0 %v244
    %v263 = vpop.f32.mrf.mxu0
    %v264 = vadd.f32 0.0, %v263
    %265 = vdwg.mxu0
    %266 = vmatpush.msra.mxu0 0.0
    %267 = vmatpush.msra.mxu0 0.0
    %268 = vmatpush.msra.mxu0 0.0
    %269 = vmatpush.msra.mxu0 0.0
    %270 = vmatpush.msra.mxu0 0.0
    %271 = vmatpush.msra.mxu0 0.0
    %272 = vmatpush.msra.mxu0 0.0
    %273 = vmatpush.msra.mxu0 0.0
    %274 = vmatpush.msra.mxu0 %v92
    %275 = vmatpush.msra.mxu0 %v90
    %276 = vmatpush.msra.mxu0 %v88
    %277 = vmatpush.msra.mxu0 %v86
    %278 = vmatpush.msra.mxu0 %v84
    %279 = vmatpush.msra.mxu0 %v82
    %280 = vmatpush.msra.mxu0 %v80
    %281 = vmatpush.msra.mxu0 %v78
    %282 = vmatmul.f32.gmra.mxu0 %v244
    %v283 = vpop.f32.mrf.mxu0
    %v284 = vadd.f32 0.0, %v283
    %285 = vdwg.mxu0
    %v286 = vadd.f32 %v241, %v264
    %v287 = vadd.f32 %v243, %v284
    %289 = vrot.lane.b32.xlu0 %v287, 32
    %v290 = vpop.permute.xlu0 %289
    %v292 = vsel %vm148, %v286, %v290
    %v293 = vxor.u32 %v292, 2147483648
    %v294 = vmul.f32 %v293, 1.442695
    %v295 = vpow.pop %v294
    %v296 = vadd.f32 %v295, 1.0
    %v297 = vrcp.pop %v296
    %v298 = vmul.f32 %v296, %v297
    %v299 = vsub.f32 1.0, %v298
    %v300 = vmul.f32 %v297, %v299
    %v301 = vadd.f32 %v297, %v300
    %vm302 = vweird.f32 %v296
    %vm303 = vweird.f32 %v297
    %vm304 = vmor %vm302, %vm303
    %v305 = vsel %vm304, %v297, %v301
    %v306 = vand.u32 2147483647, %v296
    %vm307 = vcmp.eq.f32.partialorder %v306, 8.507059e+37
    %v308 = vand.u32 %v296, 2147483648
    %v309 = vor.u32 1.1754944e-38, %v308
    %v310 = vsel %vm307, %v309, %v305
    %v311 = vmul.f32 1.0, %v310
    %313 = vrot.lane.b32.xlu0 %v286, 96
    %v314 = vpop.permute.xlu0 %313
    %v316 = vsel %vm148, %v314, %v287
    %v317 = vxor.u32 %v316, 2147483648
    %v318 = vmul.f32 %v317, 1.442695
    %v319 = vpow.pop %v318
    %v320 = vadd.f32 %v319, 1.0
    %v321 = vrcp.pop %v320
    %v322 = vmul.f32 %v320, %v321
    %v323 = vsub.f32 1.0, %v322
    %v324 = vmul.f32 %v321, %v323
    %v325 = vadd.f32 %v321, %v324
    %vm326 = vweird.f32 %v320
    %vm327 = vweird.f32 %v321
    %vm328 = vmor %vm326, %vm327
    %v329 = vsel %vm328, %v321, %v325
    %v330 = vand.u32 2147483647, %v320
    %vm331 = vcmp.eq.f32.partialorder %v330, 8.507059e+37
    %v332 = vand.u32 %v320, 2147483648
    %v333 = vor.u32 1.1754944e-38, %v332
    %v334 = vsel %vm331, %v333, %v329
    %v335 = vmul.f32 1.0, %v334
    %336 = vrot.lane.b32.xlu0 %v286, 64
    %v337 = vpop.permute.xlu0 %336
    %339 = vrot.lane.b32.xlu0 %v287, 96
    %v340 = vpop.permute.xlu0 %339
    %v342 = vsel %vm148, %v337, %v340
    %v343 = vtanh.pop %v342
    %344 = vrot.lane.b32.xlu0 %v286, 32
    %v345 = vpop.permute.xlu0 %344
    %347 = vrot.lane.b32.xlu0 %v287, 64
    %v348 = vpop.permute.xlu0 %347
    %v350 = vsel %vm148, %v345, %v348
    %v351 = vxor.u32 %v350, 2147483648
    %v352 = vmul.f32 %v351, 1.442695
    %v353 = vpow.pop %v352
    %v354 = vadd.f32 %v353, 1.0
    %v355 = vrcp.pop %v354
    %v356 = vmul.f32 %v354, %v355
    %v357 = vsub.f32 1.0, %v356
    %v358 = vmul.f32 %v355, %v357
    %v359 = vadd.f32 %v355, %v358
    %vm360 = vweird.f32 %v354
    %vm361 = vweird.f32 %v355
    %vm362 = vmor %vm360, %vm361
    %v363 = vsel %vm362, %v355, %v359
    %v364 = vand.u32 2147483647, %v354
    %vm365 = vcmp.eq.f32.partialorder %v364, 8.507059e+37
    %v366 = vand.u32 %v354, 2147483648
    %v367 = vor.u32 1.1754944e-38, %v366
    %v368 = vsel %vm365, %v367, %v363
    %v369 = vmul.f32 1.0, %v368
    %v370 = vmul.f32 %v335, %v229
    %v371 = vmul.f32 %v311, %v343
    %v372 = vadd.f32 %v370, %v371
    %v373 = vtanh.pop %v372
    %v374 = vmul.f32 %v369, %v373
    %s375 = scalar_lea.vmem %s3, 2
    %376 = vst.msk [vmem:[%s375] sm:$0x3] %vm232, %v374
    %378 = vrot.lane.b32.xlu0 %v374, 96
    %v379 = vpop.permute.xlu0 %378
    %s381 = scalar_lea.vmem %s67, 12
    %382 = vst.msk [vmem:[%s381] sm:$0x3] %vm232, %v379
    %s383 = scalar_lea.vmem %s0, 4
    %v384 = vld [vmem:[%s383] sm:$0x3]
    %s385 = scalar_lea.vmem %s59, 10
    %v386 = vld [vmem:[%s385] sm:$0x3]
    %v387 = vsel %vm98, %v374, 0
    %389 = vmatpush.msra.mxu0 0.0
    %390 = vmatpush.msra.mxu0 0.0
    %391 = vmatpush.msra.mxu0 0.0
    %392 = vmatpush.msra.mxu0 0.0
    %393 = vmatpush.msra.mxu0 0.0
    %394 = vmatpush.msra.mxu0 0.0
    %395 = vmatpush.msra.mxu0 0.0
    %396 = vmatpush.msra.mxu0 0.0
    %397 = vmatpush.msra.mxu0 %v91
    %398 = vmatpush.msra.mxu0 %v89
    %399 = vmatpush.msra.mxu0 %v87
    %400 = vmatpush.msra.mxu0 %v85
    %401 = vmatpush.msra.mxu0 %v83
    %402 = vmatpush.msra.mxu0 %v81
    %403 = vmatpush.msra.mxu0 %v79
    %404 = vmatpush.msra.mxu0 %v77
    %405 = vmatmul.f32.gmra.mxu0 %v387
    %v406 = vpop.f32.mrf.mxu0
    %v407 = vadd.f32 0.0, %v406
    %408 = vdwg.mxu0
    %409 = vmatpush.msra.mxu0 0.0
    %410 = vmatpush.msra.mxu0 0.0
    %411 = vmatpush.msra.mxu0 0.0
    %412 = vmatpush.msra.mxu0 0.0
    %413 = vmatpush.msra.mxu0 0.0
    %414 = vmatpush.msra.mxu0 0.0
    %415 = vmatpush.msra.mxu0 0.0
    %416 = vmatpush.msra.mxu0 0.0
    %417 = vmatpush.msra.mxu0 %v92
    %418 = vmatpush.msra.mxu0 %v90
    %419 = vmatpush.msra.mxu0 %v88
    %420 = vmatpush.msra.mxu0 %v86
    %421 = vmatpush.msra.mxu0 %v84
    %422 = vmatpush.msra.mxu0 %v82
    %423 = vmatpush.msra.mxu0 %v80
    %424 = vmatpush.msra.mxu0 %v78
    %425 = vmatmul.f32.gmra.mxu0 %v387
    %v426 = vpop.f32.mrf.mxu0
    %v427 = vadd.f32 0.0, %v426
    %428 = vdwg.mxu0
    %v429 = vadd.f32 %v384, %v407
    %v430 = vadd.f32 %v386, %v427
    %432 = vrot.lane.b32.xlu0 %v430, 32
    %v433 = vpop.permute.xlu0 %432
    %v435 = vsel %vm148, %v429, %v433
    %v436 = vxor.u32 %v435, 2147483648
    %v437 = vmul.f32 %v436, 1.442695
    %v438 = vpow.pop %v437
    %v439 = vadd.f32 %v438, 1.0
    %v440 = vrcp.pop %v439
    %v441 = vmul.f32 %v439, %v440
    %v442 = vsub.f32 1.0, %v441
    %v443 = vmul.f32 %v440, %v442
    %v444 = vadd.f32 %v440, %v443
    %vm445 = vweird.f32 %v439
    %vm446 = vweird.f32 %v440
    %vm447 = vmor %vm445, %vm446
    %v448 = vsel %vm447, %v440, %v444
    %v449 = vand.u32 2147483647, %v439
    %vm450 = vcmp.eq.f32.partialorder %v449, 8.507059e+37
    %v451 = vand.u32 %v439, 2147483648
    %v452 = vor.u32 1.1754944e-38, %v451
    %v453 = vsel %vm450, %v452, %v448
    %v454 = vmul.f32 1.0, %v453
    %456 = vrot.lane.b32.xlu0 %v429, 96
    %v457 = vpop.permute.xlu0 %456
    %v459 = vsel %vm148, %v457, %v430
    %v460 = vxor.u32 %v459, 2147483648
    %v461 = vmul.f32 %v460, 1.442695
    %v462 = vpow.pop %v461
    %v463 = vadd.f32 %v462, 1.0
    %v464 = vrcp.pop %v463
    %v465 = vmul.f32 %v463, %v464
    %v466 = vsub.f32 1.0, %v465
    %v467 = vmul.f32 %v464, %v466
    %v468 = vadd.f32 %v464, %v467
    %vm469 = vweird.f32 %v463
    %vm470 = vweird.f32 %v464
    %vm471 = vmor %vm469, %vm470
    %v472 = vsel %vm471, %v464, %v468
    %v473 = vand.u32 2147483647, %v463
    %vm474 = vcmp.eq.f32.partialorder %v473, 8.507059e+37
    %v475 = vand.u32 %v463, 2147483648
    %v476 = vor.u32 1.1754944e-38, %v475
    %v477 = vsel %vm474, %v476, %v472
    %v478 = vmul.f32 1.0, %v477
    %479 = vrot.lane.b32.xlu0 %v429, 64
    %v480 = vpop.permute.xlu0 %479
    %482 = vrot.lane.b32.xlu0 %v430, 96
    %v483 = vpop.permute.xlu0 %482
    %v485 = vsel %vm148, %v480, %v483
    %v486 = vtanh.pop %v485
    %487 = vrot.lane.b32.xlu0 %v429, 32
    %v488 = vpop.permute.xlu0 %487
    %490 = vrot.lane.b32.xlu0 %v430, 64
    %v491 = vpop.permute.xlu0 %490
    %v493 = vsel %vm148, %v488, %v491
    %v494 = vxor.u32 %v493, 2147483648
    %v495 = vmul.f32 %v494, 1.442695
    %v496 = vpow.pop %v495
    %v497 = vadd.f32 %v496, 1.0
    %v498 = vrcp.pop %v497
    %v499 = vmul.f32 %v497, %v498
    %v500 = vsub.f32 1.0, %v499
    %v501 = vmul.f32 %v498, %v500
    %v502 = vadd.f32 %v498, %v501
    %vm503 = vweird.f32 %v497
    %vm504 = vweird.f32 %v498
    %vm505 = vmor %vm503, %vm504
    %v506 = vsel %vm505, %v498, %v502
    %v507 = vand.u32 2147483647, %v497
    %vm508 = vcmp.eq.f32.partialorder %v507, 8.507059e+37
    %v509 = vand.u32 %v497, 2147483648
    %v510 = vor.u32 1.1754944e-38, %v509
    %v511 = vsel %vm508, %v510, %v506
    %v512 = vmul.f32 1.0, %v511
    %v513 = vmul.f32 %v478, %v372
    %v514 = vmul.f32 %v454, %v486
    %v515 = vadd.f32 %v513, %v514
    %v516 = vtanh.pop %v515
    %v517 = vmul.f32 %v512, %v516
    %s518 = scalar_lea.vmem %s3, 4
    %519 = vst.msk [vmem:[%s518] sm:$0x3] %vm232, %v517
    %521 = vrot.lane.b32.xlu0 %v517, 96
    %v522 = vpop.permute.xlu0 %521
    %s524 = scalar_lea.vmem %s67, 10
    %525 = vst.msk [vmem:[%s524] sm:$0x3] %vm232, %v522
    %s526 = scalar_lea.vmem %s0, 6
    %v527 = vld [vmem:[%s526] sm:$0x3]
    %s528 = scalar_lea.vmem %s59, 8
    %v529 = vld [vmem:[%s528] sm:$0x3]
    %v530 = vsel %vm98, %v517, 0
    %532 = vmatpush.msra.mxu0 0.0
    %533 = vmatpush.msra.mxu0 0.0
    %534 = vmatpush.msra.mxu0 0.0
    %535 = vmatpush.msra.mxu0 0.0
    %536 = vmatpush.msra.mxu0 0.0
    %537 = vmatpush.msra.mxu0 0.0
    %538 = vmatpush.msra.mxu0 0.0
    %539 = vmatpush.msra.mxu0 0.0
    %540 = vmatpush.msra.mxu0 %v91
    %541 = vmatpush.msra.mxu0 %v89
    %542 = vmatpush.msra.mxu0 %v87
    %543 = vmatpush.msra.mxu0 %v85
    %544 = vmatpush.msra.mxu0 %v83
    %545 = vmatpush.msra.mxu0 %v81
    %546 = vmatpush.msra.mxu0 %v79
    %547 = vmatpush.msra.mxu0 %v77
    %548 = vmatmul.f32.gmra.mxu0 %v530
    %v549 = vpop.f32.mrf.mxu0
    %v550 = vadd.f32 0.0, %v549
    %551 = vdwg.mxu0
    %552 = vmatpush.msra.mxu0 0.0
    %553 = vmatpush.msra.mxu0 0.0
    %554 = vmatpush.msra.mxu0 0.0
    %555 = vmatpush.msra.mxu0 0.0
    %556 = vmatpush.msra.mxu0 0.0
    %557 = vmatpush.msra.mxu0 0.0
    %558 = vmatpush.msra.mxu0 0.0
    %559 = vmatpush.msra.mxu0 0.0
    %560 = vmatpush.msra.mxu0 %v92
    %561 = vmatpush.msra.mxu0 %v90
    %562 = vmatpush.msra.mxu0 %v88
    %563 = vmatpush.msra.mxu0 %v86
    %564 = vmatpush.msra.mxu0 %v84
    %565 = vmatpush.msra.mxu0 %v82
    %566 = vmatpush.msra.mxu0 %v80
    %567 = vmatpush.msra.mxu0 %v78
    %568 = vmatmul.f32.gmra.mxu0 %v530
    %v569 = vpop.f32.mrf.mxu0
    %v570 = vadd.f32 0.0, %v569
    %571 = vdwg.mxu0
    %v572 = vadd.f32 %v527, %v550
    %v573 = vadd.f32 %v529, %v570
    %575 = vrot.lane.b32.xlu0 %v573, 32
    %v576 = vpop.permute.xlu0 %575
    %v578 = vsel %vm148, %v572, %v576
    %v579 = vxor.u32 %v578, 2147483648
    %v580 = vmul.f32 %v579, 1.442695
    %v581 = vpow.pop %v580
    %v582 = vadd.f32 %v581, 1.0
    %v583 = vrcp.pop %v582
    %v584 = vmul.f32 %v582, %v583
    %v585 = vsub.f32 1.0, %v584
    %v586 = vmul.f32 %v583, %v585
    %v587 = vadd.f32 %v583, %v586
    %vm588 = vweird.f32 %v582
    %vm589 = vweird.f32 %v583
    %vm590 = vmor %vm588, %vm589
    %v591 = vsel %vm590, %v583, %v587
    %v592 = vand.u32 2147483647, %v582
    %vm593 = vcmp.eq.f32.partialorder %v592, 8.507059e+37
    %v594 = vand.u32 %v582, 2147483648
    %v595 = vor.u32 1.1754944e-38, %v594
    %v596 = vsel %vm593, %v595, %v591
    %v597 = vmul.f32 1.0, %v596
    %599 = vrot.lane.b32.xlu0 %v572, 96
    %v600 = vpop.permute.xlu0 %599
    %v602 = vsel %vm148, %v600, %v573
    %v603 = vxor.u32 %v602, 2147483648
    %v604 = vmul.f32 %v603, 1.442695
    %v605 = vpow.pop %v604
    %v606 = vadd.f32 %v605, 1.0
    %v607 = vrcp.pop %v606
    %v608 = vmul.f32 %v606, %v607
    %v609 = vsub.f32 1.0, %v608
    %v610 = vmul.f32 %v607, %v609
    %v611 = vadd.f32 %v607, %v610
    %vm612 = vweird.f32 %v606
    %vm613 = vweird.f32 %v607
    %vm614 = vmor %vm612, %vm613
    %v615 = vsel %vm614, %v607, %v611
    %v616 = vand.u32 2147483647, %v606
    %vm617 = vcmp.eq.f32.partialorder %v616, 8.507059e+37
    %v618 = vand.u32 %v606, 2147483648
    %v619 = vor.u32 1.1754944e-38, %v618
    %v620 = vsel %vm617, %v619, %v615
    %v621 = vmul.f32 1.0, %v620
    %622 = vrot.lane.b32.xlu0 %v572, 64
    %v623 = vpop.permute.xlu0 %622
    %625 = vrot.lane.b32.xlu0 %v573, 96
    %v626 = vpop.permute.xlu0 %625
    %v628 = vsel %vm148, %v623, %v626
    %v629 = vtanh.pop %v628
    %630 = vrot.lane.b32.xlu0 %v572, 32
    %v631 = vpop.permute.xlu0 %630
    %633 = vrot.lane.b32.xlu0 %v573, 64
    %v634 = vpop.permute.xlu0 %633
    %v636 = vsel %vm148, %v631, %v634
    %v637 = vxor.u32 %v636, 2147483648
    %v638 = vmul.f32 %v637, 1.442695
    %v639 = vpow.pop %v638
    %v640 = vadd.f32 %v639, 1.0
    %v641 = vrcp.pop %v640
    %v642 = vmul.f32 %v640, %v641
    %v643 = vsub.f32 1.0, %v642
    %v644 = vmul.f32 %v641, %v643
    %v645 = vadd.f32 %v641, %v644
    %vm646 = vweird.f32 %v640
    %vm647 = vweird.f32 %v641
    %vm648 = vmor %vm646, %vm647
    %v649 = vsel %vm648, %v641, %v645
    %v650 = vand.u32 2147483647, %v640
    %vm651 = vcmp.eq.f32.partialorder %v650, 8.507059e+37
    %v652 = vand.u32 %v640, 2147483648
    %v653 = vor.u32 1.1754944e-38, %v652
    %v654 = vsel %vm651, %v653, %v649
    %v655 = vmul.f32 1.0, %v654
    %v656 = vmul.f32 %v621, %v515
    %v657 = vmul.f32 %v597, %v629
    %v658 = vadd.f32 %v656, %v657
    %v659 = vtanh.pop %v658
    %v660 = vmul.f32 %v655, %v659
    %s661 = scalar_lea.vmem %s3, 6
    %662 = vst.msk [vmem:[%s661] sm:$0x3] %vm232, %v660
    %664 = vrot.lane.b32.xlu0 %v660, 96
    %v665 = vpop.permute.xlu0 %664
    %s667 = scalar_lea.vmem %s67, 8
    %668 = vst.msk [vmem:[%s667] sm:$0x3] %vm232, %v665
    %s669 = scalar_lea.vmem %s0, 8
    %v670 = vld [vmem:[%s669] sm:$0x3]
    %s671 = scalar_lea.vmem %s59, 6
    %v672 = vld [vmem:[%s671] sm:$0x3]
    %v673 = vsel %vm98, %v660, 0
    %675 = vmatpush.msra.mxu0 0.0
    %676 = vmatpush.msra.mxu0 0.0
    %677 = vmatpush.msra.mxu0 0.0
    %678 = vmatpush.msra.mxu0 0.0
    %679 = vmatpush.msra.mxu0 0.0
    %680 = vmatpush.msra.mxu0 0.0
    %681 = vmatpush.msra.mxu0 0.0
    %682 = vmatpush.msra.mxu0 0.0
    %683 = vmatpush.msra.mxu0 %v91
    %684 = vmatpush.msra.mxu0 %v89
    %685 = vmatpush.msra.mxu0 %v87
    %686 = vmatpush.msra.mxu0 %v85
    %687 = vmatpush.msra.mxu0 %v83
    %688 = vmatpush.msra.mxu0 %v81
    %689 = vmatpush.msra.mxu0 %v79
    %690 = vmatpush.msra.mxu0 %v77
    %691 = vmatmul.f32.gmra.mxu0 %v673
    %v692 = vpop.f32.mrf.mxu0
    %v693 = vadd.f32 0.0, %v692
    %694 = vdwg.mxu0
    %695 = vmatpush.msra.mxu0 0.0
    %696 = vmatpush.msra.mxu0 0.0
    %697 = vmatpush.msra.mxu0 0.0
    %698 = vmatpush.msra.mxu0 0.0
    %699 = vmatpush.msra.mxu0 0.0
    %700 = vmatpush.msra.mxu0 0.0
    %701 = vmatpush.msra.mxu0 0.0
    %702 = vmatpush.msra.mxu0 0.0
    %703 = vmatpush.msra.mxu0 %v92
    %704 = vmatpush.msra.mxu0 %v90
    %705 = vmatpush.msra.mxu0 %v88
    %706 = vmatpush.msra.mxu0 %v86
    %707 = vmatpush.msra.mxu0 %v84
    %708 = vmatpush.msra.mxu0 %v82
    %709 = vmatpush.msra.mxu0 %v80
    %710 = vmatpush.msra.mxu0 %v78
    %711 = vmatmul.f32.gmra.mxu0 %v673
    %v712 = vpop.f32.mrf.mxu0
    %v713 = vadd.f32 0.0, %v712
    %714 = vdwg.mxu0
    %v715 = vadd.f32 %v670, %v693
    %v716 = vadd.f32 %v672, %v713
    %718 = vrot.lane.b32.xlu0 %v716, 32
    %v719 = vpop.permute.xlu0 %718
    %v721 = vsel %vm148, %v715, %v719
    %v722 = vxor.u32 %v721, 2147483648
    %v723 = vmul.f32 %v722, 1.442695
    %v724 = vpow.pop %v723
    %v725 = vadd.f32 %v724, 1.0
    %v726 = vrcp.pop %v725
    %v727 = vmul.f32 %v725, %v726
    %v728 = vsub.f32 1.0, %v727
    %v729 = vmul.f32 %v726, %v728
    %v730 = vadd.f32 %v726, %v729
    %vm731 = vweird.f32 %v725
    %vm732 = vweird.f32 %v726
    %vm733 = vmor %vm731, %vm732
    %v734 = vsel %vm733, %v726, %v730
    %v735 = vand.u32 2147483647, %v725
    %vm736 = vcmp.eq.f32.partialorder %v735, 8.507059e+37
    %v737 = vand.u32 %v725, 2147483648
    %v738 = vor.u32 1.1754944e-38, %v737
    %v739 = vsel %vm736, %v738, %v734
    %v740 = vmul.f32 1.0, %v739
    %742 = vrot.lane.b32.xlu0 %v715, 96
    %v743 = vpop.permute.xlu0 %742
    %v745 = vsel %vm148, %v743, %v716
    %v746 = vxor.u32 %v745, 2147483648
    %v747 = vmul.f32 %v746, 1.442695
    %v748 = vpow.pop %v747
    %v749 = vadd.f32 %v748, 1.0
    %v750 = vrcp.pop %v749
    %v751 = vmul.f32 %v749, %v750
    %v752 = vsub.f32 1.0, %v751
    %v753 = vmul.f32 %v750, %v752
    %v754 = vadd.f32 %v750, %v753
    %vm755 = vweird.f32 %v749
    %vm756 = vweird.f32 %v750
    %vm757 = vmor %vm755, %vm756
    %v758 = vsel %vm757, %v750, %v754
    %v759 = vand.u32 2147483647, %v749
    %vm760 = vcmp.eq.f32.partialorder %v759, 8.507059e+37
    %v761 = vand.u32 %v749, 2147483648
    %v762 = vor.u32 1.1754944e-38, %v761
    %v763 = vsel %vm760, %v762, %v758
    %v764 = vmul.f32 1.0, %v763
    %765 = vrot.lane.b32.xlu0 %v715, 64
    %v766 = vpop.permute.xlu0 %765
    %768 = vrot.lane.b32.xlu0 %v716, 96
    %v769 = vpop.permute.xlu0 %768
    %v771 = vsel %vm148, %v766, %v769
    %v772 = vtanh.pop %v771
    %773 = vrot.lane.b32.xlu0 %v715, 32
    %v774 = vpop.permute.xlu0 %773
    %776 = vrot.lane.b32.xlu0 %v716, 64
    %v777 = vpop.permute.xlu0 %776
    %v779 = vsel %vm148, %v774, %v777
    %v780 = vxor.u32 %v779, 2147483648
    %v781 = vmul.f32 %v780, 1.442695
    %v782 = vpow.pop %v781
    %v783 = vadd.f32 %v782, 1.0
    %v784 = vrcp.pop %v783
    %v785 = vmul.f32 %v783, %v784
    %v786 = vsub.f32 1.0, %v785
    %v787 = vmul.f32 %v784, %v786
    %v788 = vadd.f32 %v784, %v787
    %vm789 = vweird.f32 %v783
    %vm790 = vweird.f32 %v784
    %vm791 = vmor %vm789, %vm790
    %v792 = vsel %vm791, %v784, %v788
    %v793 = vand.u32 2147483647, %v783
    %vm794 = vcmp.eq.f32.partialorder %v793, 8.507059e+37
    %v795 = vand.u32 %v783, 2147483648
    %v796 = vor.u32 1.1754944e-38, %v795
    %v797 = vsel %vm794, %v796, %v792
    %v798 = vmul.f32 1.0, %v797
    %v799 = vmul.f32 %v764, %v658
    %v800 = vmul.f32 %v740, %v772
    %v801 = vadd.f32 %v799, %v800
    %v802 = vtanh.pop %v801
    %v803 = vmul.f32 %v798, %v802
    %s804 = scalar_lea.vmem %s3, 8
    %805 = vst.msk [vmem:[%s804] sm:$0x3] %vm232, %v803
    %807 = vrot.lane.b32.xlu0 %v803, 96
    %v808 = vpop.permute.xlu0 %807
    %s810 = scalar_lea.vmem %s67, 6
    %811 = vst.msk [vmem:[%s810] sm:$0x3] %vm232, %v808
    %s812 = scalar_lea.vmem %s0, 10
    %v813 = vld [vmem:[%s812] sm:$0x3]
    %s814 = scalar_lea.vmem %s59, 4
    %v815 = vld [vmem:[%s814] sm:$0x3]
    %v816 = vsel %vm98, %v803, 0
    %818 = vmatpush.msra.mxu0 0.0
    %819 = vmatpush.msra.mxu0 0.0
    %820 = vmatpush.msra.mxu0 0.0
    %821 = vmatpush.msra.mxu0 0.0
    %822 = vmatpush.msra.mxu0 0.0
    %823 = vmatpush.msra.mxu0 0.0
    %824 = vmatpush.msra.mxu0 0.0
    %825 = vmatpush.msra.mxu0 0.0
    %826 = vmatpush.msra.mxu0 %v91
    %827 = vmatpush.msra.mxu0 %v89
    %828 = vmatpush.msra.mxu0 %v87
    %829 = vmatpush.msra.mxu0 %v85
    %830 = vmatpush.msra.mxu0 %v83
    %831 = vmatpush.msra.mxu0 %v81
    %832 = vmatpush.msra.mxu0 %v79
    %833 = vmatpush.msra.mxu0 %v77
    %834 = vmatmul.f32.gmra.mxu0 %v816
    %v835 = vpop.f32.mrf.mxu0
    %v836 = vadd.f32 0.0, %v835
    %837 = vdwg.mxu0
    %838 = vmatpush.msra.mxu0 0.0
    %839 = vmatpush.msra.mxu0 0.0
    %840 = vmatpush.msra.mxu0 0.0
    %841 = vmatpush.msra.mxu0 0.0
    %842 = vmatpush.msra.mxu0 0.0
    %843 = vmatpush.msra.mxu0 0.0
    %844 = vmatpush.msra.mxu0 0.0
    %845 = vmatpush.msra.mxu0 0.0
    %846 = vmatpush.msra.mxu0 %v92
    %847 = vmatpush.msra.mxu0 %v90
    %848 = vmatpush.msra.mxu0 %v88
    %849 = vmatpush.msra.mxu0 %v86
    %850 = vmatpush.msra.mxu0 %v84
    %851 = vmatpush.msra.mxu0 %v82
    %852 = vmatpush.msra.mxu0 %v80
    %853 = vmatpush.msra.mxu0 %v78
    %854 = vmatmul.f32.gmra.mxu0 %v816
    %v855 = vpop.f32.mrf.mxu0
    %v856 = vadd.f32 0.0, %v855
    %857 = vdwg.mxu0
    %v858 = vadd.f32 %v813, %v836
    %v859 = vadd.f32 %v815, %v856
    %861 = vrot.lane.b32.xlu0 %v859, 32
    %v862 = vpop.permute.xlu0 %861
    %v864 = vsel %vm148, %v858, %v862
    %v865 = vxor.u32 %v864, 2147483648
    %v866 = vmul.f32 %v865, 1.442695
    %v867 = vpow.pop %v866
    %v868 = vadd.f32 %v867, 1.0
    %v869 = vrcp.pop %v868
    %v870 = vmul.f32 %v868, %v869
    %v871 = vsub.f32 1.0, %v870
    %v872 = vmul.f32 %v869, %v871
    %v873 = vadd.f32 %v869, %v872
    %vm874 = vweird.f32 %v868
    %vm875 = vweird.f32 %v869
    %vm876 = vmor %vm874, %vm875
    %v877 = vsel %vm876, %v869, %v873
    %v878 = vand.u32 2147483647, %v868
    %vm879 = vcmp.eq.f32.partialorder %v878, 8.507059e+37
    %v880 = vand.u32 %v868, 2147483648
    %v881 = vor.u32 1.1754944e-38, %v880
    %v882 = vsel %vm879, %v881, %v877
    %v883 = vmul.f32 1.0, %v882
    %885 = vrot.lane.b32.xlu0 %v858, 96
    %v886 = vpop.permute.xlu0 %885
    %v888 = vsel %vm148, %v886, %v859
    %v889 = vxor.u32 %v888, 2147483648
    %v890 = vmul.f32 %v889, 1.442695
    %v891 = vpow.pop %v890
    %v892 = vadd.f32 %v891, 1.0
    %v893 = vrcp.pop %v892
    %v894 = vmul.f32 %v892, %v893
    %v895 = vsub.f32 1.0, %v894
    %v896 = vmul.f32 %v893, %v895
    %v897 = vadd.f32 %v893, %v896
    %vm898 = vweird.f32 %v892
    %vm899 = vweird.f32 %v893
    %vm900 = vmor %vm898, %vm899
    %v901 = vsel %vm900, %v893, %v897
    %v902 = vand.u32 2147483647, %v892
    %vm903 = vcmp.eq.f32.partialorder %v902, 8.507059e+37
    %v904 = vand.u32 %v892, 2147483648
    %v905 = vor.u32 1.1754944e-38, %v904
    %v906 = vsel %vm903, %v905, %v901
    %v907 = vmul.f32 1.0, %v906
    %908 = vrot.lane.b32.xlu0 %v858, 64
    %v909 = vpop.permute.xlu0 %908
    %911 = vrot.lane.b32.xlu0 %v859, 96
    %v912 = vpop.permute.xlu0 %911
    %v914 = vsel %vm148, %v909, %v912
    %v915 = vtanh.pop %v914
    %916 = vrot.lane.b32.xlu0 %v858, 32
    %v917 = vpop.permute.xlu0 %916
    %919 = vrot.lane.b32.xlu0 %v859, 64
    %v920 = vpop.permute.xlu0 %919
    %v922 = vsel %vm148, %v917, %v920
    %v923 = vxor.u32 %v922, 2147483648
    %v924 = vmul.f32 %v923, 1.442695
    %v925 = vpow.pop %v924
    %v926 = vadd.f32 %v925, 1.0
    %v927 = vrcp.pop %v926
    %v928 = vmul.f32 %v926, %v927
    %v929 = vsub.f32 1.0, %v928
    %v930 = vmul.f32 %v927, %v929
    %v931 = vadd.f32 %v927, %v930
    %vm932 = vweird.f32 %v926
    %vm933 = vweird.f32 %v927
    %vm934 = vmor %vm932, %vm933
    %v935 = vsel %vm934, %v927, %v931
    %v936 = vand.u32 2147483647, %v926
    %vm937 = vcmp.eq.f32.partialorder %v936, 8.507059e+37
    %v938 = vand.u32 %v926, 2147483648
    %v939 = vor.u32 1.1754944e-38, %v938
    %v940 = vsel %vm937, %v939, %v935
    %v941 = vmul.f32 1.0, %v940
    %v942 = vmul.f32 %v907, %v801
    %v943 = vmul.f32 %v883, %v915
    %v944 = vadd.f32 %v942, %v943
    %v945 = vtanh.pop %v944
    %v946 = vmul.f32 %v941, %v945
    %s947 = scalar_lea.vmem %s3, 10
    %948 = vst.msk [vmem:[%s947] sm:$0x3] %vm232, %v946
    %950 = vrot.lane.b32.xlu0 %v946, 96
    %v951 = vpop.permute.xlu0 %950
    %s953 = scalar_lea.vmem %s67, 4
    %954 = vst.msk [vmem:[%s953] sm:$0x3] %vm232, %v951
    %s955 = scalar_lea.vmem %s0, 12
    %v956 = vld [vmem:[%s955] sm:$0x3]
    %s957 = scalar_lea.vmem %s59, 2
    %v958 = vld [vmem:[%s957] sm:$0x3]
    %v959 = vsel %vm98, %v946, 0
    %961 = vmatpush.msra.mxu0 0.0
    %962 = vmatpush.msra.mxu0 0.0
    %963 = vmatpush.msra.mxu0 0.0
    %964 = vmatpush.msra.mxu0 0.0
    %965 = vmatpush.msra.mxu0 0.0
    %966 = vmatpush.msra.mxu0 0.0
    %967 = vmatpush.msra.mxu0 0.0
    %968 = vmatpush.msra.mxu0 0.0
    %969 = vmatpush.msra.mxu0 %v91
    %970 = vmatpush.msra.mxu0 %v89
    %971 = vmatpush.msra.mxu0 %v87
    %972 = vmatpush.msra.mxu0 %v85
    %973 = vmatpush.msra.mxu0 %v83
    %974 = vmatpush.msra.mxu0 %v81
    %975 = vmatpush.msra.mxu0 %v79
    %976 = vmatpush.msra.mxu0 %v77
    %977 = vmatmul.f32.gmra.mxu0 %v959
    %v978 = vpop.f32.mrf.mxu0
    %v979 = vadd.f32 0.0, %v978
    %980 = vdwg.mxu0
    %981 = vmatpush.msra.mxu0 0.0
    %982 = vmatpush.msra.mxu0 0.0
    %983 = vmatpush.msra.mxu0 0.0
    %984 = vmatpush.msra.mxu0 0.0
    %985 = vmatpush.msra.mxu0 0.0
    %986 = vmatpush.msra.mxu0 0.0
    %987 = vmatpush.msra.mxu0 0.0
    %988 = vmatpush.msra.mxu0 0.0
    %989 = vmatpush.msra.mxu0 %v92
    %990 = vmatpush.msra.mxu0 %v90
    %991 = vmatpush.msra.mxu0 %v88
    %992 = vmatpush.msra.mxu0 %v86
    %993 = vmatpush.msra.mxu0 %v84
    %994 = vmatpush.msra.mxu0 %v82
    %995 = vmatpush.msra.mxu0 %v80
    %996 = vmatpush.msra.mxu0 %v78
    %997 = vmatmul.f32.gmra.mxu0 %v959
    %v998 = vpop.f32.mrf.mxu0
    %v999 = vadd.f32 0.0, %v998
    %1000 = vdwg.mxu0
    %v1001 = vadd.f32 %v956, %v979
    %v1002 = vadd.f32 %v958, %v999
    %1004 = vrot.lane.b32.xlu0 %v1002, 32
    %v1005 = vpop.permute.xlu0 %1004
    %v1007 = vsel %vm148, %v1001, %v1005
    %v1008 = vxor.u32 %v1007, 2147483648
    %v1009 = vmul.f32 %v1008, 1.442695
    %v1010 = vpow.pop %v1009
    %v1011 = vadd.f32 %v1010, 1.0
    %v1012 = vrcp.pop %v1011
    %v1013 = vmul.f32 %v1011, %v1012
    %v1014 = vsub.f32 1.0, %v1013
    %v1015 = vmul.f32 %v1012, %v1014
    %v1016 = vadd.f32 %v1012, %v1015
    %vm1017 = vweird.f32 %v1011
    %vm1018 = vweird.f32 %v1012
    %vm1019 = vmor %vm1017, %vm1018
    %v1020 = vsel %vm1019, %v1012, %v1016
    %v1021 = vand.u32 2147483647, %v1011
    %vm1022 = vcmp.eq.f32.partialorder %v1021, 8.507059e+37
    %v1023 = vand.u32 %v1011, 2147483648
    %v1024 = vor.u32 1.1754944e-38, %v1023
    %v1025 = vsel %vm1022, %v1024, %v1020
    %v1026 = vmul.f32 1.0, %v1025
    %1028 = vrot.lane.b32.xlu0 %v1001, 96
    %v1029 = vpop.permute.xlu0 %1028
    %v1031 = vsel %vm148, %v1029, %v1002
    %v1032 = vxor.u32 %v1031, 2147483648
    %v1033 = vmul.f32 %v1032, 1.442695
    %v1034 = vpow.pop %v1033
    %v1035 = vadd.f32 %v1034, 1.0
    %v1036 = vrcp.pop %v1035
    %v1037 = vmul.f32 %v1035, %v1036
    %v1038 = vsub.f32 1.0, %v1037
    %v1039 = vmul.f32 %v1036, %v1038
    %v1040 = vadd.f32 %v1036, %v1039
    %vm1041 = vweird.f32 %v1035
    %vm1042 = vweird.f32 %v1036
    %vm1043 = vmor %vm1041, %vm1042
    %v1044 = vsel %vm1043, %v1036, %v1040
    %v1045 = vand.u32 2147483647, %v1035
    %vm1046 = vcmp.eq.f32.partialorder %v1045, 8.507059e+37
    %v1047 = vand.u32 %v1035, 2147483648
    %v1048 = vor.u32 1.1754944e-38, %v1047
    %v1049 = vsel %vm1046, %v1048, %v1044
    %v1050 = vmul.f32 1.0, %v1049
    %1051 = vrot.lane.b32.xlu0 %v1001, 64
    %v1052 = vpop.permute.xlu0 %1051
    %1054 = vrot.lane.b32.xlu0 %v1002, 96
    %v1055 = vpop.permute.xlu0 %1054
    %v1057 = vsel %vm148, %v1052, %v1055
    %v1058 = vtanh.pop %v1057
    %1059 = vrot.lane.b32.xlu0 %v1001, 32
    %v1060 = vpop.permute.xlu0 %1059
    %1062 = vrot.lane.b32.xlu0 %v1002, 64
    %v1063 = vpop.permute.xlu0 %1062
    %v1065 = vsel %vm148, %v1060, %v1063
    %v1066 = vxor.u32 %v1065, 2147483648
    %v1067 = vmul.f32 %v1066, 1.442695
    %v1068 = vpow.pop %v1067
    %v1069 = vadd.f32 %v1068, 1.0
    %v1070 = vrcp.pop %v1069
    %v1071 = vmul.f32 %v1069, %v1070
    %v1072 = vsub.f32 1.0, %v1071
    %v1073 = vmul.f32 %v1070, %v1072
    %v1074 = vadd.f32 %v1070, %v1073
    %vm1075 = vweird.f32 %v1069
    %vm1076 = vweird.f32 %v1070
    %vm1077 = vmor %vm1075, %vm1076
    %v1078 = vsel %vm1077, %v1070, %v1074
    %v1079 = vand.u32 2147483647, %v1069
    %vm1080 = vcmp.eq.f32.partialorder %v1079, 8.507059e+37
    %v1081 = vand.u32 %v1069, 2147483648
    %v1082 = vor.u32 1.1754944e-38, %v1081
    %v1083 = vsel %vm1080, %v1082, %v1078
    %v1084 = vmul.f32 1.0, %v1083
    %v1085 = vmul.f32 %v1050, %v944
    %v1086 = vmul.f32 %v1026, %v1058
    %v1087 = vadd.f32 %v1085, %v1086
    %v1088 = vtanh.pop %v1087
    %v1089 = vmul.f32 %v1084, %v1088
    %s1090 = scalar_lea.vmem %s3, 12
    %1091 = vst.msk [vmem:[%s1090] sm:$0x3] %vm232, %v1089
    %1093 = vrot.lane.b32.xlu0 %v1089, 96
    %v1094 = vpop.permute.xlu0 %1093
    %s1096 = scalar_lea.vmem %s67, 2
    %1097 = vst.msk [vmem:[%s1096] sm:$0x3] %vm232, %v1094
    %s1098 = scalar_lea.vmem %s0, 14
    %v1099 = vld [vmem:[%s1098] sm:$0x3]
    %v1100 = vld [vmem:[%s59] sm:$0x3]
    %v1101 = vsel %vm98, %v1089, 0
    %1103 = vmatpush.msra.mxu0 0.0
    %1104 = vmatpush.msra.mxu0 0.0
    %1105 = vmatpush.msra.mxu0 0.0
    %1106 = vmatpush.msra.mxu0 0.0
    %1107 = vmatpush.msra.mxu0 0.0
    %1108 = vmatpush.msra.mxu0 0.0
    %1109 = vmatpush.msra.mxu0 0.0
    %1110 = vmatpush.msra.mxu0 0.0
    %1111 = vmatpush.msra.mxu0 %v91
    %1112 = vmatpush.msra.mxu0 %v89
    %1113 = vmatpush.msra.mxu0 %v87
    %1114 = vmatpush.msra.mxu0 %v85
    %1115 = vmatpush.msra.mxu0 %v83
    %1116 = vmatpush.msra.mxu0 %v81
    %1117 = vmatpush.msra.mxu0 %v79
    %1118 = vmatpush.msra.mxu0 %v77
    %1119 = vmatmul.f32.gmra.mxu0 %v1101
    %v1120 = vpop.f32.mrf.mxu0
    %v1121 = vadd.f32 0.0, %v1120
    %1122 = vdwg.mxu0
    %1123 = vmatpush.msra.mxu0 0.0
    %1124 = vmatpush.msra.mxu0 0.0
    %1125 = vmatpush.msra.mxu0 0.0
    %1126 = vmatpush.msra.mxu0 0.0
    %1127 = vmatpush.msra.mxu0 0.0
    %1128 = vmatpush.msra.mxu0 0.0
    %1129 = vmatpush.msra.mxu0 0.0
    %1130 = vmatpush.msra.mxu0 0.0
    %1131 = vmatpush.msra.mxu0 %v92
    %1132 = vmatpush.msra.mxu0 %v90
    %1133 = vmatpush.msra.mxu0 %v88
    %1134 = vmatpush.msra.mxu0 %v86
    %1135 = vmatpush.msra.mxu0 %v84
    %1136 = vmatpush.msra.mxu0 %v82
    %1137 = vmatpush.msra.mxu0 %v80
    %1138 = vmatpush.msra.mxu0 %v78
    %1139 = vmatmul.f32.gmra.mxu0 %v1101
    %v1140 = vpop.f32.mrf.mxu0
    %v1141 = vadd.f32 0.0, %v1140
    %1142 = vdwg.mxu0
    %v1143 = vadd.f32 %v1099, %v1121
    %v1144 = vadd.f32 %v1100, %v1141
    %1146 = vrot.lane.b32.xlu0 %v1144, 32
    %v1147 = vpop.permute.xlu0 %1146
    %v1149 = vsel %vm148, %v1143, %v1147
    %v1150 = vxor.u32 %v1149, 2147483648
    %v1151 = vmul.f32 %v1150, 1.442695
    %v1152 = vpow.pop %v1151
    %v1153 = vadd.f32 %v1152, 1.0
    %v1154 = vrcp.pop %v1153
    %v1155 = vmul.f32 %v1153, %v1154
    %v1156 = vsub.f32 1.0, %v1155
    %v1157 = vmul.f32 %v1154, %v1156
    %v1158 = vadd.f32 %v1154, %v1157
    %vm1159 = vweird.f32 %v1153
    %vm1160 = vweird.f32 %v1154
    %vm1161 = vmor %vm1159, %vm1160
    %v1162 = vsel %vm1161, %v1154, %v1158
    %v1163 = vand.u32 2147483647, %v1153
    %vm1164 = vcmp.eq.f32.partialorder %v1163, 8.507059e+37
    %v1165 = vand.u32 %v1153, 2147483648
    %v1166 = vor.u32 1.1754944e-38, %v1165
    %v1167 = vsel %vm1164, %v1166, %v1162
    %v1168 = vmul.f32 1.0, %v1167
    %1170 = vrot.lane.b32.xlu0 %v1143, 96
    %v1171 = vpop.permute.xlu0 %1170
    %v1173 = vsel %vm148, %v1171, %v1144
    %v1174 = vxor.u32 %v1173, 2147483648
    %v1175 = vmul.f32 %v1174, 1.442695
    %v1176 = vpow.pop %v1175
    %v1177 = vadd.f32 %v1176, 1.0
    %v1178 = vrcp.pop %v1177
    %v1179 = vmul.f32 %v1177, %v1178
    %v1180 = vsub.f32 1.0, %v1179
    %v1181 = vmul.f32 %v1178, %v1180
    %v1182 = vadd.f32 %v1178, %v1181
    %vm1183 = vweird.f32 %v1177
    %vm1184 = vweird.f32 %v1178
    %vm1185 = vmor %vm1183, %vm1184
    %v1186 = vsel %vm1185, %v1178, %v1182
    %v1187 = vand.u32 2147483647, %v1177
    %vm1188 = vcmp.eq.f32.partialorder %v1187, 8.507059e+37
    %v1189 = vand.u32 %v1177, 2147483648
    %v1190 = vor.u32 1.1754944e-38, %v1189
    %v1191 = vsel %vm1188, %v1190, %v1186
    %v1192 = vmul.f32 1.0, %v1191
    %1193 = vrot.lane.b32.xlu0 %v1143, 64
    %v1194 = vpop.permute.xlu0 %1193
    %1196 = vrot.lane.b32.xlu0 %v1144, 96
    %v1197 = vpop.permute.xlu0 %1196
    %v1199 = vsel %vm148, %v1194, %v1197
    %v1200 = vtanh.pop %v1199
    %1201 = vrot.lane.b32.xlu0 %v1143, 32
    %v1202 = vpop.permute.xlu0 %1201
    %1204 = vrot.lane.b32.xlu0 %v1144, 64
    %v1205 = vpop.permute.xlu0 %1204
    %v1207 = vsel %vm148, %v1202, %v1205
    %v1208 = vxor.u32 %v1207, 2147483648
    %v1209 = vmul.f32 %v1208, 1.442695
    %v1210 = vpow.pop %v1209
    %v1211 = vadd.f32 %v1210, 1.0
    %v1212 = vrcp.pop %v1211
    %v1213 = vmul.f32 %v1211, %v1212
    %v1214 = vsub.f32 1.0, %v1213
    %v1215 = vmul.f32 %v1212, %v1214
    %v1216 = vadd.f32 %v1212, %v1215
    %vm1217 = vweird.f32 %v1211
    %vm1218 = vweird.f32 %v1212
    %vm1219 = vmor %vm1217, %vm1218
    %v1220 = vsel %vm1219, %v1212, %v1216
    %v1221 = vand.u32 2147483647, %v1211
    %vm1222 = vcmp.eq.f32.partialorder %v1221, 8.507059e+37
    %v1223 = vand.u32 %v1211, 2147483648
    %v1224 = vor.u32 1.1754944e-38, %v1223
    %v1225 = vsel %vm1222, %v1224, %v1220
    %v1226 = vmul.f32 1.0, %v1225
    %v1227 = vmul.f32 %v1192, %v1087
    %v1228 = vmul.f32 %v1168, %v1200
    %v1229 = vadd.f32 %v1227, %v1228
    %v1230 = vtanh.pop %v1229
    %v1231 = vmul.f32 %v1226, %v1230
    %s1232 = scalar_lea.vmem %s3, 14
    %1233 = vst.msk [vmem:[%s1232] sm:$0x3] %vm232, %v1231
    %1235 = vrot.lane.b32.xlu0 %v1231, 96
    %v1236 = vpop.permute.xlu0 %1235
    %1238 = vst.msk [vmem:[%s67] sm:$0x3] %vm232, %v1236
    %vm1239 = vcmask 517120
    %1240 = vst.msk [vmem:[#allocation2] sm:$0x3] %vm1239, %v1231
    %1241 = vst.msk [vmem:[#allocation3] sm:$0x3] %vm1239, %v1229
    // Predicated region
    $region22: #{chimera_magphasebook_forward.3} parent=1 // pred_check
      %p1242 = pneg %p70
    $region23: #{chimera_magphasebook_forward.3} parent=1 // pred_check_branch
      %1244 = sbr.rel (%p1242) target = $region25
    $region24: #{chimera_magphasebook_forward.3} parent=1 // pred_region
      %1245 = vst.msk [vmem:[%s5] sm:$0x3] %vm232, %v1231
      %s1246 = scalar_lea.vmem %s5, 2
      %1247 = vst.msk [vmem:[%s1246] sm:$0x3] %vm232, %v1236
      %1248 = vst.msk [vmem:[%s6] sm:$0x3] %vm232, %v1229
      %1250 = vrot.lane.b32.xlu0 %v1229, 96
      %v1251 = vpop.permute.xlu0 %1250
      %s1253 = scalar_lea.vmem %s6, 2
      %1254 = vst.msk [vmem:[%s1253] sm:$0x3] %vm232, %v1251
    $region25: #{chimera_magphasebook_forward.3} parent=1 // pred_fallthru
      _
    %s1255 = ssub.s32 0, 0
    %s1256 = smul.u32 8, %s1255
    %p1257 = scmp.lt.s32.totalorder %s1256, 7
    %s1258 = scalar_select %p1257, %s1256, 7
    %s1259 = smul.addr %s1258, 2
    %s1260 = scalar_lea.vmem %s4, %s1259
    // Predicated region
    $region26: #{chimera_magphasebook_forward.3} parent=1 // pred_check
      _
    $region27: #{chimera_magphasebook_forward.3} parent=1 // pred_check_branch
      %1262 = sbr.rel (0) target = $region29
    $region28: #{chimera_magphasebook_forward.3} parent=1 // pred_region
      _
    $region29: #{chimera_magphasebook_forward.3} parent=1 // pred_fallthru
      _
    // Predicated region
    $region30: #{chimera_magphasebook_forward.3} parent=1 // pred_check
      _
    $region31: #{chimera_magphasebook_forward.3} parent=1 // pred_check_branch
      %1264 = sbr.rel (0) target = $region33
    $region32: #{chimera_magphasebook_forward.3} parent=1 // pred_region
      %s1265 = ssub.s32 0, 0
      %s1266 = smul.u32 8, %s1265
    $region33: #{chimera_magphasebook_forward.3} parent=1 // pred_fallthru
      _
    // Predicated region
    $region34: #{chimera_magphasebook_forward.3} parent=1 // pred_check
      _
    $region35: #{chimera_magphasebook_forward.3} parent=1 // pred_check_branch
      %1268 = sbr.rel (0) target = $region37
    $region36: #{chimera_magphasebook_forward.3} parent=1 // pred_region
      _
    $region37: #{chimera_magphasebook_forward.3} parent=1 // pred_fallthru
      _
    // Predicated region
    $region38: #{chimera_magphasebook_forward.3} parent=1 // pred_check
      _
    $region39: #{chimera_magphasebook_forward.3} parent=1 // pred_check_branch
      %1270 = sbr.rel (0) target = $region41
    $region40: #{chimera_magphasebook_forward.3} parent=1 // pred_region
      _
    $region41: #{chimera_magphasebook_forward.3} parent=1 // pred_fallthru
      _
    // Predicated region
    $region42: #{chimera_magphasebook_forward.3} parent=1 // pred_check
      _
    $region43: #{chimera_magphasebook_forward.3} parent=1 // pred_check_branch
      %1272 = sbr.rel (0) target = $region45
    $region44: #{chimera_magphasebook_forward.3} parent=1 // pred_region
      _
    $region45: #{chimera_magphasebook_forward.3} parent=1 // pred_fallthru
      _
    // Predicated region
    $region46: #{chimera_magphasebook_forward.3} parent=1 // pred_check
      _
    $region47: #{chimera_magphasebook_forward.3} parent=1 // pred_check_branch
      %1274 = sbr.rel (0) target = $region49
    $region48: #{chimera_magphasebook_forward.3} parent=1 // pred_region
      %s1275 = ssub.s32 0, 0
      %s1276 = smul.u32 8, %s1275
      %p1277 = scmp.lt.s32.totalorder %s1276, 7
      %s1278 = scalar_select %p1277, %s1276, 7
      %s1279 = smul.addr %s1278, 2
      %s1280 = scalar_lea.vmem %s4, %s1279
    $region49: #{chimera_magphasebook_forward.3} parent=1 // pred_fallthru
      _
    // Predicated region
    $region50: #{chimera_magphasebook_forward.3} parent=1 // pred_check
      _
    $region51: #{chimera_magphasebook_forward.3} parent=1 // pred_check_branch
      %1282 = sbr.rel (0) target = $region53
    $region52: #{chimera_magphasebook_forward.3} parent=1 // pred_region
      _
    $region53: #{chimera_magphasebook_forward.3} parent=1 // pred_fallthru
      _
    // Predicated region
    $region54: #{chimera_magphasebook_forward.3} parent=1 // pred_check
      _
    $region55: #{chimera_magphasebook_forward.3} parent=1 // pred_check_branch
      %1284 = sbr.rel (0) target = $region57
    $region56: #{chimera_magphasebook_forward.3} parent=1 // pred_region
      _
    $region57: #{chimera_magphasebook_forward.3} parent=1 // pred_fallthru
      _
    %1285 = vsyncpa [#allocation5], 1

</llo_original>
